<compile_context>
chip_gen: v7x
topology: tpu7x:2x2x1
jax: 0.10.0
libtpu: 0.0.40
codegen_flags: <defaults>
</compile_context>

<pallas_src>
import functools

import jax
import jax.numpy as jnp
from jax.experimental import pallas as pl
from jax.experimental.pallas import tpu as pltpu


# ----------------------------------------------------------------------------
# Pallas kernels: fused (Cout,K)@(K,M) matmul + shift (+ReLU) (+residual)
# ----------------------------------------------------------------------------
def _conv_mm_kernel(w_ref, a_ref, t_ref, o_ref, *, relu):
    acc = jnp.dot(w_ref[...], a_ref[...], preferred_element_type=jnp.float32)
    y = acc + t_ref[...]
    if relu:
        y = jnp.maximum(y, 0.0)
    o_ref[...] = y.astype(o_ref.dtype)


def _conv_mm_res_kernel(w_ref, a_ref, t_ref, r_ref, o_ref, *, relu):
    acc = jnp.dot(w_ref[...], a_ref[...], preferred_element_type=jnp.float32)
    y = acc + t_ref[...]
    if relu:
        y = jnp.maximum(y, 0.0)
    o_ref[...] = (y + r_ref[...]).astype(o_ref.dtype)


def _pick_tm(M):
    # Largest lane-dense tile that still leaves >= 2 grid steps (megacore);
    # fall back to a single full-extent step for tiny M (block == full dim is
    # always legal).
    for tm in (2048, 1024, 512, 256, 128):
        if M % tm == 0 and M // tm >= 2:
            return tm
    for tm in (2048, 1024, 512, 256, 128):
        if M % tm == 0:
            return tm
    return M


def fused_conv_matmul(w, a, shift, relu, residual=None):
    """optional_residual + relu((w @ a) + shift[:, None]).

    w: (N, K) bf16 with BN scale already folded in.
    a: (K, M) bf16 im2col matrix (K = padded 27*Cin, M = B*Do*Ho*Wo).
    shift: (N,) f32 folded-BN shift.
    residual: optional (N, M) f32 added after the ReLU (fused skip connection).
    Returns (N, M) f32 with M (the big dim) on the lane axis.
    """
    N, K = w.shape
    K2, M = a.shape
    assert K == K2
    TM = _pick_tm(M)
    grid = (M // TM,)
    t2 = shift.reshape(N, 1).astype(jnp.float32)

    in_specs = [
        pl.BlockSpec((N, K), lambda i: (0, 0)),    # small weight, VMEM-resident
        pl.BlockSpec((K, TM), lambda i: (0, i)),   # im2col slab (lane dim = TM)
        pl.BlockSpec((N, 1), lambda i: (0, 0)),    # folded-BN shift
    ]
    args = [w, a, t2]
    if residual is None:
        kernel = functools.partial(_conv_mm_kernel, relu=relu)
    else:
        in_specs.append(pl.BlockSpec((N, TM), lambda i: (0, i)))
        args.append(residual)
        kernel = functools.partial(_conv_mm_res_kernel, relu=relu)

    return pl.pallas_call(
        kernel,
        out_shape=jax.ShapeDtypeStruct((M and (N, M))[0:2] if False else
                                       jax.ShapeDtypeStruct((N, M), jnp.float32).shape,
                                       jnp.float32)
        if False else
        jax.ShapeDtypeStruct((N, M), jnp.float32),
        grid_spec=pltpu.PrefetchScalarGridSpec(
            num_scalar_prefetch=0,
            grid=grid,
            in_specs=in_specs,
            out_specs=pl.BlockSpec((N, TM), lambda i: (0, i)),
        ),
        compiler_params=pltpu.CompilerParams(
            dimension_semantics=("parallel",)),
    )(*args)


# ----------------------------------------------------------------------------
# Plain-JAX glue: transposed im2col for 3x3x3 convs (stride 1 or 2)
# Activations are (C, B, D, H, W) so each tap reshapes to (Cin, M) with zero
# transposes; taps are concatenated K-major as (tap, cin) to match the weight.
# ----------------------------------------------------------------------------
def _im2col_T(xp, out_shape, stride):
    # xp: (C, B, Dp, Hp, Wp) already padded, bf16.  Returns (27*C, M) bf16.
    C, B = xp.shape[0], xp.shape[1]
    Do, Ho, Wo = out_shape
    M = B * Do * Ho * Wo
    taps = []
    for kd in range(3):
        for kh in range(3):
            for kw in range(3):
                p = xp[:, :, kd:kd + stride * Do:stride,
                       kh:kh + stride * Ho:stride,
                       kw:kw + stride * Wo:stride]
                taps.append(p.reshape(C, M))
    return jnp.concatenate(taps, axis=0)  # (27*C, M)


def _pad_k(a, wk, K):
    Kp = ((K + 7) // 8) * 8
    if Kp != K:
        a = jnp.pad(a, ((0, Kp - K), (0, 0)))
        wk = jnp.pad(wk, ((0, 0), (0, Kp - K)))
    return a, wk


def conv3d_block(x, w, scale, shift, stride, relu=True, residual=None):
    """x: (Cin, B, D, H, W) f32.  w: torch Conv3d layout (Cout, Cin, 3, 3, 3)."""
    Cin, B, D, H, W = x.shape
    Cout = w.shape[0]
    Do = (D + 2 - 3) // stride + 1
    Ho = (H + 2 - 3) // stride + 1
    Wo = (W + 2 - 3) // stride + 1
    xp = jnp.pad(x, ((0, 0), (0, 0), (1, 1), (1, 1), (1, 1))).astype(jnp.bfloat16)
    a = _im2col_T(xp, (Do, Ho, Wo), stride)                     # (27*Cin, M)
    wk = jnp.transpose(w, (0, 2, 3, 4, 1)).reshape(Cout, 27 * Cin)
    wk = (wk * scale[:, None]).astype(jnp.bfloat16)             # fold BN scale in f32
    a, wk = _pad_k(a, wk, 27 * Cin)
    res = None if residual is None else residual.reshape(Cout, B * Do * Ho * Wo)
    y = fused_conv_matmul(wk, a, shift, relu, res)
    return y.reshape(Cout, B, Do, Ho, Wo)


def deconv3d_block(x, w, scale, shift, residual=None):
    """ConvTranspose3d(k=3, s=2, p=1, op=1) + BN + ReLU (+ fused skip-add).

    x: (Cin, B, D, H, W) f32.  w: torch ConvTranspose3d layout (Cin, Cout, 3,3,3).
    Implemented as zero-dilation + asymmetric pad + stride-1 conv with the
    spatially-flipped, channel-swapped weight.
    """
    Cin, B, D, H, W = x.shape
    Cout = w.shape[1]
    Do, Ho, Wo = 2 * D, 2 * H, 2 * W
    xd = jnp.zeros((Cin, B, 2 * D - 1, 2 * H - 1, 2 * W - 1), jnp.bfloat16)
    xd = xd.at[:, :, ::2, ::2, ::2].set(x.astype(jnp.bfloat16))
    # left pad = k-1-p = 1, right pad = k-1-p + output_padding = 2
    xp = jnp.pad(xd, ((0, 0), (0, 0), (1, 2), (1, 2), (1, 2)))
    a = _im2col_T(xp, (Do, Ho, Wo), 1)
    wf = w[:, :, ::-1, ::-1, ::-1]                              # flip spatial
    wk = jnp.transpose(wf, (1, 2, 3, 4, 0)).reshape(Cout, 27 * Cin)
    wk = (wk * scale[:, None]).astype(jnp.bfloat16)
    a, wk = _pad_k(a, wk, 27 * Cin)
    res = None if residual is None else residual.reshape(Cout, B * Do * Ho * Wo)
    y = fused_conv_matmul(wk, a, shift, True, res)
    return y.reshape(Cout, B, Do, Ho, Wo)


# ----------------------------------------------------------------------------
# Deterministic parameter construction (Conv3d/Deconv3d = conv + BN + ReLU,
# BN folded into per-channel scale/shift; conv6_2 is a plain bias-free conv).
# ----------------------------------------------------------------------------
def init_params(key, in_channels, base_channels):
    bc = base_channels
    layer_defs = {
        "conv1_0": (in_channels, bc * 2, 2, "conv"),
        "conv2_0": (bc * 2, bc * 4, 2, "conv"),
        "conv3_0": (bc * 4, bc * 8, 2, "conv"),
        "conv0_1": (in_channels, bc, 1, "conv"),
        "conv1_1": (bc * 2, bc * 2, 1, "conv"),
        "conv2_1": (bc * 4, bc * 4, 1, "conv"),
        "conv3_1": (bc * 8, bc * 8, 1, "conv"),
        "conv4_0": (bc * 8, bc * 4, 2, "deconv"),
        "conv5_0": (bc * 4, bc * 2, 2, "deconv"),
        "conv6_0": (bc * 2, bc, 2, "deconv"),
        "conv6_2": (bc, 1, 1, "conv_plain"),
    }
    params = {}
    for name, (cin, cout, stride, kind) in layer_defs.items():
        key, k1, k2, k3, k4, k5 = jax.random.split(key, 6)
        if kind == "deconv":
            w = 0.1 * jax.random.normal(k1, (cin, cout, 3, 3, 3), jnp.float32)
        else:
            w = 0.1 * jax.random.normal(k1, (cout, cin, 3, 3, 3), jnp.float32)
        if kind == "conv_plain":
            scale = jnp.ones((cout,), jnp.float32)
            shift = jnp.zeros((cout,), jnp.float32)
        else:
            gamma = 1.0 + 0.1 * jax.random.normal(k2, (cout,), jnp.float32)
            beta = 0.1 * jax.random.normal(k3, (cout,), jnp.float32)
            mean = 0.1 * jax.random.normal(k4, (cout,), jnp.float32)
            var = jnp.abs(jax.random.normal(k5, (cout,), jnp.float32)) + 0.5
            scale = gamma / jnp.sqrt(var + 1e-5)   # folded inference BN
            shift = beta - mean * scale
        params[name] = dict(w=w, scale=scale, shift=shift,
                            stride=stride, kind=kind)
    return params


# ----------------------------------------------------------------------------
# VolumeConv forward (U-Net over the cost volume)
# ----------------------------------------------------------------------------
def volume_conv_forward(params, x_ncdhw):
    # NCDHW (PyTorch) -> internal (C, B, D, H, W)
    x = jnp.transpose(x_ncdhw, (1, 0, 2, 3, 4))

    def conv(name, inp, relu=True, residual=None):
        p = params[name]
        return conv3d_block(inp, p["w"], p["scale"], p["shift"],
                            p["stride"], relu, residual)

    def deconv(name, inp, residual=None):
        p = params[name]
        return deconv3d_block(inp, p["w"], p["scale"], p["shift"], residual)

    conv0_1 = conv("conv0_1", x)
    conv1_0 = conv("conv1_0", x)
    conv2_0 = conv("conv2_0", conv1_0)
    conv3_0 = conv("conv3_0", conv2_0)
    conv1_1 = conv("conv1_1", conv1_0)
    conv2_1 = conv("conv2_1", conv2_0)
    conv3_1 = conv("conv3_1", conv3_0)
    # Skip adds fused into the producer deconv kernels (added after its ReLU):
    #   conv4_0p = conv4_0 + conv2_1, etc., which is exactly the input the
    #   next layer consumes in the reference forward.
    conv4_0p = deconv("conv4_0", conv3_1, residual=conv2_1)
    conv5_0p = deconv("conv5_0", conv4_0p, residual=conv1_1)
    conv6_0p = deconv("conv6_0", conv5_0p, residual=conv0_1)
    conv6_2 = conv("conv6_2", conv6_0p, relu=False)

    # internal (C, B, D, H, W) -> NCDHW
    return jnp.transpose(conv6_2, (1, 0, 2, 3, 4))


if __name__ == "__main__":
    key = jax.random.PRNGKey(0)
    k_param, k_x = jax.random.split(key)

    in_channels, base_channels = 4, 2
    B, D, H, W = 2, 8, 8, 8            # spatial divisible by 8 (3 stride-2 downs)

    params = init_params(k_param, in_channels, base_channels)
    x = jax.random.normal(k_x, (B, in_channels, D, H, W), jnp.float32)

    fwd = jax.jit(lambda xx: volume_conv_forward(params, xx))
    out = jax.block_until_ready(fwd(x))

    assert out.shape == (B, 1, D, H, W), out.shape
    assert jnp.all(jnp.isfinite(out))
    print("KERNEL_OK")
</pallas_src>

<mosaic_0001>
module attributes {stable_mosaic.version = 11 : i64} {
  func.func @_conv_mm_kernel(%arg0: i32, %arg1: memref<4x112xbf16, #tpu.memory_space<vmem>>, %arg2: memref<112x128xbf16, #tpu.memory_space<vmem>>, %arg3: memref<4x1xf32, #tpu.memory_space<vmem>>, %arg4: memref<4x128xf32, #tpu.memory_space<vmem>>) attributes {dimension_semantics = [#tpu.dimension_semantics<parallel>], iteration_bounds = array<i64: 1>, scalar_prefetch = 0 : i64, scratch_operands = 0 : i64, tpu.core_type = #tpu.core_type<tc>, window_params = [{pipeline_mode = #tpu.pipeline_mode<synchronous>, transform_indices = @transform_0, window_bounds = array<i64: 4, 112>}, {transform_indices = @transform_1, window_bounds = array<i64: 112, 128>}, {pipeline_mode = #tpu.pipeline_mode<synchronous>, transform_indices = @transform_2, window_bounds = array<i64: 4, 1>}, {transform_indices = @transform_3, window_bounds = array<i64: 4, 128>}]} {
    %c0 = arith.constant 0 : index
    %c0_0 = arith.constant 0 : index
    %0 = vector.load %arg1[%c0, %c0_0] : memref<4x112xbf16, #tpu.memory_space<vmem>>, vector<4x112xbf16>
    %c0_1 = arith.constant 0 : index
    %c0_2 = arith.constant 0 : index
    %1 = vector.load %arg2[%c0_1, %c0_2] : memref<112x128xbf16, #tpu.memory_space<vmem>>, vector<112x128xbf16>
    %cst = arith.constant dense<0.000000e+00> : vector<4x128xf32>
    %2 = tpu.matmul %0, %1, %cst {dimension_numbers = #tpu.dot_dimension_numbers<[1], [0], [0], [1], [0, 0, 1, 1], [], []>} : vector<4x112xbf16>, vector<112x128xbf16>, vector<4x128xf32> -> vector<4x128xf32>
    %c0_3 = arith.constant 0 : index
    %c0_4 = arith.constant 0 : index
    %3 = vector.load %arg3[%c0_3, %c0_4] : memref<4x1xf32, #tpu.memory_space<vmem>>, vector<4x1xf32>
    %4 = vector.broadcast %3 : vector<4x1xf32> to vector<4x128xf32>
    %5 = arith.addf %2, %4 : vector<4x128xf32>
    %cst_5 = arith.constant 0.000000e+00 : f32
    %6 = vector.broadcast %cst_5 : f32 to vector<4x128xf32>
    %7 = arith.maximumf %5, %6 : vector<4x128xf32>
    %c0_6 = arith.constant 0 : index
    %c0_7 = arith.constant 0 : index
    %8 = vector.load %arg4[%c0_6, %c0_7] : memref<4x128xf32, #tpu.memory_space<vmem>>, vector<4x128xf32>
    tpu.vector_store %arg4[%c0_6, %c0_7], %7 {strides = array<i32>} : memref<4x128xf32, #tpu.memory_space<vmem>>, vector<4x128xf32>,
    return
  }
  func.func @transform_0(%arg0: i32) -> (i32, i32) {
    %c0_i32 = arith.constant 0 : i32
    %c0_i32_0 = arith.constant 0 : i32
    %c0_i32_1 = arith.constant 0 : i32
    return %c0_i32, %c0_i32_0 : i32, i32
  }
  func.func @transform_1(%arg0: i32) -> (i32, i32) {
    %c0_i32 = arith.constant 0 : i32
    %c0_i32_0 = arith.constant 0 : i32
    return %c0_i32, %arg0 : i32, i32
  }
  func.func @transform_2(%arg0: i32) -> (i32, i32) {
    %c0_i32 = arith.constant 0 : i32
    %c0_i32_0 = arith.constant 0 : i32
    %c0_i32_1 = arith.constant 0 : i32
    return %c0_i32, %c0_i32_0 : i32, i32
  }
  func.func @transform_3(%arg0: i32) -> (i32, i32) {
    %c0_i32 = arith.constant 0 : i32
    %c0_i32_0 = arith.constant 0 : i32
    return %c0_i32, %arg0 : i32, i32
  }
}

module attributes {stable_mosaic.version = 11 : i64} {
  func.func @_conv_mm_kernel(%arg0: i32, %arg1: memref<8x112xbf16, #tpu.memory_space<vmem>>, %arg2: memref<112x16xbf16, #tpu.memory_space<vmem>>, %arg3: memref<8x1xf32, #tpu.memory_space<vmem>>, %arg4: memref<8x16xf32, #tpu.memory_space<vmem>>) attributes {dimension_semantics = [#tpu.dimension_semantics<parallel>], iteration_bounds = array<i64: 1>, scalar_prefetch = 0 : i64, scratch_operands = 0 : i64, tpu.core_type = #tpu.core_type<tc>, window_params = [{pipeline_mode = #tpu.pipeline_mode<synchronous>, transform_indices = @transform_0, window_bounds = array<i64: 8, 112>}, {transform_indices = @transform_1, window_bounds = array<i64: 112, 16>}, {pipeline_mode = #tpu.pipeline_mode<synchronous>, transform_indices = @transform_2, window_bounds = array<i64: 8, 1>}, {transform_indices = @transform_3, window_bounds = array<i64: 8, 16>}]} {
    %c0 = arith.constant 0 : index
    %c0_0 = arith.constant 0 : index
    %0 = vector.load %arg1[%c0, %c0_0] : memref<8x112xbf16, #tpu.memory_space<vmem>>, vector<8x112xbf16>
    %c0_1 = arith.constant 0 : index
    %c0_2 = arith.constant 0 : index
    %1 = vector.load %arg2[%c0_1, %c0_2] : memref<112x16xbf16, #tpu.memory_space<vmem>>, vector<112x16xbf16>
    %cst = arith.constant dense<0.000000e+00> : vector<8x16xf32>
    %2 = tpu.matmul %0, %1, %cst {dimension_numbers = #tpu.dot_dimension_numbers<[1], [0], [0], [1], [0, 0, 1, 1], [], []>} : vector<8x112xbf16>, vector<112x16xbf16>, vector<8x16xf32> -> vector<8x16xf32>
    %c0_3 = arith.constant 0 : index
    %c0_4 = arith.constant 0 : index
    %3 = vector.load %arg3[%c0_3, %c0_4] : memref<8x1xf32, #tpu.memory_space<vmem>>, vector<8x1xf32>
    %4 = vector.broadcast %3 : vector<8x1xf32> to vector<8x16xf32>
    %5 = arith.addf %2, %4 : vector<8x16xf32>
    %cst_5 = arith.constant 0.000000e+00 : f32
    %6 = vector.broadcast %cst_5 : f32 to vector<8x16xf32>
    %7 = arith.maximumf %5, %6 : vector<8x16xf32>
    %c0_6 = arith.constant 0 : index
    %c0_7 = arith.constant 0 : index
    %8 = vector.load %arg4[%c0_6, %c0_7] : memref<8x16xf32, #tpu.memory_space<vmem>>, vector<8x16xf32>
    tpu.vector_store %arg4[%c0_6, %c0_7], %7 {strides = array<i32>} : memref<8x16xf32, #tpu.memory_space<vmem>>, vector<8x16xf32>,
    return
  }
  func.func @transform_0(%arg0: i32) -> (i32, i32) {
    %c0_i32 = arith.constant 0 : i32
    %c0_i32_0 = arith.constant 0 : i32
    %c0_i32_1 = arith.constant 0 : i32
    return %c0_i32, %c0_i32_0 : i32, i32
  }
  func.func @transform_1(%arg0: i32) -> (i32, i32) {
    %c0_i32 = arith.constant 0 : i32
    %c0_i32_0 = arith.constant 0 : i32
    return %c0_i32, %arg0 : i32, i32
  }
  func.func @transform_2(%arg0: i32) -> (i32, i32) {
    %c0_i32 = arith.constant 0 : i32
    %c0_i32_0 = arith.constant 0 : i32
    %c0_i32_1 = arith.constant 0 : i32
    return %c0_i32, %c0_i32_0 : i32, i32
  }
  func.func @transform_3(%arg0: i32) -> (i32, i32) {
    %c0_i32 = arith.constant 0 : i32
    %c0_i32_0 = arith.constant 0 : i32
    return %c0_i32, %arg0 : i32, i32
  }
}

module attributes {stable_mosaic.version = 11 : i64} {
  func.func @_conv_mm_kernel(%arg0: i32, %arg1: memref<16x216xbf16, #tpu.memory_space<vmem>>, %arg2: memref<216x2xbf16, #tpu.memory_space<vmem>>, %arg3: memref<16x1xf32, #tpu.memory_space<vmem>>, %arg4: memref<16x2xf32, #tpu.memory_space<vmem>>) attributes {dimension_semantics = [#tpu.dimension_semantics<parallel>], iteration_bounds = array<i64: 1>, scalar_prefetch = 0 : i64, scratch_operands = 0 : i64, tpu.core_type = #tpu.core_type<tc>, window_params = [{pipeline_mode = #tpu.pipeline_mode<synchronous>, transform_indices = @transform_0, window_bounds = array<i64: 16, 216>}, {transform_indices = @transform_1, window_bounds = array<i64: 216, 2>}, {pipeline_mode = #tpu.pipeline_mode<synchronous>, transform_indices = @transform_2, window_bounds = array<i64: 16, 1>}, {transform_indices = @transform_3, window_bounds = array<i64: 16, 2>}]} {
    %c0 = arith.constant 0 : index
    %c0_0 = arith.constant 0 : index
    %0 = vector.load %arg1[%c0, %c0_0] : memref<16x216xbf16, #tpu.memory_space<vmem>>, vector<16x216xbf16>
    %c0_1 = arith.constant 0 : index
    %c0_2 = arith.constant 0 : index
    %1 = vector.load %arg2[%c0_1, %c0_2] : memref<216x2xbf16, #tpu.memory_space<vmem>>, vector<216x2xbf16>
    %cst = arith.constant dense<0.000000e+00> : vector<16x2xf32>
    %2 = tpu.matmul %0, %1, %cst {dimension_numbers = #tpu.dot_dimension_numbers<[1], [0], [0], [1], [0, 0, 1, 1], [], []>} : vector<16x216xbf16>, vector<216x2xbf16>, vector<16x2xf32> -> vector<16x2xf32>
    %c0_3 = arith.constant 0 : index
    %c0_4 = arith.constant 0 : index
    %3 = vector.load %arg3[%c0_3, %c0_4] : memref<16x1xf32, #tpu.memory_space<vmem>>, vector<16x1xf32>
    %4 = vector.broadcast %3 : vector<16x1xf32> to vector<16x2xf32>
    %5 = arith.addf %2, %4 : vector<16x2xf32>
    %cst_5 = arith.constant 0.000000e+00 : f32
    %6 = vector.broadcast %cst_5 : f32 to vector<16x2xf32>
    %7 = arith.maximumf %5, %6 : vector<16x2xf32>
    %c0_6 = arith.constant 0 : index
    %c0_7 = arith.constant 0 : index
    %8 = vector.load %arg4[%c0_6, %c0_7] : memref<16x2xf32, #tpu.memory_space<vmem>>, vector<16x2xf32>
    tpu.vector_store %arg4[%c0_6, %c0_7], %7 {strides = array<i32>} : memref<16x2xf32, #tpu.memory_space<vmem>>, vector<16x2xf32>,
    return
  }
  func.func @transform_0(%arg0: i32) -> (i32, i32) {
    %c0_i32 = arith.constant 0 : i32
    %c0_i32_0 = arith.constant 0 : i32
    %c0_i32_1 = arith.constant 0 : i32
    return %c0_i32, %c0_i32_0 : i32, i32
  }
  func.func @transform_1(%arg0: i32) -> (i32, i32) {
    %c0_i32 = arith.constant 0 : i32
    %c0_i32_0 = arith.constant 0 : i32
    return %c0_i32, %arg0 : i32, i32
  }
  func.func @transform_2(%arg0: i32) -> (i32, i32) {
    %c0_i32 = arith.constant 0 : i32
    %c0_i32_0 = arith.constant 0 : i32
    %c0_i32_1 = arith.constant 0 : i32
    return %c0_i32, %c0_i32_0 : i32, i32
  }
  func.func @transform_3(%arg0: i32) -> (i32, i32) {
    %c0_i32 = arith.constant 0 : i32
    %c0_i32_0 = arith.constant 0 : i32
    return %c0_i32, %arg0 : i32, i32
  }
}

module attributes {stable_mosaic.version = 11 : i64} {
  func.func @_conv_mm_kernel(%arg0: i32, %arg1: memref<16x432xbf16, #tpu.memory_space<vmem>>, %arg2: memref<432x2xbf16, #tpu.memory_space<vmem>>, %arg3: memref<16x1xf32, #tpu.memory_space<vmem>>, %arg4: memref<16x2xf32, #tpu.memory_space<vmem>>) attributes {dimension_semantics = [#tpu.dimension_semantics<parallel>], iteration_bounds = array<i64: 1>, scalar_prefetch = 0 : i64, scratch_operands = 0 : i64, tpu.core_type = #tpu.core_type<tc>, window_params = [{pipeline_mode = #tpu.pipeline_mode<synchronous>, transform_indices = @transform_0, window_bounds = array<i64: 16, 432>}, {transform_indices = @transform_1, window_bounds = array<i64: 432, 2>}, {pipeline_mode = #tpu.pipeline_mode<synchronous>, transform_indices = @transform_2, window_bounds = array<i64: 16, 1>}, {transform_indices = @transform_3, window_bounds = array<i64: 16, 2>}]} {
    %c0 = arith.constant 0 : index
    %c0_0 = arith.constant 0 : index
    %0 = vector.load %arg1[%c0, %c0_0] : memref<16x432xbf16, #tpu.memory_space<vmem>>, vector<16x432xbf16>
    %c0_1 = arith.constant 0 : index
    %c0_2 = arith.constant 0 : index
    %1 = vector.load %arg2[%c0_1, %c0_2] : memref<432x2xbf16, #tpu.memory_space<vmem>>, vector<432x2xbf16>
    %cst = arith.constant dense<0.000000e+00> : vector<16x2xf32>
    %2 = tpu.matmul %0, %1, %cst {dimension_numbers = #tpu.dot_dimension_numbers<[1], [0], [0], [1], [0, 0, 1, 1], [], []>} : vector<16x432xbf16>, vector<432x2xbf16>, vector<16x2xf32> -> vector<16x2xf32>
    %c0_3 = arith.constant 0 : index
    %c0_4 = arith.constant 0 : index
    %3 = vector.load %arg3[%c0_3, %c0_4] : memref<16x1xf32, #tpu.memory_space<vmem>>, vector<16x1xf32>
    %4 = vector.broadcast %3 : vector<16x1xf32> to vector<16x2xf32>
    %5 = arith.addf %2, %4 : vector<16x2xf32>
    %cst_5 = arith.constant 0.000000e+00 : f32
    %6 = vector.broadcast %cst_5 : f32 to vector<16x2xf32>
    %7 = arith.maximumf %5, %6 : vector<16x2xf32>
    %c0_6 = arith.constant 0 : index
    %c0_7 = arith.constant 0 : index
    %8 = vector.load %arg4[%c0_6, %c0_7] : memref<16x2xf32, #tpu.memory_space<vmem>>, vector<16x2xf32>
    tpu.vector_store %arg4[%c0_6, %c0_7], %7 {strides = array<i32>} : memref<16x2xf32, #tpu.memory_space<vmem>>, vector<16x2xf32>,
    return
  }
  func.func @transform_0(%arg0: i32) -> (i32, i32) {
    %c0_i32 = arith.constant 0 : i32
    %c0_i32_0 = arith.constant 0 : i32
    %c0_i32_1 = arith.constant 0 : i32
    return %c0_i32, %c0_i32_0 : i32, i32
  }
  func.func @transform_1(%arg0: i32) -> (i32, i32) {
    %c0_i32 = arith.constant 0 : i32
    %c0_i32_0 = arith.constant 0 : i32
    return %c0_i32, %arg0 : i32, i32
  }
  func.func @transform_2(%arg0: i32) -> (i32, i32) {
    %c0_i32 = arith.constant 0 : i32
    %c0_i32_0 = arith.constant 0 : i32
    %c0_i32_1 = arith.constant 0 : i32
    return %c0_i32, %c0_i32_0 : i32, i32
  }
  func.func @transform_3(%arg0: i32) -> (i32, i32) {
    %c0_i32 = arith.constant 0 : i32
    %c0_i32_0 = arith.constant 0 : i32
    return %c0_i32, %arg0 : i32, i32
  }
}

module attributes {stable_mosaic.version = 11 : i64} {
  func.func @_conv_mm_res_kernel(%arg0: i32, %arg1: memref<8x432xbf16, #tpu.memory_space<vmem>>, %arg2: memref<432x16xbf16, #tpu.memory_space<vmem>>, %arg3: memref<8x1xf32, #tpu.memory_space<vmem>>, %arg4: memref<8x16xf32, #tpu.memory_space<vmem>>, %arg5: memref<8x16xf32, #tpu.memory_space<vmem>>) attributes {dimension_semantics = [#tpu.dimension_semantics<parallel>], iteration_bounds = array<i64: 1>, scalar_prefetch = 0 : i64, scratch_operands = 0 : i64, tpu.core_type = #tpu.core_type<tc>, window_params = [{pipeline_mode = #tpu.pipeline_mode<synchronous>, transform_indices = @transform_0, window_bounds = array<i64: 8, 432>}, {transform_indices = @transform_1, window_bounds = array<i64: 432, 16>}, {pipeline_mode = #tpu.pipeline_mode<synchronous>, transform_indices = @transform_2, window_bounds = array<i64: 8, 1>}, {transform_indices = @transform_3, window_bounds = array<i64: 8, 16>}, {transform_indices = @transform_4, window_bounds = array<i64: 8, 16>}]} {
    %c0 = arith.constant 0 : index
    %c0_0 = arith.constant 0 : index
    %0 = vector.load %arg1[%c0, %c0_0] : memref<8x432xbf16, #tpu.memory_space<vmem>>, vector<8x432xbf16>
    %c0_1 = arith.constant 0 : index
    %c0_2 = arith.constant 0 : index
    %1 = vector.load %arg2[%c0_1, %c0_2] : memref<432x16xbf16, #tpu.memory_space<vmem>>, vector<432x16xbf16>
    %cst = arith.constant dense<0.000000e+00> : vector<8x16xf32>
    %2 = tpu.matmul %0, %1, %cst {dimension_numbers = #tpu.dot_dimension_numbers<[1], [0], [0], [1], [0, 0, 1, 1], [], []>} : vector<8x432xbf16>, vector<432x16xbf16>, vector<8x16xf32> -> vector<8x16xf32>
    %c0_3 = arith.constant 0 : index
    %c0_4 = arith.constant 0 : index
    %3 = vector.load %arg3[%c0_3, %c0_4] : memref<8x1xf32, #tpu.memory_space<vmem>>, vector<8x1xf32>
    %4 = vector.broadcast %3 : vector<8x1xf32> to vector<8x16xf32>
    %5 = arith.addf %2, %4 : vector<8x16xf32>
    %cst_5 = arith.constant 0.000000e+00 : f32
    %6 = vector.broadcast %cst_5 : f32 to vector<8x16xf32>
    %7 = arith.maximumf %5, %6 : vector<8x16xf32>
    %c0_6 = arith.constant 0 : index
    %c0_7 = arith.constant 0 : index
    %8 = vector.load %arg4[%c0_6, %c0_7] : memref<8x16xf32, #tpu.memory_space<vmem>>, vector<8x16xf32>
    %9 = arith.addf %7, %8 : vector<8x16xf32>
    %c0_8 = arith.constant 0 : index
    %c0_9 = arith.constant 0 : index
    %10 = vector.load %arg5[%c0_8, %c0_9] : memref<8x16xf32, #tpu.memory_space<vmem>>, vector<8x16xf32>
    tpu.vector_store %arg5[%c0_8, %c0_9], %9 {strides = array<i32>} : memref<8x16xf32, #tpu.memory_space<vmem>>, vector<8x16xf32>,
    return
  }
  func.func @transform_0(%arg0: i32) -> (i32, i32) {
    %c0_i32 = arith.constant 0 : i32
    %c0_i32_0 = arith.constant 0 : i32
    %c0_i32_1 = arith.constant 0 : i32
    return %c0_i32, %c0_i32_0 : i32, i32
  }
  func.func @transform_1(%arg0: i32) -> (i32, i32) {
    %c0_i32 = arith.constant 0 : i32
    %c0_i32_0 = arith.constant 0 : i32
    return %c0_i32, %arg0 : i32, i32
  }
  func.func @transform_2(%arg0: i32) -> (i32, i32) {
    %c0_i32 = arith.constant 0 : i32
    %c0_i32_0 = arith.constant 0 : i32
    %c0_i32_1 = arith.constant 0 : i32
    return %c0_i32, %c0_i32_0 : i32, i32
  }
  func.func @transform_3(%arg0: i32) -> (i32, i32) {
    %c0_i32 = arith.constant 0 : i32
    %c0_i32_0 = arith.constant 0 : i32
    return %c0_i32, %arg0 : i32, i32
  }
  func.func @transform_4(%arg0: i32) -> (i32, i32) {
    %c0_i32 = arith.constant 0 : i32
    %c0_i32_0 = arith.constant 0 : i32
    return %c0_i32, %arg0 : i32, i32
  }
}

module attributes {stable_mosaic.version = 11 : i64} {
  func.func @_conv_mm_kernel(%arg0: i32, %arg1: memref<8x216xbf16, #tpu.memory_space<vmem>>, %arg2: memref<216x16xbf16, #tpu.memory_space<vmem>>, %arg3: memref<8x1xf32, #tpu.memory_space<vmem>>, %arg4: memref<8x16xf32, #tpu.memory_space<vmem>>) attributes {dimension_semantics = [#tpu.dimension_semantics<parallel>], iteration_bounds = array<i64: 1>, scalar_prefetch = 0 : i64, scratch_operands = 0 : i64, tpu.core_type = #tpu.core_type<tc>, window_params = [{pipeline_mode = #tpu.pipeline_mode<synchronous>, transform_indices = @transform_0, window_bounds = array<i64: 8, 216>}, {transform_indices = @transform_1, window_bounds = array<i64: 216, 16>}, {pipeline_mode = #tpu.pipeline_mode<synchronous>, transform_indices = @transform_2, window_bounds = array<i64: 8, 1>}, {transform_indices = @transform_3, window_bounds = array<i64: 8, 16>}]} {
    %c0 = arith.constant 0 : index
    %c0_0 = arith.constant 0 : index
    %0 = vector.load %arg1[%c0, %c0_0] : memref<8x216xbf16, #tpu.memory_space<vmem>>, vector<8x216xbf16>
    %c0_1 = arith.constant 0 : index
    %c0_2 = arith.constant 0 : index
    %1 = vector.load %arg2[%c0_1, %c0_2] : memref<216x16xbf16, #tpu.memory_space<vmem>>, vector<216x16xbf16>
    %cst = arith.constant dense<0.000000e+00> : vector<8x16xf32>
    %2 = tpu.matmul %0, %1, %cst {dimension_numbers = #tpu.dot_dimension_numbers<[1], [0], [0], [1], [0, 0, 1, 1], [], []>} : vector<8x216xbf16>, vector<216x16xbf16>, vector<8x16xf32> -> vector<8x16xf32>
    %c0_3 = arith.constant 0 : index
    %c0_4 = arith.constant 0 : index
    %3 = vector.load %arg3[%c0_3, %c0_4] : memref<8x1xf32, #tpu.memory_space<vmem>>, vector<8x1xf32>
    %4 = vector.broadcast %3 : vector<8x1xf32> to vector<8x16xf32>
    %5 = arith.addf %2, %4 : vector<8x16xf32>
    %cst_5 = arith.constant 0.000000e+00 : f32
    %6 = vector.broadcast %cst_5 : f32 to vector<8x16xf32>
    %7 = arith.maximumf %5, %6 : vector<8x16xf32>
    %c0_6 = arith.constant 0 : index
    %c0_7 = arith.constant 0 : index
    %8 = vector.load %arg4[%c0_6, %c0_7] : memref<8x16xf32, #tpu.memory_space<vmem>>, vector<8x16xf32>
    tpu.vector_store %arg4[%c0_6, %c0_7], %7 {strides = array<i32>} : memref<8x16xf32, #tpu.memory_space<vmem>>, vector<8x16xf32>,
    return
  }
  func.func @transform_0(%arg0: i32) -> (i32, i32) {
    %c0_i32 = arith.constant 0 : i32
    %c0_i32_0 = arith.constant 0 : i32
    %c0_i32_1 = arith.constant 0 : i32
    return %c0_i32, %c0_i32_0 : i32, i32
  }
  func.func @transform_1(%arg0: i32) -> (i32, i32) {
    %c0_i32 = arith.constant 0 : i32
    %c0_i32_0 = arith.constant 0 : i32
    return %c0_i32, %arg0 : i32, i32
  }
  func.func @transform_2(%arg0: i32) -> (i32, i32) {
    %c0_i32 = arith.constant 0 : i32
    %c0_i32_0 = arith.constant 0 : i32
    %c0_i32_1 = arith.constant 0 : i32
    return %c0_i32, %c0_i32_0 : i32, i32
  }
  func.func @transform_3(%arg0: i32) -> (i32, i32) {
    %c0_i32 = arith.constant 0 : i32
    %c0_i32_0 = arith.constant 0 : i32
    return %c0_i32, %arg0 : i32, i32
  }
}

module attributes {stable_mosaic.version = 11 : i64} {
  func.func @_conv_mm_res_kernel(%arg0: i32, %arg1: memref<4x216xbf16, #tpu.memory_space<vmem>>, %arg2: memref<216x128xbf16, #tpu.memory_space<vmem>>, %arg3: memref<4x1xf32, #tpu.memory_space<vmem>>, %arg4: memref<4x128xf32, #tpu.memory_space<vmem>>, %arg5: memref<4x128xf32, #tpu.memory_space<vmem>>) attributes {dimension_semantics = [#tpu.dimension_semantics<parallel>], iteration_bounds = array<i64: 1>, scalar_prefetch = 0 : i64, scratch_operands = 0 : i64, tpu.core_type = #tpu.core_type<tc>, window_params = [{pipeline_mode = #tpu.pipeline_mode<synchronous>, transform_indices = @transform_0, window_bounds = array<i64: 4, 216>}, {transform_indices = @transform_1, window_bounds = array<i64: 216, 128>}, {pipeline_mode = #tpu.pipeline_mode<synchronous>, transform_indices = @transform_2, window_bounds = array<i64: 4, 1>}, {transform_indices = @transform_3, window_bounds = array<i64: 4, 128>}, {transform_indices = @transform_4, window_bounds = array<i64: 4, 128>}]} {
    %c0 = arith.constant 0 : index
    %c0_0 = arith.constant 0 : index
    %0 = vector.load %arg1[%c0, %c0_0] : memref<4x216xbf16, #tpu.memory_space<vmem>>, vector<4x216xbf16>
    %c0_1 = arith.constant 0 : index
    %c0_2 = arith.constant 0 : index
    %1 = vector.load %arg2[%c0_1, %c0_2] : memref<216x128xbf16, #tpu.memory_space<vmem>>, vector<216x128xbf16>
    %cst = arith.constant dense<0.000000e+00> : vector<4x128xf32>
    %2 = tpu.matmul %0, %1, %cst {dimension_numbers = #tpu.dot_dimension_numbers<[1], [0], [0], [1], [0, 0, 1, 1], [], []>} : vector<4x216xbf16>, vector<216x128xbf16>, vector<4x128xf32> -> vector<4x128xf32>
    %c0_3 = arith.constant 0 : index
    %c0_4 = arith.constant 0 : index
    %3 = vector.load %arg3[%c0_3, %c0_4] : memref<4x1xf32, #tpu.memory_space<vmem>>, vector<4x1xf32>
    %4 = vector.broadcast %3 : vector<4x1xf32> to vector<4x128xf32>
    %5 = arith.addf %2, %4 : vector<4x128xf32>
    %cst_5 = arith.constant 0.000000e+00 : f32
    %6 = vector.broadcast %cst_5 : f32 to vector<4x128xf32>
    %7 = arith.maximumf %5, %6 : vector<4x128xf32>
    %c0_6 = arith.constant 0 : index
    %c0_7 = arith.constant 0 : index
    %8 = vector.load %arg4[%c0_6, %c0_7] : memref<4x128xf32, #tpu.memory_space<vmem>>, vector<4x128xf32>
    %9 = arith.addf %7, %8 : vector<4x128xf32>
    %c0_8 = arith.constant 0 : index
    %c0_9 = arith.constant 0 : index
    %10 = vector.load %arg5[%c0_8, %c0_9] : memref<4x128xf32, #tpu.memory_space<vmem>>, vector<4x128xf32>
    tpu.vector_store %arg5[%c0_8, %c0_9], %9 {strides = array<i32>} : memref<4x128xf32, #tpu.memory_space<vmem>>, vector<4x128xf32>,
    return
  }
  func.func @transform_0(%arg0: i32) -> (i32, i32) {
    %c0_i32 = arith.constant 0 : i32
    %c0_i32_0 = arith.constant 0 : i32
    %c0_i32_1 = arith.constant 0 : i32
    return %c0_i32, %c0_i32_0 : i32, i32
  }
  func.func @transform_1(%arg0: i32) -> (i32, i32) {
    %c0_i32 = arith.constant 0 : i32
    %c0_i32_0 = arith.constant 0 : i32
    return %c0_i32, %arg0 : i32, i32
  }
  func.func @transform_2(%arg0: i32) -> (i32, i32) {
    %c0_i32 = arith.constant 0 : i32
    %c0_i32_0 = arith.constant 0 : i32
    %c0_i32_1 = arith.constant 0 : i32
    return %c0_i32, %c0_i32_0 : i32, i32
  }
  func.func @transform_3(%arg0: i32) -> (i32, i32) {
    %c0_i32 = arith.constant 0 : i32
    %c0_i32_0 = arith.constant 0 : i32
    return %c0_i32, %arg0 : i32, i32
  }
  func.func @transform_4(%arg0: i32) -> (i32, i32) {
    %c0_i32 = arith.constant 0 : i32
    %c0_i32_0 = arith.constant 0 : i32
    return %c0_i32, %arg0 : i32, i32
  }
}

module attributes {stable_mosaic.version = 11 : i64} {
  func.func @_conv_mm_kernel(%arg0: i32, %arg1: memref<2x112xbf16, #tpu.memory_space<vmem>>, %arg2: memref<112x512xbf16, #tpu.memory_space<vmem>>, %arg3: memref<2x1xf32, #tpu.memory_space<vmem>>, %arg4: memref<2x512xf32, #tpu.memory_space<vmem>>) attributes {dimension_semantics = [#tpu.dimension_semantics<parallel>], iteration_bounds = array<i64: 2>, scalar_prefetch = 0 : i64, scratch_operands = 0 : i64, tpu.core_type = #tpu.core_type<tc>, window_params = [{pipeline_mode = #tpu.pipeline_mode<synchronous>, transform_indices = @transform_0, window_bounds = array<i64: 2, 112>}, {transform_indices = @transform_1, window_bounds = array<i64: 112, 512>}, {pipeline_mode = #tpu.pipeline_mode<synchronous>, transform_indices = @transform_2, window_bounds = array<i64: 2, 1>}, {transform_indices = @transform_3, window_bounds = array<i64: 2, 512>}]} {
    %c0 = arith.constant 0 : index
    %c0_0 = arith.constant 0 : index
    %0 = vector.load %arg1[%c0, %c0_0] : memref<2x112xbf16, #tpu.memory_space<vmem>>, vector<2x112xbf16>
    %c0_1 = arith.constant 0 : index
    %c0_2 = arith.constant 0 : index
    %1 = vector.load %arg2[%c0_1, %c0_2] : memref<112x512xbf16, #tpu.memory_space<vmem>>, vector<112x512xbf16>
    %cst = arith.constant dense<0.000000e+00> : vector<2x512xf32>
    %2 = tpu.matmul %0, %1, %cst {dimension_numbers = #tpu.dot_dimension_numbers<[1], [0], [0], [1], [0, 0, 1, 1], [], []>} : vector<2x112xbf16>, vector<112x512xbf16>, vector<2x512xf32> -> vector<2x512xf32>
    %c0_3 = arith.constant 0 : index
    %c0_4 = arith.constant 0 : index
    %3 = vector.load %arg3[%c0_3, %c0_4] : memref<2x1xf32, #tpu.memory_space<vmem>>, vector<2x1xf32>
    %4 = vector.broadcast %3 : vector<2x1xf32> to vector<2x512xf32>
    %5 = arith.addf %2, %4 : vector<2x512xf32>
    %cst_5 = arith.constant 0.000000e+00 : f32
    %6 = vector.broadcast %cst_5 : f32 to vector<2x512xf32>
    %7 = arith.maximumf %5, %6 : vector<2x512xf32>
    %c0_6 = arith.constant 0 : index
    %c0_7 = arith.constant 0 : index
    %8 = vector.load %arg4[%c0_6, %c0_7] : memref<2x512xf32, #tpu.memory_space<vmem>>, vector<2x512xf32>
    tpu.vector_store %arg4[%c0_6, %c0_7], %7 {strides = array<i32>} : memref<2x512xf32, #tpu.memory_space<vmem>>, vector<2x512xf32>,
    return
  }
  func.func @transform_0(%arg0: i32) -> (i32, i32) {
    %c0_i32 = arith.constant 0 : i32
    %c0_i32_0 = arith.constant 0 : i32
    %c0_i32_1 = arith.constant 0 : i32
    return %c0_i32, %c0_i32_0 : i32, i32
  }
  func.func @transform_1(%arg0: i32) -> (i32, i32) {
    %c0_i32 = arith.constant 0 : i32
    %c0_i32_0 = arith.constant 0 : i32
    return %c0_i32, %arg0 : i32, i32
  }
  func.func @transform_2(%arg0: i32) -> (i32, i32) {
    %c0_i32 = arith.constant 0 : i32
    %c0_i32_0 = arith.constant 0 : i32
    %c0_i32_1 = arith.constant 0 : i32
    return %c0_i32, %c0_i32_0 : i32, i32
  }
  func.func @transform_3(%arg0: i32) -> (i32, i32) {
    %c0_i32 = arith.constant 0 : i32
    %c0_i32_0 = arith.constant 0 : i32
    return %c0_i32, %arg0 : i32, i32
  }
}

module attributes {stable_mosaic.version = 11 : i64} {
  func.func @_conv_mm_res_kernel(%arg0: i32, %arg1: memref<2x112xbf16, #tpu.memory_space<vmem>>, %arg2: memref<112x512xbf16, #tpu.memory_space<vmem>>, %arg3: memref<2x1xf32, #tpu.memory_space<vmem>>, %arg4: memref<2x512xf32, #tpu.memory_space<vmem>>, %arg5: memref<2x512xf32, #tpu.memory_space<vmem>>) attributes {dimension_semantics = [#tpu.dimension_semantics<parallel>], iteration_bounds = array<i64: 2>, scalar_prefetch = 0 : i64, scratch_operands = 0 : i64, tpu.core_type = #tpu.core_type<tc>, window_params = [{pipeline_mode = #tpu.pipeline_mode<synchronous>, transform_indices = @transform_0, window_bounds = array<i64: 2, 112>}, {transform_indices = @transform_1, window_bounds = array<i64: 112, 512>}, {pipeline_mode = #tpu.pipeline_mode<synchronous>, transform_indices = @transform_2, window_bounds = array<i64: 2, 1>}, {transform_indices = @transform_3, window_bounds = array<i64: 2, 512>}, {transform_indices = @transform_4, window_bounds = array<i64: 2, 512>}]} {
    %c0 = arith.constant 0 : index
    %c0_0 = arith.constant 0 : index
    %0 = vector.load %arg1[%c0, %c0_0] : memref<2x112xbf16, #tpu.memory_space<vmem>>, vector<2x112xbf16>
    %c0_1 = arith.constant 0 : index
    %c0_2 = arith.constant 0 : index
    %1 = vector.load %arg2[%c0_1, %c0_2] : memref<112x512xbf16, #tpu.memory_space<vmem>>, vector<112x512xbf16>
    %cst = arith.constant dense<0.000000e+00> : vector<2x512xf32>
    %2 = tpu.matmul %0, %1, %cst {dimension_numbers = #tpu.dot_dimension_numbers<[1], [0], [0], [1], [0, 0, 1, 1], [], []>} : vector<2x112xbf16>, vector<112x512xbf16>, vector<2x512xf32> -> vector<2x512xf32>
    %c0_3 = arith.constant 0 : index
    %c0_4 = arith.constant 0 : index
    %3 = vector.load %arg3[%c0_3, %c0_4] : memref<2x1xf32, #tpu.memory_space<vmem>>, vector<2x1xf32>
    %4 = vector.broadcast %3 : vector<2x1xf32> to vector<2x512xf32>
    %5 = arith.addf %2, %4 : vector<2x512xf32>
    %cst_5 = arith.constant 0.000000e+00 : f32
    %6 = vector.broadcast %cst_5 : f32 to vector<2x512xf32>
    %7 = arith.maximumf %5, %6 : vector<2x512xf32>
    %c0_6 = arith.constant 0 : index
    %c0_7 = arith.constant 0 : index
    %8 = vector.load %arg4[%c0_6, %c0_7] : memref<2x512xf32, #tpu.memory_space<vmem>>, vector<2x512xf32>
    %9 = arith.addf %7, %8 : vector<2x512xf32>
    %c0_8 = arith.constant 0 : index
    %c0_9 = arith.constant 0 : index
    %10 = vector.load %arg5[%c0_8, %c0_9] : memref<2x512xf32, #tpu.memory_space<vmem>>, vector<2x512xf32>
    tpu.vector_store %arg5[%c0_8, %c0_9], %9 {strides = array<i32>} : memref<2x512xf32, #tpu.memory_space<vmem>>, vector<2x512xf32>,
    return
  }
  func.func @transform_0(%arg0: i32) -> (i32, i32) {
    %c0_i32 = arith.constant 0 : i32
    %c0_i32_0 = arith.constant 0 : i32
    %c0_i32_1 = arith.constant 0 : i32
    return %c0_i32, %c0_i32_0 : i32, i32
  }
  func.func @transform_1(%arg0: i32) -> (i32, i32) {
    %c0_i32 = arith.constant 0 : i32
    %c0_i32_0 = arith.constant 0 : i32
    return %c0_i32, %arg0 : i32, i32
  }
  func.func @transform_2(%arg0: i32) -> (i32, i32) {
    %c0_i32 = arith.constant 0 : i32
    %c0_i32_0 = arith.constant 0 : i32
    %c0_i32_1 = arith.constant 0 : i32
    return %c0_i32, %c0_i32_0 : i32, i32
  }
  func.func @transform_3(%arg0: i32) -> (i32, i32) {
    %c0_i32 = arith.constant 0 : i32
    %c0_i32_0 = arith.constant 0 : i32
    return %c0_i32, %arg0 : i32, i32
  }
  func.func @transform_4(%arg0: i32) -> (i32, i32) {
    %c0_i32 = arith.constant 0 : i32
    %c0_i32_0 = arith.constant 0 : i32
    return %c0_i32, %arg0 : i32, i32
  }
}

module attributes {stable_mosaic.version = 11 : i64} {
  func.func @_conv_mm_kernel(%arg0: i32, %arg1: memref<1x56xbf16, #tpu.memory_space<vmem>>, %arg2: memref<56x512xbf16, #tpu.memory_space<vmem>>, %arg3: memref<1x1xf32, #tpu.memory_space<vmem>>, %arg4: memref<1x512xf32, #tpu.memory_space<vmem>>) attributes {dimension_semantics = [#tpu.dimension_semantics<parallel>], iteration_bounds = array<i64: 2>, scalar_prefetch = 0 : i64, scratch_operands = 0 : i64, tpu.core_type = #tpu.core_type<tc>, window_params = [{pipeline_mode = #tpu.pipeline_mode<synchronous>, transform_indices = @transform_0, window_bounds = array<i64: 1, 56>}, {transform_indices = @transform_1, window_bounds = array<i64: 56, 512>}, {pipeline_mode = #tpu.pipeline_mode<synchronous>, transform_indices = @transform_2, window_bounds = array<i64: 1, 1>}, {transform_indices = @transform_3, window_bounds = array<i64: 1, 512>}]} {
    %c0 = arith.constant 0 : index
    %c0_0 = arith.constant 0 : index
    %0 = vector.load %arg1[%c0, %c0_0] : memref<1x56xbf16, #tpu.memory_space<vmem>>, vector<1x56xbf16>
    %c0_1 = arith.constant 0 : index
    %c0_2 = arith.constant 0 : index
    %1 = vector.load %arg2[%c0_1, %c0_2] : memref<56x512xbf16, #tpu.memory_space<vmem>>, vector<56x512xbf16>
    %cst = arith.constant dense<0.000000e+00> : vector<1x512xf32>
    %2 = tpu.matmul %0, %1, %cst {dimension_numbers = #tpu.dot_dimension_numbers<[1], [0], [0], [1], [0, 0, 1, 1], [], []>} : vector<1x56xbf16>, vector<56x512xbf16>, vector<1x512xf32> -> vector<1x512xf32>
    %c0_3 = arith.constant 0 : index
    %c0_4 = arith.constant 0 : index
    %3 = vector.load %arg3[%c0_3, %c0_4] : memref<1x1xf32, #tpu.memory_space<vmem>>, vector<1x1xf32>
    %4 = vector.broadcast %3 : vector<1x1xf32> to vector<1x512xf32>
    %5 = arith.addf %2, %4 : vector<1x512xf32>
    %c0_5 = arith.constant 0 : index
    %c0_6 = arith.constant 0 : index
    %6 = vector.load %arg4[%c0_5, %c0_6] : memref<1x512xf32, #tpu.memory_space<vmem>>, vector<1x512xf32>
    tpu.vector_store %arg4[%c0_5, %c0_6], %5 {strides = array<i32>} : memref<1x512xf32, #tpu.memory_space<vmem>>, vector<1x512xf32>,
    return
  }
  func.func @transform_0(%arg0: i32) -> (i32, i32) {
    %c0_i32 = arith.constant 0 : i32
    %c0_i32_0 = arith.constant 0 : i32
    %c0_i32_1 = arith.constant 0 : i32
    return %c0_i32, %c0_i32_0 : i32, i32
  }
  func.func @transform_1(%arg0: i32) -> (i32, i32) {
    %c0_i32 = arith.constant 0 : i32
    %c0_i32_0 = arith.constant 0 : i32
    return %c0_i32, %arg0 : i32, i32
  }
  func.func @transform_2(%arg0: i32) -> (i32, i32) {
    %c0_i32 = arith.constant 0 : i32
    %c0_i32_0 = arith.constant 0 : i32
    %c0_i32_1 = arith.constant 0 : i32
    return %c0_i32, %c0_i32_0 : i32, i32
  }
  func.func @transform_3(%arg0: i32) -> (i32, i32) {
    %c0_i32 = arith.constant 0 : i32
    %c0_i32_0 = arith.constant 0 : i32
    return %c0_i32, %arg0 : i32, i32
  }
}

</mosaic_0001>

<llo_original>
// kernel: _lambda_.12
$region0: #{_lambda_.12}
  #allocation0 [shape = 'u32[]', space=smem, size = 0x4, offset = 0x4, fixed_abs, tag = 'smem constant byte address 0x4 - core index']
  #allocation1 [shape = 'u32[144,128]{1,0:T(1,128)}', space=vmem, size = 0x12000, scoped, tag = 'internal scratch']
  %s0 = inlined_call_operand.vmem [shape: bf16[4,112], index: 0, kind: input, shape index: {}]
  %s1 = inlined_call_operand.vmem [shape: bf16[112,128], index: 1, kind: input, shape index: {}]
  %s2 = inlined_call_operand.vmem [shape: f32[4,1], index: 2, kind: input, shape index: {}]
  %s3 = inlined_call_operand.vmem [shape: f32[4,128], index: 3, kind: output, shape index: {}]
  %s4 = sld [smem:[#allocation0]]
  $region22: #{_lambda_.12} parent=0
    _
  %s6 = ssub.s32 1, %s4
  %s7 = scalar_select 0, %s6, %s4
  // Predicated region
  $region2: #{_lambda_.12} parent=0 // pred_check
    _
  $region3: #{_lambda_.12} parent=0 // pred_check_branch
    %9 = sbr.rel (0) target = $region5
  $region4: #{_lambda_.12} parent=0 // pred_region
    _
  $region5: #{_lambda_.12} parent=0 // pred_fallthru
    _
  // Predicated region
  $region6: #{_lambda_.12} parent=0 // pred_check
    _
  $region7: #{_lambda_.12} parent=0 // pred_check_branch
    %11 = sbr.rel (0) target = $region9
  $region8: #{_lambda_.12} parent=0 // pred_region
    _
  $region9: #{_lambda_.12} parent=0 // pred_fallthru
    _
  // Predicated region
  $region10: #{_lambda_.12} parent=0 // pred_check
    _
  $region11: #{_lambda_.12} parent=0 // pred_check_branch
    %13 = sbr.rel (0) target = $region13
  $region12: #{_lambda_.12} parent=0 // pred_region
    _
  $region13: #{_lambda_.12} parent=0 // pred_fallthru
    _
  %v15 = vld [vmem:[%s0] sm:$0x3]
  %v16 = vld [vmem:[%s1] sm:$0xf]
  %v17 = vld [vmem:[%s1 + $0x4] sm:$0xf]
  %v18 = vld [vmem:[%s1 + $0x8] sm:$0xf]
  %v19 = vld [vmem:[%s1 + $0xc] sm:$0xf]
  %v20 = vld [vmem:[%s1 + $0x10] sm:$0xf]
  %v21 = vld [vmem:[%s1 + $0x14] sm:$0xf]
  %v22 = vld [vmem:[%s1 + $0x18] sm:$0xf]
  %v23 = vld [vmem:[%s1 + $0x1c] sm:$0xf]
  %v24 = vld [vmem:[%s1 + $0x20] sm:$0xf]
  %v25 = vld [vmem:[%s1 + $0x24] sm:$0xf]
  %v26 = vld [vmem:[%s1 + $0x28] sm:$0xf]
  %v27 = vld [vmem:[%s1 + $0x2c] sm:$0xf]
  %v28 = vld [vmem:[%s1 + $0x30] sm:$0xf]
  %v29 = vld [vmem:[%s1 + $0x34] sm:$0xf]
  %v30 = vld [vmem:[%s2] sm:$0xf]
  %32 = vset.pattern.permute.xlu0 0
  %33 = vperm.xlu0 %32, %v30
  %v34 = vpop.permute.xlu0 %33
  %v50 = vunpack.c.l.b16 %v16
  %v51 = vunpack.c.l.b16 %v17
  %v52 = vunpack.c.l.b16 %v18
  %v53 = vunpack.c.l.b16 %v19
  %v54 = vunpack.c.l.b16 %v20
  %v55 = vunpack.c.l.b16 %v21
  %v56 = vunpack.c.l.b16 %v22
  %v57 = vunpack.c.l.b16 %v23
  %v58 = vunpack.c.l.b16 %v24
  %v59 = vunpack.c.l.b16 %v25
  %v60 = vunpack.c.l.b16 %v26
  %v61 = vunpack.c.l.b16 %v27
  %v62 = vunpack.c.l.b16 %v28
  %v63 = vunpack.c.l.b16 %v29
  %v64 = vpack.c.b16 %v51, %v50
  %v65 = vpack.c.b16 %v53, %v52
  %v66 = vpack.c.b16 %v55, %v54
  %v67 = vpack.c.b16 %v57, %v56
  %v68 = vpack.c.b16 %v59, %v58
  %v69 = vpack.c.b16 %v61, %v60
  %v70 = vpack.c.b16 %v63, %v62
  %vm78 = vcmask 916480
  %v80 = vsel %vm78, %v15, 0
  %82 = vmatprep.subr.bf16.mxu0 0
  %83 = vmatpush1.bf16.msra.mxu0 %v64
  %84 = vmatprep.subr.bf16.mxu0 0
  %85 = vmatpush1.bf16.msra.mxu0 %v65
  %86 = vmatprep.subr.bf16.mxu0 0
  %87 = vmatpush1.bf16.msra.mxu0 %v66
  %88 = vmatprep.subr.bf16.mxu0 0
  %89 = vmatpush1.bf16.msra.mxu0 %v67
  %90 = vmatprep.subr.bf16.mxu0 0
  %91 = vmatpush1.bf16.msra.mxu0 %v68
  %92 = vmatprep.subr.bf16.mxu0 0
  %93 = vmatpush1.bf16.msra.mxu0 %v69
  %94 = vmatprep.subr.bf16.mxu0 0
  %95 = vmatpush1.bf16.msra.mxu0 %v70
  %96 = vmatprep.subr.bf16.mxu0 0
  %97 = vmatpush1.bf16.msra.mxu0 0
  %98 = vmatprep.subr.bf16.mxu0 0
  %99 = vmatpush1.bf16.msra.mxu0 0
  %100 = vmatprep.subr.bf16.mxu0 0
  %101 = vmatpush1.bf16.msra.mxu0 0
  %102 = vmatprep.subr.bf16.mxu0 0
  %103 = vmatpush1.bf16.msra.mxu0 0
  %104 = vmatprep.subr.bf16.mxu0 0
  %105 = vmatpush1.bf16.msra.mxu0 0
  %106 = vmatprep.subr.bf16.mxu0 0
  %107 = vmatpush1.bf16.msra.mxu0 0
  %108 = vmatprep.subr.bf16.mxu0 0
  %109 = vmatpush1.bf16.msra.mxu0 0
  %110 = vmatprep.subr.bf16.mxu0 0
  %111 = vmatpush1.bf16.msra.mxu0 0
  %112 = vmatprep.subr.bf16.mxu0 0
  %113 = vmatpush1.bf16.msra.mxu0 0
  %114 = vmatprep.mubr.bf16.mxu0 0
  %115 = vmatmul.mubr.bf16.gmra.mrb[0].mxu0 %v80
  %v116 = vpop.f32.mrb[0].mxu0
  %v117 = vadd.f32 %v34, %v116
  %v118 = vpop.f32.mrb[0].mxu0
  %v119 = vpop.f32.mrb[0].mxu0
  %v120 = vpop.f32.mrb[0].mxu0
  %121 = vdwg.mxu0
  %v122 = vmax.f32 %v117, 0.0
  %123 = vst [vmem:[%s3] sm:$0xf] %v122
  // Predicated region
  $region14: #{_lambda_.12} parent=0 // pred_check
    _
  $region15: #{_lambda_.12} parent=0 // pred_check_branch
    %125 = sbr.rel (0) target = $region17
  $region16: #{_lambda_.12} parent=0 // pred_region
    _
  $region17: #{_lambda_.12} parent=0 // pred_fallthru
    _
  // Predicated region
  $region18: #{_lambda_.12} parent=0 // pred_check
    _
  $region19: #{_lambda_.12} parent=0 // pred_check_branch
    %127 = sbr.rel (0) target = $region21
  $region20: #{_lambda_.12} parent=0 // pred_region
    _
  $region21: #{_lambda_.12} parent=0 // pred_fallthru
    _

// kernel: _lambda_.13
$region0: #{_lambda_.13}
  #allocation0 [shape = 'u32[]', space=smem, size = 0x4, offset = 0x4, fixed_abs, tag = 'smem constant byte address 0x4 - core index']
  #allocation1 [shape = 'u32[144,128]{1,0:T(1,128)}', space=vmem, size = 0x12000, scoped, tag = 'internal scratch']
  %s0 = inlined_call_operand.vmem [shape: bf16[8,112], index: 0, kind: input, shape index: {}]
  %s1 = inlined_call_operand.vmem [shape: bf16[112,16], index: 1, kind: input, shape index: {}]
  %s2 = inlined_call_operand.vmem [shape: f32[8,1], index: 2, kind: input, shape index: {}]
  %s3 = inlined_call_operand.vmem [shape: f32[8,16], index: 3, kind: output, shape index: {}]
  %s4 = sld [smem:[#allocation0]]
  $region22: #{_lambda_.13} parent=0
    _
  %s6 = ssub.s32 1, %s4
  %s7 = scalar_select 0, %s6, %s4
  // Predicated region
  $region2: #{_lambda_.13} parent=0 // pred_check
    _
  $region3: #{_lambda_.13} parent=0 // pred_check_branch
    %9 = sbr.rel (0) target = $region5
  $region4: #{_lambda_.13} parent=0 // pred_region
    _
  $region5: #{_lambda_.13} parent=0 // pred_fallthru
    _
  // Predicated region
  $region6: #{_lambda_.13} parent=0 // pred_check
    _
  $region7: #{_lambda_.13} parent=0 // pred_check_branch
    %11 = sbr.rel (0) target = $region9
  $region8: #{_lambda_.13} parent=0 // pred_region
    _
  $region9: #{_lambda_.13} parent=0 // pred_fallthru
    _
  // Predicated region
  $region10: #{_lambda_.13} parent=0 // pred_check
    _
  $region11: #{_lambda_.13} parent=0 // pred_check_branch
    %13 = sbr.rel (0) target = $region13
  $region12: #{_lambda_.13} parent=0 // pred_region
    _
  $region13: #{_lambda_.13} parent=0 // pred_fallthru
    _
  %v15 = vld [vmem:[%s0] sm:$0xf]
  %v16 = vld [vmem:[%s1] sm:$0xf]
  %v17 = vld [vmem:[%s1 + $0x4] sm:$0xf]
  %v18 = vld [vmem:[%s1 + $0x8] sm:$0xf]
  %v19 = vld [vmem:[%s1 + $0xc] sm:$0xf]
  %v20 = vld [vmem:[%s1 + $0x10] sm:$0xf]
  %v21 = vld [vmem:[%s1 + $0x14] sm:$0xf]
  %v22 = vld [vmem:[%s1 + $0x18] sm:$0xf]
  %v23 = vld [vmem:[%s1 + $0x1c] sm:$0xf]
  %v24 = vld [vmem:[%s1 + $0x20] sm:$0xf]
  %v25 = vld [vmem:[%s1 + $0x24] sm:$0xf]
  %v26 = vld [vmem:[%s1 + $0x28] sm:$0xf]
  %v27 = vld [vmem:[%s1 + $0x2c] sm:$0xf]
  %v28 = vld [vmem:[%s1 + $0x30] sm:$0xf]
  %v29 = vld [vmem:[%s1 + $0x34] sm:$0xf]
  %v30 = vld [vmem:[%s2] sm:$0xff]
  %32 = vset.pattern.permute.xlu0 0
  %33 = vperm.xlu0 %32, %v30
  %v34 = vpop.permute.xlu0 %33
  %v50 = vunpack.c.l.b16 %v16
  %v51 = vunpack.c.l.b16 %v17
  %v52 = vunpack.c.l.b16 %v18
  %v53 = vunpack.c.l.b16 %v19
  %v54 = vunpack.c.l.b16 %v20
  %v55 = vunpack.c.l.b16 %v21
  %v56 = vunpack.c.l.b16 %v22
  %v57 = vunpack.c.l.b16 %v23
  %v58 = vunpack.c.l.b16 %v24
  %v59 = vunpack.c.l.b16 %v25
  %v60 = vunpack.c.l.b16 %v26
  %v61 = vunpack.c.l.b16 %v27
  %v62 = vunpack.c.l.b16 %v28
  %v63 = vunpack.c.l.b16 %v29
  %v64 = vpack.c.b16 %v51, %v50
  %v65 = vpack.c.b16 %v53, %v52
  %v66 = vpack.c.b16 %v55, %v54
  %v67 = vpack.c.b16 %v57, %v56
  %v68 = vpack.c.b16 %v59, %v58
  %v69 = vpack.c.b16 %v61, %v60
  %v70 = vpack.c.b16 %v63, %v62
  %vm78 = vcmask 916480
  %v80 = vsel %vm78, %v15, 0
  %82 = vmatprep.subr.bf16.mxu0 0
  %83 = vmatpush1.bf16.msra.mxu0 %v64
  %84 = vmatprep.subr.bf16.mxu0 0
  %85 = vmatpush1.bf16.msra.mxu0 %v65
  %86 = vmatprep.subr.bf16.mxu0 0
  %87 = vmatpush1.bf16.msra.mxu0 %v66
  %88 = vmatprep.subr.bf16.mxu0 0
  %89 = vmatpush1.bf16.msra.mxu0 %v67
  %90 = vmatprep.subr.bf16.mxu0 0
  %91 = vmatpush1.bf16.msra.mxu0 %v68
  %92 = vmatprep.subr.bf16.mxu0 0
  %93 = vmatpush1.bf16.msra.mxu0 %v69
  %94 = vmatprep.subr.bf16.mxu0 0
  %95 = vmatpush1.bf16.msra.mxu0 %v70
  %96 = vmatprep.subr.bf16.mxu0 0
  %97 = vmatpush1.bf16.msra.mxu0 0
  %98 = vmatprep.subr.bf16.mxu0 0
  %99 = vmatpush1.bf16.msra.mxu0 0
  %100 = vmatprep.subr.bf16.mxu0 0
  %101 = vmatpush1.bf16.msra.mxu0 0
  %102 = vmatprep.subr.bf16.mxu0 0
  %103 = vmatpush1.bf16.msra.mxu0 0
  %104 = vmatprep.subr.bf16.mxu0 0
  %105 = vmatpush1.bf16.msra.mxu0 0
  %106 = vmatprep.subr.bf16.mxu0 0
  %107 = vmatpush1.bf16.msra.mxu0 0
  %108 = vmatprep.subr.bf16.mxu0 0
  %109 = vmatpush1.bf16.msra.mxu0 0
  %110 = vmatprep.subr.bf16.mxu0 0
  %111 = vmatpush1.bf16.msra.mxu0 0
  %112 = vmatprep.subr.bf16.mxu0 0
  %113 = vmatpush1.bf16.msra.mxu0 0
  %114 = vmatprep.mubr.bf16.mxu0 0
  %115 = vmatmul.mubr.bf16.gmra.mrb[0].mxu0 %v80
  %v116 = vpop.f32.mrb[0].mxu0
  %v117 = vadd.f32 %v34, %v116
  %v118 = vpop.f32.mrb[0].mxu0
  %v119 = vpop.f32.mrb[0].mxu0
  %v120 = vpop.f32.mrb[0].mxu0
  %121 = vdwg.mxu0
  %v122 = vmax.f32 %v117, 0.0
  %vm123 = vcmask 130048
  %124 = vst.msk [vmem:[%s3] sm:$0xff] %vm123, %v122
  // Predicated region
  $region14: #{_lambda_.13} parent=0 // pred_check
    _
  $region15: #{_lambda_.13} parent=0 // pred_check_branch
    %126 = sbr.rel (0) target = $region17
  $region16: #{_lambda_.13} parent=0 // pred_region
    _
  $region17: #{_lambda_.13} parent=0 // pred_fallthru
    _
  // Predicated region
  $region18: #{_lambda_.13} parent=0 // pred_check
    _
  $region19: #{_lambda_.13} parent=0 // pred_check_branch
    %128 = sbr.rel (0) target = $region21
  $region20: #{_lambda_.13} parent=0 // pred_region
    _
  $region21: #{_lambda_.13} parent=0 // pred_fallthru
    _

// kernel: _lambda_.14
$region0: #{_lambda_.14}
  #allocation0 [shape = 'u32[]', space=smem, size = 0x4, offset = 0x4, fixed_abs, tag = 'smem constant byte address 0x4 - core index']
  #allocation1 [shape = 'u32[144,128]{1,0:T(1,128)}', space=vmem, size = 0x12000, scoped, tag = 'internal scratch']
  %s0 = inlined_call_operand.vmem [shape: bf16[16,216], index: 0, kind: input, shape index: {}]
  %s1 = inlined_call_operand.vmem [shape: bf16[216,2], index: 1, kind: input, shape index: {}]
  %s2 = inlined_call_operand.vmem [shape: f32[16,1], index: 2, kind: input, shape index: {}]
  %s3 = inlined_call_operand.vmem [shape: f32[16,2], index: 3, kind: output, shape index: {}]
  %s4 = sld [smem:[#allocation0]]
  $region22: #{_lambda_.14} parent=0
    _
  %s6 = ssub.s32 1, %s4
  %s7 = scalar_select 0, %s6, %s4
  // Predicated region
  $region2: #{_lambda_.14} parent=0 // pred_check
    _
  $region3: #{_lambda_.14} parent=0 // pred_check_branch
    %9 = sbr.rel (0) target = $region5
  $region4: #{_lambda_.14} parent=0 // pred_region
    _
  $region5: #{_lambda_.14} parent=0 // pred_fallthru
    _
  // Predicated region
  $region6: #{_lambda_.14} parent=0 // pred_check
    _
  $region7: #{_lambda_.14} parent=0 // pred_check_branch
    %11 = sbr.rel (0) target = $region9
  $region8: #{_lambda_.14} parent=0 // pred_region
    _
  $region9: #{_lambda_.14} parent=0 // pred_fallthru
    _
  // Predicated region
  $region10: #{_lambda_.14} parent=0 // pred_check
    _
  $region11: #{_lambda_.14} parent=0 // pred_check_branch
    %13 = sbr.rel (0) target = $region13
  $region12: #{_lambda_.14} parent=0 // pred_region
    _
  $region13: #{_lambda_.14} parent=0 // pred_fallthru
    _
  %v15 = vld [vmem:[%s0] sm:$0xff]
  %v16 = vld [vmem:[%s0 + $0x8] sm:$0xff]
  %v17 = vld [vmem:[%s1] sm:$0xf]
  %v18 = vld [vmem:[%s1 + $0x4] sm:$0xf]
  %v19 = vld [vmem:[%s1 + $0x8] sm:$0xf]
  %v20 = vld [vmem:[%s1 + $0xc] sm:$0xf]
  %v21 = vld [vmem:[%s1 + $0x10] sm:$0xf]
  %v22 = vld [vmem:[%s1 + $0x14] sm:$0xf]
  %v23 = vld [vmem:[%s1 + $0x18] sm:$0xf]
  %v24 = vld [vmem:[%s1 + $0x1c] sm:$0xf]
  %v25 = vld [vmem:[%s1 + $0x20] sm:$0xf]
  %v26 = vld [vmem:[%s1 + $0x24] sm:$0xf]
  %v27 = vld [vmem:[%s1 + $0x28] sm:$0xf]
  %v28 = vld [vmem:[%s1 + $0x2c] sm:$0xf]
  %v29 = vld [vmem:[%s1 + $0x30] sm:$0xf]
  %v30 = vld [vmem:[%s1 + $0x34] sm:$0xf]
  %v31 = vld [vmem:[%s1 + $0x38] sm:$0xf]
  %v32 = vld [vmem:[%s1 + $0x3c] sm:$0xf]
  %v33 = vld [vmem:[%s1 + $0x40] sm:$0xf]
  %v34 = vld [vmem:[%s1 + $0x44] sm:$0xf]
  %v35 = vld [vmem:[%s1 + $0x48] sm:$0xf]
  %v36 = vld [vmem:[%s1 + $0x4c] sm:$0xf]
  %v37 = vld [vmem:[%s1 + $0x50] sm:$0xf]
  %v38 = vld [vmem:[%s1 + $0x54] sm:$0xf]
  %v39 = vld [vmem:[%s1 + $0x58] sm:$0xf]
  %v40 = vld [vmem:[%s1 + $0x5c] sm:$0xf]
  %v41 = vld [vmem:[%s1 + $0x60] sm:$0xf]
  %v42 = vld [vmem:[%s1 + $0x64] sm:$0xf]
  %v43 = vld [vmem:[%s1 + $0x68] sm:$0xf]
  %v44 = vld [vmem:[%s2] sm:$0xff]
  %v45 = vld [vmem:[%s2 + $0x8] sm:$0xff]
  %47 = vset.pattern.permute.xlu0 0
  %48 = vperm.xlu0 %47, %v44
  %v49 = vpop.permute.xlu0 %48
  %52 = vset.pattern.permute.xlu0 0
  %53 = vperm.xlu0 %52, %v45
  %v54 = vpop.permute.xlu0 %53
  %v58 = vunpack.c.l.b16 %v15
  %v59 = vunpack.c.h.b16 %v15
  %v60 = vunpack.c.l.b16 %v16
  %v61 = vunpack.c.h.b16 %v16
  %v62 = vpack.c.b16 %v60, %v58
  %v63 = vpack.c.b16 %v61, %v59
  %v92 = vunpack.c.l.b16 %v17
  %v93 = vunpack.c.l.b16 %v18
  %v94 = vunpack.c.l.b16 %v19
  %v95 = vunpack.c.l.b16 %v20
  %v96 = vunpack.c.l.b16 %v21
  %v97 = vunpack.c.l.b16 %v22
  %v98 = vunpack.c.l.b16 %v23
  %v99 = vunpack.c.l.b16 %v24
  %v100 = vunpack.c.l.b16 %v25
  %v101 = vunpack.c.l.b16 %v26
  %v102 = vunpack.c.l.b16 %v27
  %v103 = vunpack.c.l.b16 %v28
  %v104 = vunpack.c.l.b16 %v29
  %v105 = vunpack.c.l.b16 %v30
  %v106 = vunpack.c.l.b16 %v31
  %v107 = vunpack.c.l.b16 %v32
  %v108 = vunpack.c.l.b16 %v33
  %v109 = vunpack.c.l.b16 %v34
  %v110 = vunpack.c.l.b16 %v35
  %v111 = vunpack.c.l.b16 %v36
  %v112 = vunpack.c.l.b16 %v37
  %v113 = vunpack.c.l.b16 %v38
  %v114 = vunpack.c.l.b16 %v39
  %v115 = vunpack.c.l.b16 %v40
  %v116 = vunpack.c.l.b16 %v41
  %v117 = vunpack.c.l.b16 %v42
  %v118 = vunpack.c.l.b16 %v43
  %v119 = vpack.c.b16 %v93, %v92
  %v120 = vpack.c.b16 %v95, %v94
  %v121 = vpack.c.b16 %v97, %v96
  %v122 = vpack.c.b16 %v99, %v98
  %v123 = vpack.c.b16 %v101, %v100
  %v124 = vpack.c.b16 %v103, %v102
  %v125 = vpack.c.b16 %v105, %v104
  %v126 = vpack.c.b16 %v107, %v106
  %v127 = vpack.c.b16 %v109, %v108
  %v128 = vpack.c.b16 %v111, %v110
  %v129 = vpack.c.b16 %v113, %v112
  %v130 = vpack.c.b16 %v115, %v114
  %v131 = vpack.c.b16 %v117, %v116
  %v132 = vpack.c.b16 %v118, %v118
  %vm146 = vcmask 719872
  %v148 = vsel %vm146, %v63, 0
  %vm150 = vcmask 1043456
  %v152 = vsel %vm150, %v132, 0
  %154 = vmatprep.subr.bf16.mxu0 0
  %155 = vmatpush1.bf16.msra.mxu0 %v119
  %156 = vmatprep.subr.bf16.mxu0 0
  %157 = vmatpush1.bf16.msra.mxu0 %v120
  %158 = vmatprep.subr.bf16.mxu0 0
  %159 = vmatpush1.bf16.msra.mxu0 %v121
  %160 = vmatprep.subr.bf16.mxu0 0
  %161 = vmatpush1.bf16.msra.mxu0 %v122
  %162 = vmatprep.subr.bf16.mxu0 0
  %163 = vmatpush1.bf16.msra.mxu0 %v123
  %164 = vmatprep.subr.bf16.mxu0 0
  %165 = vmatpush1.bf16.msra.mxu0 %v124
  %166 = vmatprep.subr.bf16.mxu0 0
  %167 = vmatpush1.bf16.msra.mxu0 %v125
  %168 = vmatprep.subr.bf16.mxu0 0
  %169 = vmatpush1.bf16.msra.mxu0 %v126
  %170 = vmatprep.subr.bf16.mxu0 0
  %171 = vmatpush1.bf16.msra.mxu0 %v127
  %172 = vmatprep.subr.bf16.mxu0 0
  %173 = vmatpush1.bf16.msra.mxu0 %v128
  %174 = vmatprep.subr.bf16.mxu0 0
  %175 = vmatpush1.bf16.msra.mxu0 %v129
  %176 = vmatprep.subr.bf16.mxu0 0
  %177 = vmatpush1.bf16.msra.mxu0 %v130
  %178 = vmatprep.subr.bf16.mxu0 0
  %179 = vmatpush1.bf16.msra.mxu0 %v131
  %180 = vmatprep.subr.bf16.mxu0 0
  %181 = vmatpush1.bf16.msra.mxu0 %v152
  %182 = vmatprep.subr.bf16.mxu0 0
  %183 = vmatpush1.bf16.msra.mxu0 0
  %184 = vmatprep.subr.bf16.mxu0 0
  %185 = vmatpush1.bf16.msra.mxu0 0
  %186 = vmatprep.mubr.bf16.mxu0 %v148
  %187 = vmatmul.mubr.bf16.gmra.mrb[0].mxu0 %v62
  %v188 = vpop.f32.mrb[0].mxu0
  %v189 = vadd.f32 %v49, %v188
  %v190 = vpop.f32.mrb[0].mxu0
  %v191 = vpop.f32.mrb[0].mxu0
  %v192 = vadd.f32 %v54, %v191
  %v193 = vpop.f32.mrb[0].mxu0
  %194 = vdwg.mxu0
  %v195 = vmax.f32 %v189, 0.0
  %v196 = vmax.f32 %v192, 0.0
  %vm197 = vcmask 15360
  %198 = vst.msk [vmem:[%s3] sm:$0xff] %vm197, %v195
  %199 = vst.msk [vmem:[%s3 + $0x8] sm:$0xff] %vm197, %v196
  // Predicated region
  $region14: #{_lambda_.14} parent=0 // pred_check
    _
  $region15: #{_lambda_.14} parent=0 // pred_check_branch
    %201 = sbr.rel (0) target = $region17
  $region16: #{_lambda_.14} parent=0 // pred_region
    _
  $region17: #{_lambda_.14} parent=0 // pred_fallthru
    _
  // Predicated region
  $region18: #{_lambda_.14} parent=0 // pred_check
    _
  $region19: #{_lambda_.14} parent=0 // pred_check_branch
    %203 = sbr.rel (0) target = $region21
  $region20: #{_lambda_.14} parent=0 // pred_region
    _
  $region21: #{_lambda_.14} parent=0 // pred_fallthru
    _

// kernel: _lambda_.17
$region0: #{_lambda_.17}
  #allocation0 [shape = 'u32[]', space=smem, size = 0x4, offset = 0x4, fixed_abs, tag = 'smem constant byte address 0x4 - core index']
  #allocation1 [shape = 'u32[144,128]{1,0:T(1,128)}', space=vmem, size = 0x12000, scoped, tag = 'internal scratch']
  %s0 = inlined_call_operand.vmem [shape: bf16[16,432], index: 0, kind: input, shape index: {}]
  %s1 = inlined_call_operand.vmem [shape: bf16[432,2], index: 1, kind: input, shape index: {}]
  %s2 = inlined_call_operand.vmem [shape: f32[16,1], index: 2, kind: input, shape index: {}]
  %s3 = inlined_call_operand.vmem [shape: f32[16,2], index: 3, kind: output, shape index: {}]
  %s4 = sld [smem:[#allocation0]]
  $region22: #{_lambda_.17} parent=0
    _
  %s6 = ssub.s32 1, %s4
  %s7 = scalar_select 0, %s6, %s4
  // Predicated region
  $region2: #{_lambda_.17} parent=0 // pred_check
    _
  $region3: #{_lambda_.17} parent=0 // pred_check_branch
    %9 = sbr.rel (0) target = $region5
  $region4: #{_lambda_.17} parent=0 // pred_region
    _
  $region5: #{_lambda_.17} parent=0 // pred_fallthru
    _
  // Predicated region
  $region6: #{_lambda_.17} parent=0 // pred_check
    _
  $region7: #{_lambda_.17} parent=0 // pred_check_branch
    %11 = sbr.rel (0) target = $region9
  $region8: #{_lambda_.17} parent=0 // pred_region
    _
  $region9: #{_lambda_.17} parent=0 // pred_fallthru
    _
  // Predicated region
  $region10: #{_lambda_.17} parent=0 // pred_check
    _
  $region11: #{_lambda_.17} parent=0 // pred_check_branch
    %13 = sbr.rel (0) target = $region13
  $region12: #{_lambda_.17} parent=0 // pred_region
    _
  $region13: #{_lambda_.17} parent=0 // pred_fallthru
    _
  %v15 = vld [vmem:[%s0] sm:$0xff]
  %v16 = vld [vmem:[%s0 + $0x8] sm:$0xff]
  %v17 = vld [vmem:[%s0 + $0x10] sm:$0xff]
  %v18 = vld [vmem:[%s0 + $0x18] sm:$0xff]
  %v19 = vld [vmem:[%s1] sm:$0xf]
  %v20 = vld [vmem:[%s1 + $0x4] sm:$0xf]
  %v21 = vld [vmem:[%s1 + $0x8] sm:$0xf]
  %v22 = vld [vmem:[%s1 + $0xc] sm:$0xf]
  %v23 = vld [vmem:[%s1 + $0x10] sm:$0xf]
  %v24 = vld [vmem:[%s1 + $0x14] sm:$0xf]
  %v25 = vld [vmem:[%s1 + $0x18] sm:$0xf]
  %v26 = vld [vmem:[%s1 + $0x1c] sm:$0xf]
  %v27 = vld [vmem:[%s1 + $0x20] sm:$0xf]
  %v28 = vld [vmem:[%s1 + $0x24] sm:$0xf]
  %v29 = vld [vmem:[%s1 + $0x28] sm:$0xf]
  %v30 = vld [vmem:[%s1 + $0x2c] sm:$0xf]
  %v31 = vld [vmem:[%s1 + $0x30] sm:$0xf]
  %v32 = vld [vmem:[%s1 + $0x34] sm:$0xf]
  %v33 = vld [vmem:[%s1 + $0x38] sm:$0xf]
  %v34 = vld [vmem:[%s1 + $0x3c] sm:$0xf]
  %v35 = vld [vmem:[%s1 + $0x40] sm:$0xf]
  %v36 = vld [vmem:[%s1 + $0x44] sm:$0xf]
  %v37 = vld [vmem:[%s1 + $0x48] sm:$0xf]
  %v38 = vld [vmem:[%s1 + $0x4c] sm:$0xf]
  %v39 = vld [vmem:[%s1 + $0x50] sm:$0xf]
  %v40 = vld [vmem:[%s1 + $0x54] sm:$0xf]
  %v41 = vld [vmem:[%s1 + $0x58] sm:$0xf]
  %v42 = vld [vmem:[%s1 + $0x5c] sm:$0xf]
  %v43 = vld [vmem:[%s1 + $0x60] sm:$0xf]
  %v44 = vld [vmem:[%s1 + $0x64] sm:$0xf]
  %v45 = vld [vmem:[%s1 + $0x68] sm:$0xf]
  %v46 = vld [vmem:[%s1 + $0x6c] sm:$0xf]
  %v47 = vld [vmem:[%s1 + $0x70] sm:$0xf]
  %v48 = vld [vmem:[%s1 + $0x74] sm:$0xf]
  %v49 = vld [vmem:[%s1 + $0x78] sm:$0xf]
  %v50 = vld [vmem:[%s1 + $0x7c] sm:$0xf]
  %v51 = vld [vmem:[%s1 + $0x80] sm:$0xf]
  %v52 = vld [vmem:[%s1 + $0x84] sm:$0xf]
  %v53 = vld [vmem:[%s1 + $0x88] sm:$0xf]
  %v54 = vld [vmem:[%s1 + $0x8c] sm:$0xf]
  %v55 = vld [vmem:[%s1 + $0x90] sm:$0xf]
  %v56 = vld [vmem:[%s1 + $0x94] sm:$0xf]
  %v57 = vld [vmem:[%s1 + $0x98] sm:$0xf]
  %v58 = vld [vmem:[%s1 + $0x9c] sm:$0xf]
  %v59 = vld [vmem:[%s1 + $0xa0] sm:$0xf]
  %v60 = vld [vmem:[%s1 + $0xa4] sm:$0xf]
  %v61 = vld [vmem:[%s1 + $0xa8] sm:$0xf]
  %v62 = vld [vmem:[%s1 + $0xac] sm:$0xf]
  %v63 = vld [vmem:[%s1 + $0xb0] sm:$0xf]
  %v64 = vld [vmem:[%s1 + $0xb4] sm:$0xf]
  %v65 = vld [vmem:[%s1 + $0xb8] sm:$0xf]
  %v66 = vld [vmem:[%s1 + $0xbc] sm:$0xf]
  %v67 = vld [vmem:[%s1 + $0xc0] sm:$0xf]
  %v68 = vld [vmem:[%s1 + $0xc4] sm:$0xf]
  %v69 = vld [vmem:[%s1 + $0xc8] sm:$0xf]
  %v70 = vld [vmem:[%s1 + $0xcc] sm:$0xf]
  %v71 = vld [vmem:[%s1 + $0xd0] sm:$0xf]
  %v72 = vld [vmem:[%s1 + $0xd4] sm:$0xf]
  %v73 = vld [vmem:[%s2] sm:$0xff]
  %v74 = vld [vmem:[%s2 + $0x8] sm:$0xff]
  %76 = vset.pattern.permute.xlu0 0
  %77 = vperm.xlu0 %76, %v73
  %v78 = vpop.permute.xlu0 %77
  %81 = vset.pattern.permute.xlu0 0
  %82 = vperm.xlu0 %81, %v74
  %v83 = vpop.permute.xlu0 %82
  %v89 = vunpack.c.l.b16 %v15
  %v90 = vunpack.c.h.b16 %v15
  %v91 = vunpack.c.l.b16 %v16
  %v92 = vunpack.c.h.b16 %v16
  %v93 = vunpack.c.l.b16 %v17
  %v94 = vunpack.c.h.b16 %v17
  %v95 = vunpack.c.l.b16 %v18
  %v96 = vunpack.c.h.b16 %v18
  %v97 = vpack.c.b16 %v93, %v89
  %v98 = vpack.c.b16 %v94, %v90
  %v99 = vpack.c.b16 %v95, %v91
  %v100 = vpack.c.b16 %v96, %v92
  %v158 = vunpack.c.l.b16 %v19
  %v159 = vunpack.c.l.b16 %v20
  %v160 = vunpack.c.l.b16 %v21
  %v161 = vunpack.c.l.b16 %v22
  %v162 = vunpack.c.l.b16 %v23
  %v163 = vunpack.c.l.b16 %v24
  %v164 = vunpack.c.l.b16 %v25
  %v165 = vunpack.c.l.b16 %v26
  %v166 = vunpack.c.l.b16 %v27
  %v167 = vunpack.c.l.b16 %v28
  %v168 = vunpack.c.l.b16 %v29
  %v169 = vunpack.c.l.b16 %v30
  %v170 = vunpack.c.l.b16 %v31
  %v171 = vunpack.c.l.b16 %v32
  %v172 = vunpack.c.l.b16 %v33
  %v173 = vunpack.c.l.b16 %v34
  %v174 = vunpack.c.l.b16 %v35
  %v175 = vunpack.c.l.b16 %v36
  %v176 = vunpack.c.l.b16 %v37
  %v177 = vunpack.c.l.b16 %v38
  %v178 = vunpack.c.l.b16 %v39
  %v179 = vunpack.c.l.b16 %v40
  %v180 = vunpack.c.l.b16 %v41
  %v181 = vunpack.c.l.b16 %v42
  %v182 = vunpack.c.l.b16 %v43
  %v183 = vunpack.c.l.b16 %v44
  %v184 = vunpack.c.l.b16 %v45
  %v185 = vunpack.c.l.b16 %v46
  %v186 = vunpack.c.l.b16 %v47
  %v187 = vunpack.c.l.b16 %v48
  %v188 = vunpack.c.l.b16 %v49
  %v189 = vunpack.c.l.b16 %v50
  %v190 = vunpack.c.l.b16 %v51
  %v191 = vunpack.c.l.b16 %v52
  %v192 = vunpack.c.l.b16 %v53
  %v193 = vunpack.c.l.b16 %v54
  %v194 = vunpack.c.l.b16 %v55
  %v195 = vunpack.c.l.b16 %v56
  %v196 = vunpack.c.l.b16 %v57
  %v197 = vunpack.c.l.b16 %v58
  %v198 = vunpack.c.l.b16 %v59
  %v199 = vunpack.c.l.b16 %v60
  %v200 = vunpack.c.l.b16 %v61
  %v201 = vunpack.c.l.b16 %v62
  %v202 = vunpack.c.l.b16 %v63
  %v203 = vunpack.c.l.b16 %v64
  %v204 = vunpack.c.l.b16 %v65
  %v205 = vunpack.c.l.b16 %v66
  %v206 = vunpack.c.l.b16 %v67
  %v207 = vunpack.c.l.b16 %v68
  %v208 = vunpack.c.l.b16 %v69
  %v209 = vunpack.c.l.b16 %v70
  %v210 = vunpack.c.l.b16 %v71
  %v211 = vunpack.c.l.b16 %v72
  %v212 = vpack.c.b16 %v159, %v158
  %v213 = vpack.c.b16 %v161, %v160
  %v214 = vpack.c.b16 %v163, %v162
  %v215 = vpack.c.b16 %v165, %v164
  %v216 = vpack.c.b16 %v167, %v166
  %v217 = vpack.c.b16 %v169, %v168
  %v218 = vpack.c.b16 %v171, %v170
  %v219 = vpack.c.b16 %v173, %v172
  %v220 = vpack.c.b16 %v175, %v174
  %v221 = vpack.c.b16 %v177, %v176
  %v222 = vpack.c.b16 %v179, %v178
  %v223 = vpack.c.b16 %v181, %v180
  %v224 = vpack.c.b16 %v183, %v182
  %v225 = vpack.c.b16 %v185, %v184
  %v226 = vpack.c.b16 %v187, %v186
  %v227 = vpack.c.b16 %v189, %v188
  %v228 = vpack.c.b16 %v191, %v190
  %v229 = vpack.c.b16 %v193, %v192
  %v230 = vpack.c.b16 %v195, %v194
  %v231 = vpack.c.b16 %v197, %v196
  %v232 = vpack.c.b16 %v199, %v198
  %v233 = vpack.c.b16 %v201, %v200
  %v234 = vpack.c.b16 %v203, %v202
  %v235 = vpack.c.b16 %v205, %v204
  %v236 = vpack.c.b16 %v207, %v206
  %v237 = vpack.c.b16 %v209, %v208
  %v238 = vpack.c.b16 %v211, %v210
  %vm266 = vcmask 392192
  %v268 = vsel %vm266, %v100, 0
  %270 = vmatprep.subr.bf16.mxu0 0
  %271 = vmatpush1.bf16.msra.mxu0 %v212
  %272 = vmatprep.subr.bf16.mxu0 0
  %273 = vmatpush1.bf16.msra.mxu0 %v213
  %274 = vmatprep.subr.bf16.mxu0 0
  %275 = vmatpush1.bf16.msra.mxu0 %v214
  %276 = vmatprep.subr.bf16.mxu0 0
  %277 = vmatpush1.bf16.msra.mxu0 %v215
  %278 = vmatprep.subr.bf16.mxu0 0
  %279 = vmatpush1.bf16.msra.mxu0 %v216
  %280 = vmatprep.subr.bf16.mxu0 0
  %281 = vmatpush1.bf16.msra.mxu0 %v217
  %282 = vmatprep.subr.bf16.mxu0 0
  %283 = vmatpush1.bf16.msra.mxu0 %v218
  %284 = vmatprep.subr.bf16.mxu0 0
  %285 = vmatpush1.bf16.msra.mxu0 %v219
  %286 = vmatprep.subr.bf16.mxu0 0
  %287 = vmatpush1.bf16.msra.mxu0 %v220
  %288 = vmatprep.subr.bf16.mxu0 0
  %289 = vmatpush1.bf16.msra.mxu0 %v221
  %290 = vmatprep.subr.bf16.mxu0 0
  %291 = vmatpush1.bf16.msra.mxu0 %v222
  %292 = vmatprep.subr.bf16.mxu0 0
  %293 = vmatpush1.bf16.msra.mxu0 %v223
  %294 = vmatprep.subr.bf16.mxu0 0
  %295 = vmatpush1.bf16.msra.mxu0 %v224
  %296 = vmatprep.subr.bf16.mxu0 0
  %297 = vmatpush1.bf16.msra.mxu0 %v225
  %298 = vmatprep.subr.bf16.mxu0 0
  %299 = vmatpush1.bf16.msra.mxu0 %v226
  %300 = vmatprep.subr.bf16.mxu0 0
  %301 = vmatpush1.bf16.msra.mxu0 %v227
  %302 = vmatprep.mubr.bf16.mxu0 %v98
  %303 = vmatmul.mubr.bf16.gmra.mrb[0].mxu0 %v97
  %v304 = vpop.f32.mrb[0].mxu0
  %v305 = vadd.f32 %v78, %v304
  %v306 = vpop.f32.mrb[0].mxu0
  %v307 = vpop.f32.mrb[0].mxu0
  %v308 = vadd.f32 %v83, %v307
  %v309 = vpop.f32.mrb[0].mxu0
  %310 = vdwg.mxu0
  %311 = vmatprep.subr.bf16.mxu0 0
  %312 = vmatpush1.bf16.msra.mxu0 %v228
  %313 = vmatprep.subr.bf16.mxu0 0
  %314 = vmatpush1.bf16.msra.mxu0 %v229
  %315 = vmatprep.subr.bf16.mxu0 0
  %316 = vmatpush1.bf16.msra.mxu0 %v230
  %317 = vmatprep.subr.bf16.mxu0 0
  %318 = vmatpush1.bf16.msra.mxu0 %v231
  %319 = vmatprep.subr.bf16.mxu0 0
  %320 = vmatpush1.bf16.msra.mxu0 %v232
  %321 = vmatprep.subr.bf16.mxu0 0
  %322 = vmatpush1.bf16.msra.mxu0 %v233
  %323 = vmatprep.subr.bf16.mxu0 0
  %324 = vmatpush1.bf16.msra.mxu0 %v234
  %325 = vmatprep.subr.bf16.mxu0 0
  %326 = vmatpush1.bf16.msra.mxu0 %v235
  %327 = vmatprep.subr.bf16.mxu0 0
  %328 = vmatpush1.bf16.msra.mxu0 %v236
  %329 = vmatprep.subr.bf16.mxu0 0
  %330 = vmatpush1.bf16.msra.mxu0 %v237
  %331 = vmatprep.subr.bf16.mxu0 0
  %332 = vmatpush1.bf16.msra.mxu0 %v238
  %333 = vmatprep.subr.bf16.mxu0 0
  %334 = vmatpush1.bf16.msra.mxu0 0
  %335 = vmatprep.subr.bf16.mxu0 0
  %336 = vmatpush1.bf16.msra.mxu0 0
  %337 = vmatprep.subr.bf16.mxu0 0
  %338 = vmatpush1.bf16.msra.mxu0 0
  %339 = vmatprep.subr.bf16.mxu0 0
  %340 = vmatpush1.bf16.msra.mxu0 0
  %341 = vmatprep.subr.bf16.mxu0 0
  %342 = vmatpush1.bf16.msra.mxu0 0
  %343 = vmatprep.mubr.bf16.mxu0 %v268
  %344 = vmatmul.mubr.bf16.gmra.mrb[0].mxu0 %v99
  %v345 = vpop.f32.mrb[0].mxu0
  %v346 = vadd.f32 %v305, %v345
  %v347 = vpop.f32.mrb[0].mxu0
  %v348 = vpop.f32.mrb[0].mxu0
  %v349 = vadd.f32 %v308, %v348
  %v350 = vpop.f32.mrb[0].mxu0
  %351 = vdwg.mxu0
  %v352 = vmax.f32 %v346, 0.0
  %v353 = vmax.f32 %v349, 0.0
  %vm354 = vcmask 15360
  %355 = vst.msk [vmem:[%s3] sm:$0xff] %vm354, %v352
  %356 = vst.msk [vmem:[%s3 + $0x8] sm:$0xff] %vm354, %v353
  // Predicated region
  $region14: #{_lambda_.17} parent=0 // pred_check
    _
  $region15: #{_lambda_.17} parent=0 // pred_check_branch
    %358 = sbr.rel (0) target = $region17
  $region16: #{_lambda_.17} parent=0 // pred_region
    _
  $region17: #{_lambda_.17} parent=0 // pred_fallthru
    _
  // Predicated region
  $region18: #{_lambda_.17} parent=0 // pred_check
    _
  $region19: #{_lambda_.17} parent=0 // pred_check_branch
    %360 = sbr.rel (0) target = $region21
  $region20: #{_lambda_.17} parent=0 // pred_region
    _
  $region21: #{_lambda_.17} parent=0 // pred_fallthru
    _

// kernel: _lambda_.16
$region0: #{_lambda_.16}
  #allocation0 [shape = 'u32[]', space=smem, size = 0x4, offset = 0x4, fixed_abs, tag = 'smem constant byte address 0x4 - core index']
  #allocation1 [shape = 'u32[144,128]{1,0:T(1,128)}', space=vmem, size = 0x12000, scoped, tag = 'internal scratch']
  %s0 = inlined_call_operand.vmem [shape: bf16[8,216], index: 0, kind: input, shape index: {}]
  %s1 = inlined_call_operand.vmem [shape: bf16[216,16], index: 1, kind: input, shape index: {}]
  %s2 = inlined_call_operand.vmem [shape: f32[8,1], index: 2, kind: input, shape index: {}]
  %s3 = inlined_call_operand.vmem [shape: f32[8,16], index: 3, kind: output, shape index: {}]
  %s4 = sld [smem:[#allocation0]]
  $region22: #{_lambda_.16} parent=0
    _
  %s6 = ssub.s32 1, %s4
  %s7 = scalar_select 0, %s6, %s4
  // Predicated region
  $region2: #{_lambda_.16} parent=0 // pred_check
    _
  $region3: #{_lambda_.16} parent=0 // pred_check_branch
    %9 = sbr.rel (0) target = $region5
  $region4: #{_lambda_.16} parent=0 // pred_region
    _
  $region5: #{_lambda_.16} parent=0 // pred_fallthru
    _
  // Predicated region
  $region6: #{_lambda_.16} parent=0 // pred_check
    _
  $region7: #{_lambda_.16} parent=0 // pred_check_branch
    %11 = sbr.rel (0) target = $region9
  $region8: #{_lambda_.16} parent=0 // pred_region
    _
  $region9: #{_lambda_.16} parent=0 // pred_fallthru
    _
  // Predicated region
  $region10: #{_lambda_.16} parent=0 // pred_check
    _
  $region11: #{_lambda_.16} parent=0 // pred_check_branch
    %13 = sbr.rel (0) target = $region13
  $region12: #{_lambda_.16} parent=0 // pred_region
    _
  $region13: #{_lambda_.16} parent=0 // pred_fallthru
    _
  %v15 = vld [vmem:[%s0] sm:$0xff]
  %v16 = vld [vmem:[%s1] sm:$0xf]
  %v17 = vld [vmem:[%s1 + $0x4] sm:$0xf]
  %v18 = vld [vmem:[%s1 + $0x8] sm:$0xf]
  %v19 = vld [vmem:[%s1 + $0xc] sm:$0xf]
  %v20 = vld [vmem:[%s1 + $0x10] sm:$0xf]
  %v21 = vld [vmem:[%s1 + $0x14] sm:$0xf]
  %v22 = vld [vmem:[%s1 + $0x18] sm:$0xf]
  %v23 = vld [vmem:[%s1 + $0x1c] sm:$0xf]
  %v24 = vld [vmem:[%s1 + $0x20] sm:$0xf]
  %v25 = vld [vmem:[%s1 + $0x24] sm:$0xf]
  %v26 = vld [vmem:[%s1 + $0x28] sm:$0xf]
  %v27 = vld [vmem:[%s1 + $0x2c] sm:$0xf]
  %v28 = vld [vmem:[%s1 + $0x30] sm:$0xf]
  %v29 = vld [vmem:[%s1 + $0x34] sm:$0xf]
  %v30 = vld [vmem:[%s1 + $0x38] sm:$0xf]
  %v31 = vld [vmem:[%s1 + $0x3c] sm:$0xf]
  %v32 = vld [vmem:[%s1 + $0x40] sm:$0xf]
  %v33 = vld [vmem:[%s1 + $0x44] sm:$0xf]
  %v34 = vld [vmem:[%s1 + $0x48] sm:$0xf]
  %v35 = vld [vmem:[%s1 + $0x4c] sm:$0xf]
  %v36 = vld [vmem:[%s1 + $0x50] sm:$0xf]
  %v37 = vld [vmem:[%s1 + $0x54] sm:$0xf]
  %v38 = vld [vmem:[%s1 + $0x58] sm:$0xf]
  %v39 = vld [vmem:[%s1 + $0x5c] sm:$0xf]
  %v40 = vld [vmem:[%s1 + $0x60] sm:$0xf]
  %v41 = vld [vmem:[%s1 + $0x64] sm:$0xf]
  %v42 = vld [vmem:[%s1 + $0x68] sm:$0xf]
  %v43 = vld [vmem:[%s2] sm:$0xff]
  %45 = vset.pattern.permute.xlu0 0
  %46 = vperm.xlu0 %45, %v43
  %v47 = vpop.permute.xlu0 %46
  %v50 = vunpack.c.l.b16 %v15
  %v51 = vunpack.c.h.b16 %v15
  %v52 = vpack.c.b16 %v50, %v50
  %v53 = vpack.c.b16 %v51, %v51
  %v82 = vunpack.c.l.b16 %v16
  %v83 = vunpack.c.l.b16 %v17
  %v84 = vunpack.c.l.b16 %v18
  %v85 = vunpack.c.l.b16 %v19
  %v86 = vunpack.c.l.b16 %v20
  %v87 = vunpack.c.l.b16 %v21
  %v88 = vunpack.c.l.b16 %v22
  %v89 = vunpack.c.l.b16 %v23
  %v90 = vunpack.c.l.b16 %v24
  %v91 = vunpack.c.l.b16 %v25
  %v92 = vunpack.c.l.b16 %v26
  %v93 = vunpack.c.l.b16 %v27
  %v94 = vunpack.c.l.b16 %v28
  %v95 = vunpack.c.l.b16 %v29
  %v96 = vunpack.c.l.b16 %v30
  %v97 = vunpack.c.l.b16 %v31
  %v98 = vunpack.c.l.b16 %v32
  %v99 = vunpack.c.l.b16 %v33
  %v100 = vunpack.c.l.b16 %v34
  %v101 = vunpack.c.l.b16 %v35
  %v102 = vunpack.c.l.b16 %v36
  %v103 = vunpack.c.l.b16 %v37
  %v104 = vunpack.c.l.b16 %v38
  %v105 = vunpack.c.l.b16 %v39
  %v106 = vunpack.c.l.b16 %v40
  %v107 = vunpack.c.l.b16 %v41
  %v108 = vunpack.c.l.b16 %v42
  %v109 = vpack.c.b16 %v83, %v82
  %v110 = vpack.c.b16 %v85, %v84
  %v111 = vpack.c.b16 %v87, %v86
  %v112 = vpack.c.b16 %v89, %v88
  %v113 = vpack.c.b16 %v91, %v90
  %v114 = vpack.c.b16 %v93, %v92
  %v115 = vpack.c.b16 %v95, %v94
  %v116 = vpack.c.b16 %v97, %v96
  %v117 = vpack.c.b16 %v99, %v98
  %v118 = vpack.c.b16 %v101, %v100
  %v119 = vpack.c.b16 %v103, %v102
  %v120 = vpack.c.b16 %v105, %v104
  %v121 = vpack.c.b16 %v107, %v106
  %v122 = vpack.c.b16 %v108, %v108
  %vm136 = vcmask 719872
  %v138 = vsel %vm136, %v53, 0
  %vm140 = vcmask 1043456
  %v142 = vsel %vm140, %v122, 0
  %144 = vmatprep.subr.bf16.mxu0 0
  %145 = vmatpush1.bf16.msra.mxu0 %v109
  %146 = vmatprep.subr.bf16.mxu0 0
  %147 = vmatpush1.bf16.msra.mxu0 %v110
  %148 = vmatprep.subr.bf16.mxu0 0
  %149 = vmatpush1.bf16.msra.mxu0 %v111
  %150 = vmatprep.subr.bf16.mxu0 0
  %151 = vmatpush1.bf16.msra.mxu0 %v112
  %152 = vmatprep.subr.bf16.mxu0 0
  %153 = vmatpush1.bf16.msra.mxu0 %v113
  %154 = vmatprep.subr.bf16.mxu0 0
  %155 = vmatpush1.bf16.msra.mxu0 %v114
  %156 = vmatprep.subr.bf16.mxu0 0
  %157 = vmatpush1.bf16.msra.mxu0 %v115
  %158 = vmatprep.subr.bf16.mxu0 0
  %159 = vmatpush1.bf16.msra.mxu0 %v116
  %160 = vmatprep.subr.bf16.mxu0 0
  %161 = vmatpush1.bf16.msra.mxu0 %v117
  %162 = vmatprep.subr.bf16.mxu0 0
  %163 = vmatpush1.bf16.msra.mxu0 %v118
  %164 = vmatprep.subr.bf16.mxu0 0
  %165 = vmatpush1.bf16.msra.mxu0 %v119
  %166 = vmatprep.subr.bf16.mxu0 0
  %167 = vmatpush1.bf16.msra.mxu0 %v120
  %168 = vmatprep.subr.bf16.mxu0 0
  %169 = vmatpush1.bf16.msra.mxu0 %v121
  %170 = vmatprep.subr.bf16.mxu0 0
  %171 = vmatpush1.bf16.msra.mxu0 %v142
  %172 = vmatprep.subr.bf16.mxu0 0
  %173 = vmatpush1.bf16.msra.mxu0 0
  %174 = vmatprep.subr.bf16.mxu0 0
  %175 = vmatpush1.bf16.msra.mxu0 0
  %176 = vmatprep.mubr.bf16.mxu0 %v138
  %177 = vmatmul.mubr.bf16.gmra.mrb[0].mxu0 %v52
  %v178 = vpop.f32.mrb[0].mxu0
  %v179 = vadd.f32 %v47, %v178
  %v180 = vpop.f32.mrb[0].mxu0
  %v181 = vpop.f32.mrb[0].mxu0
  %v182 = vpop.f32.mrb[0].mxu0
  %183 = vdwg.mxu0
  %v184 = vmax.f32 %v179, 0.0
  %vm185 = vcmask 130048
  %186 = vst.msk [vmem:[%s3] sm:$0xff] %vm185, %v184
  // Predicated region
  $region14: #{_lambda_.16} parent=0 // pred_check
    _
  $region15: #{_lambda_.16} parent=0 // pred_check_branch
    %188 = sbr.rel (0) target = $region17
  $region16: #{_lambda_.16} parent=0 // pred_region
    _
  $region17: #{_lambda_.16} parent=0 // pred_fallthru
    _
  // Predicated region
  $region18: #{_lambda_.16} parent=0 // pred_check
    _
  $region19: #{_lambda_.16} parent=0 // pred_check_branch
    %190 = sbr.rel (0) target = $region21
  $region20: #{_lambda_.16} parent=0 // pred_region
    _
  $region21: #{_lambda_.16} parent=0 // pred_fallthru
    _

// kernel: _lambda_.18
$region0: #{_lambda_.18}
  #allocation0 [shape = 'u32[]', space=smem, size = 0x4, offset = 0x4, fixed_abs, tag = 'smem constant byte address 0x4 - core index']
  #allocation1 [shape = 'u32[144,128]{1,0:T(1,128)}', space=vmem, size = 0x12000, scoped, tag = 'internal scratch']
  %s0 = inlined_call_operand.vmem [shape: bf16[8,432], index: 0, kind: input, shape index: {}]
  %s1 = inlined_call_operand.vmem [shape: bf16[432,16], index: 1, kind: input, shape index: {}]
  %s2 = inlined_call_operand.vmem [shape: f32[8,1], index: 2, kind: input, shape index: {}]
  %s3 = inlined_call_operand.vmem [shape: f32[8,16], index: 3, kind: input, shape index: {}]
  %s4 = inlined_call_operand.vmem [shape: f32[8,16], index: 4, kind: output, shape index: {}]
  %s5 = sld [smem:[#allocation0]]
  $region26: #{_lambda_.18} parent=0
    _
  %s7 = ssub.s32 1, %s5
  %s8 = scalar_select 0, %s7, %s5
  // Predicated region
  $region2: #{_lambda_.18} parent=0 // pred_check
    _
  $region3: #{_lambda_.18} parent=0 // pred_check_branch
    %10 = sbr.rel (0) target = $region5
  $region4: #{_lambda_.18} parent=0 // pred_region
    _
  $region5: #{_lambda_.18} parent=0 // pred_fallthru
    _
  // Predicated region
  $region6: #{_lambda_.18} parent=0 // pred_check
    _
  $region7: #{_lambda_.18} parent=0 // pred_check_branch
    %12 = sbr.rel (0) target = $region9
  $region8: #{_lambda_.18} parent=0 // pred_region
    _
  $region9: #{_lambda_.18} parent=0 // pred_fallthru
    _
  // Predicated region
  $region10: #{_lambda_.18} parent=0 // pred_check
    _
  $region11: #{_lambda_.18} parent=0 // pred_check_branch
    %14 = sbr.rel (0) target = $region13
  $region12: #{_lambda_.18} parent=0 // pred_region
    _
  $region13: #{_lambda_.18} parent=0 // pred_fallthru
    _
  // Predicated region
  $region14: #{_lambda_.18} parent=0 // pred_check
    _
  $region15: #{_lambda_.18} parent=0 // pred_check_branch
    %16 = sbr.rel (0) target = $region17
  $region16: #{_lambda_.18} parent=0 // pred_region
    _
  $region17: #{_lambda_.18} parent=0 // pred_fallthru
    _
  %v18 = vld [vmem:[%s0] sm:$0xff]
  %v19 = vld [vmem:[%s0 + $0x8] sm:$0xff]
  %v20 = vld [vmem:[%s1] sm:$0xf]
  %v21 = vld [vmem:[%s1 + $0x4] sm:$0xf]
  %v22 = vld [vmem:[%s1 + $0x8] sm:$0xf]
  %v23 = vld [vmem:[%s1 + $0xc] sm:$0xf]
  %v24 = vld [vmem:[%s1 + $0x10] sm:$0xf]
  %v25 = vld [vmem:[%s1 + $0x14] sm:$0xf]
  %v26 = vld [vmem:[%s1 + $0x18] sm:$0xf]
  %v27 = vld [vmem:[%s1 + $0x1c] sm:$0xf]
  %v28 = vld [vmem:[%s1 + $0x20] sm:$0xf]
  %v29 = vld [vmem:[%s1 + $0x24] sm:$0xf]
  %v30 = vld [vmem:[%s1 + $0x28] sm:$0xf]
  %v31 = vld [vmem:[%s1 + $0x2c] sm:$0xf]
  %v32 = vld [vmem:[%s1 + $0x30] sm:$0xf]
  %v33 = vld [vmem:[%s1 + $0x34] sm:$0xf]
  %v34 = vld [vmem:[%s1 + $0x38] sm:$0xf]
  %v35 = vld [vmem:[%s1 + $0x3c] sm:$0xf]
  %v36 = vld [vmem:[%s1 + $0x40] sm:$0xf]
  %v37 = vld [vmem:[%s1 + $0x44] sm:$0xf]
  %v38 = vld [vmem:[%s1 + $0x48] sm:$0xf]
  %v39 = vld [vmem:[%s1 + $0x4c] sm:$0xf]
  %v40 = vld [vmem:[%s1 + $0x50] sm:$0xf]
  %v41 = vld [vmem:[%s1 + $0x54] sm:$0xf]
  %v42 = vld [vmem:[%s1 + $0x58] sm:$0xf]
  %v43 = vld [vmem:[%s1 + $0x5c] sm:$0xf]
  %v44 = vld [vmem:[%s1 + $0x60] sm:$0xf]
  %v45 = vld [vmem:[%s1 + $0x64] sm:$0xf]
  %v46 = vld [vmem:[%s1 + $0x68] sm:$0xf]
  %v47 = vld [vmem:[%s1 + $0x6c] sm:$0xf]
  %v48 = vld [vmem:[%s1 + $0x70] sm:$0xf]
  %v49 = vld [vmem:[%s1 + $0x74] sm:$0xf]
  %v50 = vld [vmem:[%s1 + $0x78] sm:$0xf]
  %v51 = vld [vmem:[%s1 + $0x7c] sm:$0xf]
  %v52 = vld [vmem:[%s1 + $0x80] sm:$0xf]
  %v53 = vld [vmem:[%s1 + $0x84] sm:$0xf]
  %v54 = vld [vmem:[%s1 + $0x88] sm:$0xf]
  %v55 = vld [vmem:[%s1 + $0x8c] sm:$0xf]
  %v56 = vld [vmem:[%s1 + $0x90] sm:$0xf]
  %v57 = vld [vmem:[%s1 + $0x94] sm:$0xf]
  %v58 = vld [vmem:[%s1 + $0x98] sm:$0xf]
  %v59 = vld [vmem:[%s1 + $0x9c] sm:$0xf]
  %v60 = vld [vmem:[%s1 + $0xa0] sm:$0xf]
  %v61 = vld [vmem:[%s1 + $0xa4] sm:$0xf]
  %v62 = vld [vmem:[%s1 + $0xa8] sm:$0xf]
  %v63 = vld [vmem:[%s1 + $0xac] sm:$0xf]
  %v64 = vld [vmem:[%s1 + $0xb0] sm:$0xf]
  %v65 = vld [vmem:[%s1 + $0xb4] sm:$0xf]
  %v66 = vld [vmem:[%s1 + $0xb8] sm:$0xf]
  %v67 = vld [vmem:[%s1 + $0xbc] sm:$0xf]
  %v68 = vld [vmem:[%s1 + $0xc0] sm:$0xf]
  %v69 = vld [vmem:[%s1 + $0xc4] sm:$0xf]
  %v70 = vld [vmem:[%s1 + $0xc8] sm:$0xf]
  %v71 = vld [vmem:[%s1 + $0xcc] sm:$0xf]
  %v72 = vld [vmem:[%s1 + $0xd0] sm:$0xf]
  %v73 = vld [vmem:[%s1 + $0xd4] sm:$0xf]
  %v74 = vld [vmem:[%s2] sm:$0xff]
  %76 = vset.pattern.permute.xlu0 0
  %77 = vperm.xlu0 %76, %v74
  %v78 = vpop.permute.xlu0 %77
  %v82 = vunpack.c.l.b16 %v18
  %v83 = vunpack.c.h.b16 %v18
  %v84 = vunpack.c.l.b16 %v19
  %v85 = vunpack.c.h.b16 %v19
  %v86 = vpack.c.b16 %v82, %v82
  %v87 = vpack.c.b16 %v83, %v83
  %v88 = vpack.c.b16 %v84, %v84
  %v89 = vpack.c.b16 %v85, %v85
  %v147 = vunpack.c.l.b16 %v20
  %v148 = vunpack.c.l.b16 %v21
  %v149 = vunpack.c.l.b16 %v22
  %v150 = vunpack.c.l.b16 %v23
  %v151 = vunpack.c.l.b16 %v24
  %v152 = vunpack.c.l.b16 %v25
  %v153 = vunpack.c.l.b16 %v26
  %v154 = vunpack.c.l.b16 %v27
  %v155 = vunpack.c.l.b16 %v28
  %v156 = vunpack.c.l.b16 %v29
  %v157 = vunpack.c.l.b16 %v30
  %v158 = vunpack.c.l.b16 %v31
  %v159 = vunpack.c.l.b16 %v32
  %v160 = vunpack.c.l.b16 %v33
  %v161 = vunpack.c.l.b16 %v34
  %v162 = vunpack.c.l.b16 %v35
  %v163 = vunpack.c.l.b16 %v36
  %v164 = vunpack.c.l.b16 %v37
  %v165 = vunpack.c.l.b16 %v38
  %v166 = vunpack.c.l.b16 %v39
  %v167 = vunpack.c.l.b16 %v40
  %v168 = vunpack.c.l.b16 %v41
  %v169 = vunpack.c.l.b16 %v42
  %v170 = vunpack.c.l.b16 %v43
  %v171 = vunpack.c.l.b16 %v44
  %v172 = vunpack.c.l.b16 %v45
  %v173 = vunpack.c.l.b16 %v46
  %v174 = vunpack.c.l.b16 %v47
  %v175 = vunpack.c.l.b16 %v48
  %v176 = vunpack.c.l.b16 %v49
  %v177 = vunpack.c.l.b16 %v50
  %v178 = vunpack.c.l.b16 %v51
  %v179 = vunpack.c.l.b16 %v52
  %v180 = vunpack.c.l.b16 %v53
  %v181 = vunpack.c.l.b16 %v54
  %v182 = vunpack.c.l.b16 %v55
  %v183 = vunpack.c.l.b16 %v56
  %v184 = vunpack.c.l.b16 %v57
  %v185 = vunpack.c.l.b16 %v58
  %v186 = vunpack.c.l.b16 %v59
  %v187 = vunpack.c.l.b16 %v60
  %v188 = vunpack.c.l.b16 %v61
  %v189 = vunpack.c.l.b16 %v62
  %v190 = vunpack.c.l.b16 %v63
  %v191 = vunpack.c.l.b16 %v64
  %v192 = vunpack.c.l.b16 %v65
  %v193 = vunpack.c.l.b16 %v66
  %v194 = vunpack.c.l.b16 %v67
  %v195 = vunpack.c.l.b16 %v68
  %v196 = vunpack.c.l.b16 %v69
  %v197 = vunpack.c.l.b16 %v70
  %v198 = vunpack.c.l.b16 %v71
  %v199 = vunpack.c.l.b16 %v72
  %v200 = vunpack.c.l.b16 %v73
  %v201 = vpack.c.b16 %v148, %v147
  %v202 = vpack.c.b16 %v150, %v149
  %v203 = vpack.c.b16 %v152, %v151
  %v204 = vpack.c.b16 %v154, %v153
  %v205 = vpack.c.b16 %v156, %v155
  %v206 = vpack.c.b16 %v158, %v157
  %v207 = vpack.c.b16 %v160, %v159
  %v208 = vpack.c.b16 %v162, %v161
  %v209 = vpack.c.b16 %v164, %v163
  %v210 = vpack.c.b16 %v166, %v165
  %v211 = vpack.c.b16 %v168, %v167
  %v212 = vpack.c.b16 %v170, %v169
  %v213 = vpack.c.b16 %v172, %v171
  %v214 = vpack.c.b16 %v174, %v173
  %v215 = vpack.c.b16 %v176, %v175
  %v216 = vpack.c.b16 %v178, %v177
  %v217 = vpack.c.b16 %v180, %v179
  %v218 = vpack.c.b16 %v182, %v181
  %v219 = vpack.c.b16 %v184, %v183
  %v220 = vpack.c.b16 %v186, %v185
  %v221 = vpack.c.b16 %v188, %v187
  %v222 = vpack.c.b16 %v190, %v189
  %v223 = vpack.c.b16 %v192, %v191
  %v224 = vpack.c.b16 %v194, %v193
  %v225 = vpack.c.b16 %v196, %v195
  %v226 = vpack.c.b16 %v198, %v197
  %v227 = vpack.c.b16 %v200, %v199
  %vm255 = vcmask 392192
  %v257 = vsel %vm255, %v89, 0
  %259 = vmatprep.subr.bf16.mxu0 0
  %260 = vmatpush1.bf16.msra.mxu0 %v201
  %261 = vmatprep.subr.bf16.mxu0 0
  %262 = vmatpush1.bf16.msra.mxu0 %v202
  %263 = vmatprep.subr.bf16.mxu0 0
  %264 = vmatpush1.bf16.msra.mxu0 %v203
  %265 = vmatprep.subr.bf16.mxu0 0
  %266 = vmatpush1.bf16.msra.mxu0 %v204
  %267 = vmatprep.subr.bf16.mxu0 0
  %268 = vmatpush1.bf16.msra.mxu0 %v205
  %269 = vmatprep.subr.bf16.mxu0 0
  %270 = vmatpush1.bf16.msra.mxu0 %v206
  %271 = vmatprep.subr.bf16.mxu0 0
  %272 = vmatpush1.bf16.msra.mxu0 %v207
  %273 = vmatprep.subr.bf16.mxu0 0
  %274 = vmatpush1.bf16.msra.mxu0 %v208
  %275 = vmatprep.subr.bf16.mxu0 0
  %276 = vmatpush1.bf16.msra.mxu0 %v209
  %277 = vmatprep.subr.bf16.mxu0 0
  %278 = vmatpush1.bf16.msra.mxu0 %v210
  %279 = vmatprep.subr.bf16.mxu0 0
  %280 = vmatpush1.bf16.msra.mxu0 %v211
  %281 = vmatprep.subr.bf16.mxu0 0
  %282 = vmatpush1.bf16.msra.mxu0 %v212
  %283 = vmatprep.subr.bf16.mxu0 0
  %284 = vmatpush1.bf16.msra.mxu0 %v213
  %285 = vmatprep.subr.bf16.mxu0 0
  %286 = vmatpush1.bf16.msra.mxu0 %v214
  %287 = vmatprep.subr.bf16.mxu0 0
  %288 = vmatpush1.bf16.msra.mxu0 %v215
  %289 = vmatprep.subr.bf16.mxu0 0
  %290 = vmatpush1.bf16.msra.mxu0 %v216
  %291 = vmatprep.mubr.bf16.mxu0 %v87
  %292 = vmatmul.mubr.bf16.gmra.mrb[0].mxu0 %v86
  %v293 = vpop.f32.mrb[0].mxu0
  %v294 = vadd.f32 %v78, %v293
  %v295 = vpop.f32.mrb[0].mxu0
  %v296 = vpop.f32.mrb[0].mxu0
  %v297 = vpop.f32.mrb[0].mxu0
  %298 = vdwg.mxu0
  %299 = vmatprep.subr.bf16.mxu0 0
  %300 = vmatpush1.bf16.msra.mxu0 %v217
  %301 = vmatprep.subr.bf16.mxu0 0
  %302 = vmatpush1.bf16.msra.mxu0 %v218
  %303 = vmatprep.subr.bf16.mxu0 0
  %304 = vmatpush1.bf16.msra.mxu0 %v219
  %305 = vmatprep.subr.bf16.mxu0 0
  %306 = vmatpush1.bf16.msra.mxu0 %v220
  %307 = vmatprep.subr.bf16.mxu0 0
  %308 = vmatpush1.bf16.msra.mxu0 %v221
  %309 = vmatprep.subr.bf16.mxu0 0
  %310 = vmatpush1.bf16.msra.mxu0 %v222
  %311 = vmatprep.subr.bf16.mxu0 0
  %312 = vmatpush1.bf16.msra.mxu0 %v223
  %313 = vmatprep.subr.bf16.mxu0 0
  %314 = vmatpush1.bf16.msra.mxu0 %v224
  %315 = vmatprep.subr.bf16.mxu0 0
  %316 = vmatpush1.bf16.msra.mxu0 %v225
  %317 = vmatprep.subr.bf16.mxu0 0
  %318 = vmatpush1.bf16.msra.mxu0 %v226
  %319 = vmatprep.subr.bf16.mxu0 0
  %320 = vmatpush1.bf16.msra.mxu0 %v227
  %321 = vmatprep.subr.bf16.mxu0 0
  %322 = vmatpush1.bf16.msra.mxu0 0
  %323 = vmatprep.subr.bf16.mxu0 0
  %324 = vmatpush1.bf16.msra.mxu0 0
  %325 = vmatprep.subr.bf16.mxu0 0
  %326 = vmatpush1.bf16.msra.mxu0 0
  %327 = vmatprep.subr.bf16.mxu0 0
  %328 = vmatpush1.bf16.msra.mxu0 0
  %329 = vmatprep.subr.bf16.mxu0 0
  %330 = vmatpush1.bf16.msra.mxu0 0
  %331 = vmatprep.mubr.bf16.mxu0 %v257
  %332 = vmatmul.mubr.bf16.gmra.mrb[0].mxu0 %v88
  %v333 = vpop.f32.mrb[0].mxu0
  %v334 = vadd.f32 %v294, %v333
  %v335 = vpop.f32.mrb[0].mxu0
  %v336 = vpop.f32.mrb[0].mxu0
  %v337 = vpop.f32.mrb[0].mxu0
  %338 = vdwg.mxu0
  %v339 = vmax.f32 %v334, 0.0
  %v340 = vld [vmem:[%s3] sm:$0xff]
  %v341 = vadd.f32 %v339, %v340
  %vm342 = vcmask 130048
  %343 = vst.msk [vmem:[%s4] sm:$0xff] %vm342, %v341
  // Predicated region
  $region18: #{_lambda_.18} parent=0 // pred_check
    _
  $region19: #{_lambda_.18} parent=0 // pred_check_branch
    %345 = sbr.rel (0) target = $region21
  $region20: #{_lambda_.18} parent=0 // pred_region
    _
  $region21: #{_lambda_.18} parent=0 // pred_fallthru
    _
  // Predicated region
  $region22: #{_lambda_.18} parent=0 // pred_check
    _
  $region23: #{_lambda_.18} parent=0 // pred_check_branch
    %347 = sbr.rel (0) target = $region25
  $region24: #{_lambda_.18} parent=0 // pred_region
    _
  $region25: #{_lambda_.18} parent=0 // pred_fallthru
    _

// kernel: _lambda_.19
$region0: #{_lambda_.19}
  #allocation0 [shape = 'u32[]', space=smem, size = 0x4, offset = 0x4, fixed_abs, tag = 'smem constant byte address 0x4 - core index']
  #allocation1 [shape = 'u32[144,128]{1,0:T(1,128)}', space=vmem, size = 0x12000, scoped, tag = 'internal scratch']
  %s0 = inlined_call_operand.vmem [shape: bf16[4,216], index: 0, kind: input, shape index: {}]
  %s1 = inlined_call_operand.vmem [shape: bf16[216,128], index: 1, kind: input, shape index: {}]
  %s2 = inlined_call_operand.vmem [shape: f32[4,1], index: 2, kind: input, shape index: {}]
  %s3 = inlined_call_operand.vmem [shape: f32[4,128], index: 3, kind: input, shape index: {}]
  %s4 = inlined_call_operand.vmem [shape: f32[4,128], index: 4, kind: output, shape index: {}]
  %s5 = sld [smem:[#allocation0]]
  $region26: #{_lambda_.19} parent=0
    _
  %s7 = ssub.s32 1, %s5
  %s8 = scalar_select 0, %s7, %s5
  // Predicated region
  $region2: #{_lambda_.19} parent=0 // pred_check
    _
  $region3: #{_lambda_.19} parent=0 // pred_check_branch
    %10 = sbr.rel (0) target = $region5
  $region4: #{_lambda_.19} parent=0 // pred_region
    _
  $region5: #{_lambda_.19} parent=0 // pred_fallthru
    _
  // Predicated region
  $region6: #{_lambda_.19} parent=0 // pred_check
    _
  $region7: #{_lambda_.19} parent=0 // pred_check_branch
    %12 = sbr.rel (0) target = $region9
  $region8: #{_lambda_.19} parent=0 // pred_region
    _
  $region9: #{_lambda_.19} parent=0 // pred_fallthru
    _
  // Predicated region
  $region10: #{_lambda_.19} parent=0 // pred_check
    _
  $region11: #{_lambda_.19} parent=0 // pred_check_branch
    %14 = sbr.rel (0) target = $region13
  $region12: #{_lambda_.19} parent=0 // pred_region
    _
  $region13: #{_lambda_.19} parent=0 // pred_fallthru
    _
  // Predicated region
  $region14: #{_lambda_.19} parent=0 // pred_check
    _
  $region15: #{_lambda_.19} parent=0 // pred_check_branch
    %16 = sbr.rel (0) target = $region17
  $region16: #{_lambda_.19} parent=0 // pred_region
    _
  $region17: #{_lambda_.19} parent=0 // pred_fallthru
    _
  %v18 = vld [vmem:[%s0] sm:$0xf]
  %v19 = vld [vmem:[%s1] sm:$0xf]
  %v20 = vld [vmem:[%s1 + $0x4] sm:$0xf]
  %v21 = vld [vmem:[%s1 + $0x8] sm:$0xf]
  %v22 = vld [vmem:[%s1 + $0xc] sm:$0xf]
  %v23 = vld [vmem:[%s1 + $0x10] sm:$0xf]
  %v24 = vld [vmem:[%s1 + $0x14] sm:$0xf]
  %v25 = vld [vmem:[%s1 + $0x18] sm:$0xf]
  %v26 = vld [vmem:[%s1 + $0x1c] sm:$0xf]
  %v27 = vld [vmem:[%s1 + $0x20] sm:$0xf]
  %v28 = vld [vmem:[%s1 + $0x24] sm:$0xf]
  %v29 = vld [vmem:[%s1 + $0x28] sm:$0xf]
  %v30 = vld [vmem:[%s1 + $0x2c] sm:$0xf]
  %v31 = vld [vmem:[%s1 + $0x30] sm:$0xf]
  %v32 = vld [vmem:[%s1 + $0x34] sm:$0xf]
  %v33 = vld [vmem:[%s1 + $0x38] sm:$0xf]
  %v34 = vld [vmem:[%s1 + $0x3c] sm:$0xf]
  %v35 = vld [vmem:[%s1 + $0x40] sm:$0xf]
  %v36 = vld [vmem:[%s1 + $0x44] sm:$0xf]
  %v37 = vld [vmem:[%s1 + $0x48] sm:$0xf]
  %v38 = vld [vmem:[%s1 + $0x4c] sm:$0xf]
  %v39 = vld [vmem:[%s1 + $0x50] sm:$0xf]
  %v40 = vld [vmem:[%s1 + $0x54] sm:$0xf]
  %v41 = vld [vmem:[%s1 + $0x58] sm:$0xf]
  %v42 = vld [vmem:[%s1 + $0x5c] sm:$0xf]
  %v43 = vld [vmem:[%s1 + $0x60] sm:$0xf]
  %v44 = vld [vmem:[%s1 + $0x64] sm:$0xf]
  %v45 = vld [vmem:[%s1 + $0x68] sm:$0xf]
  %v46 = vld [vmem:[%s2] sm:$0xf]
  %48 = vset.pattern.permute.xlu0 0
  %49 = vperm.xlu0 %48, %v46
  %v50 = vpop.permute.xlu0 %49
  %v54 = vunpack.c.l.s4 1983009808
  %v55 = vunpack.c.0.s8 %v54
  %v56 = vlaneseq
  %v57 = vshrl.u32 %v56, 7
  %v58 = vsub.s32 %v55, %v57
  %v59 = vrot.slane %v18, %v58
  %v60 = vcombine.high %v59, %v59
  %v89 = vunpack.c.l.b16 %v19
  %v90 = vunpack.c.l.b16 %v20
  %v91 = vunpack.c.l.b16 %v21
  %v92 = vunpack.c.l.b16 %v22
  %v93 = vunpack.c.l.b16 %v23
  %v94 = vunpack.c.l.b16 %v24
  %v95 = vunpack.c.l.b16 %v25
  %v96 = vunpack.c.l.b16 %v26
  %v97 = vunpack.c.l.b16 %v27
  %v98 = vunpack.c.l.b16 %v28
  %v99 = vunpack.c.l.b16 %v29
  %v100 = vunpack.c.l.b16 %v30
  %v101 = vunpack.c.l.b16 %v31
  %v102 = vunpack.c.l.b16 %v32
  %v103 = vunpack.c.l.b16 %v33
  %v104 = vunpack.c.l.b16 %v34
  %v105 = vunpack.c.l.b16 %v35
  %v106 = vunpack.c.l.b16 %v36
  %v107 = vunpack.c.l.b16 %v37
  %v108 = vunpack.c.l.b16 %v38
  %v109 = vunpack.c.l.b16 %v39
  %v110 = vunpack.c.l.b16 %v40
  %v111 = vunpack.c.l.b16 %v41
  %v112 = vunpack.c.l.b16 %v42
  %v113 = vunpack.c.l.b16 %v43
  %v114 = vunpack.c.l.b16 %v44
  %v115 = vunpack.c.l.b16 %v45
  %v116 = vpack.c.b16 %v90, %v89
  %v117 = vpack.c.b16 %v92, %v91
  %v118 = vpack.c.b16 %v94, %v93
  %v119 = vpack.c.b16 %v96, %v95
  %v120 = vpack.c.b16 %v98, %v97
  %v121 = vpack.c.b16 %v100, %v99
  %v122 = vpack.c.b16 %v102, %v101
  %v123 = vpack.c.b16 %v104, %v103
  %v124 = vpack.c.b16 %v106, %v105
  %v125 = vpack.c.b16 %v108, %v107
  %v126 = vpack.c.b16 %v110, %v109
  %v127 = vpack.c.b16 %v112, %v111
  %v128 = vpack.c.b16 %v114, %v113
  %v129 = vpack.c.b16 %v115, %v115
  %vm143 = vcmask 719872
  %v145 = vsel %vm143, %v60, 0
  %vm147 = vcmask 1043456
  %v149 = vsel %vm147, %v129, 0
  %151 = vmatprep.subr.bf16.mxu0 0
  %152 = vmatpush1.bf16.msra.mxu0 %v116
  %153 = vmatprep.subr.bf16.mxu0 0
  %154 = vmatpush1.bf16.msra.mxu0 %v117
  %155 = vmatprep.subr.bf16.mxu0 0
  %156 = vmatpush1.bf16.msra.mxu0 %v118
  %157 = vmatprep.subr.bf16.mxu0 0
  %158 = vmatpush1.bf16.msra.mxu0 %v119
  %159 = vmatprep.subr.bf16.mxu0 0
  %160 = vmatpush1.bf16.msra.mxu0 %v120
  %161 = vmatprep.subr.bf16.mxu0 0
  %162 = vmatpush1.bf16.msra.mxu0 %v121
  %163 = vmatprep.subr.bf16.mxu0 0
  %164 = vmatpush1.bf16.msra.mxu0 %v122
  %165 = vmatprep.subr.bf16.mxu0 0
  %166 = vmatpush1.bf16.msra.mxu0 %v123
  %167 = vmatprep.subr.bf16.mxu0 0
  %168 = vmatpush1.bf16.msra.mxu0 %v124
  %169 = vmatprep.subr.bf16.mxu0 0
  %170 = vmatpush1.bf16.msra.mxu0 %v125
  %171 = vmatprep.subr.bf16.mxu0 0
  %172 = vmatpush1.bf16.msra.mxu0 %v126
  %173 = vmatprep.subr.bf16.mxu0 0
  %174 = vmatpush1.bf16.msra.mxu0 %v127
  %175 = vmatprep.subr.bf16.mxu0 0
  %176 = vmatpush1.bf16.msra.mxu0 %v128
  %177 = vmatprep.subr.bf16.mxu0 0
  %178 = vmatpush1.bf16.msra.mxu0 %v149
  %179 = vmatprep.subr.bf16.mxu0 0
  %180 = vmatpush1.bf16.msra.mxu0 0
  %181 = vmatprep.subr.bf16.mxu0 0
  %182 = vmatpush1.bf16.msra.mxu0 0
  %183 = vmatprep.mubr.bf16.mxu0 %v145
  %184 = vmatmul.mubr.bf16.gmra.mrb[0].mxu0 %v59
  %v185 = vpop.f32.mrb[0].mxu0
  %v186 = vadd.f32 %v50, %v185
  %v187 = vpop.f32.mrb[0].mxu0
  %v188 = vpop.f32.mrb[0].mxu0
  %v189 = vpop.f32.mrb[0].mxu0
  %190 = vdwg.mxu0
  %v191 = vmax.f32 %v186, 0.0
  %v192 = vld [vmem:[%s3] sm:$0xf]
  %v193 = vadd.f32 %v191, %v192
  %194 = vst [vmem:[%s4] sm:$0xf] %v193
  // Predicated region
  $region18: #{_lambda_.19} parent=0 // pred_check
    _
  $region19: #{_lambda_.19} parent=0 // pred_check_branch
    %196 = sbr.rel (0) target = $region21
  $region20: #{_lambda_.19} parent=0 // pred_region
    _
  $region21: #{_lambda_.19} parent=0 // pred_fallthru
    _
  // Predicated region
  $region22: #{_lambda_.19} parent=0 // pred_check
    _
  $region23: #{_lambda_.19} parent=0 // pred_check_branch
    %198 = sbr.rel (0) target = $region25
  $region24: #{_lambda_.19} parent=0 // pred_region
    _
  $region25: #{_lambda_.19} parent=0 // pred_fallthru
    _

// kernel: _lambda_.11
$region0: #{_lambda_.11}
  #allocation0 [shape = 'u32[]', space=smem, size = 0x4, offset = 0x4, fixed_abs, tag = 'smem constant byte address 0x4 - core index']
  #allocation1 [shape = 'u32[144,128]{1,0:T(1,128)}', space=vmem, size = 0x12000, scoped, tag = 'internal scratch']
  %s0 = inlined_call_operand.vmem [shape: bf16[2,112], index: 0, kind: input, shape index: {}]
  %s1 = inlined_call_operand.vmem [shape: bf16[112,1024], index: 1, kind: input, shape index: {}]
  %s2 = inlined_call_operand.vmem [shape: f32[2,1], index: 2, kind: input, shape index: {}]
  %s3 = inlined_call_operand.vmem [shape: f32[2,1024], index: 3, kind: output, shape index: {}]
  %s4 = sld [smem:[#allocation0]]
  $region68: #{_lambda_.11} parent=0
    _
  %s6 = ssub.s32 1, %s4
  %s7 = scalar_select 0, %s6, %s4
  $region1: #{_lambda_.11} parent=0
    #allocation2 [shape = 'u8[229376]{0}', space=vmem, size = 0x38000, scoped, tag = 'input window, operand 1']
    loop: start=0, step=1, limit=4
    $region2: #{_lambda_.11} parent=1 // loop_pre_header
      _
    $region3: #{_lambda_.11} parent=1 // loop_header
      %s9 = sphi 0, %s13
      %p10 = scmp.ge.s32.totalorder %s9, 4
      %s17 = sphi 0, %s17
      %s19 = sphi 0, %s17
      %s20 = sphi 0, %s19
      %s34 = sphi 0, %s20
      %s40 = sphi 0, %s42
      %s43 = sphi 0, %s40
      %s44 = sphi 0, %s43
      %s60 = sphi 0, %s44
      %s64 = sphi 0, %s64
      %s66 = sphi 0, %s64
      %s67 = sphi 0, %s66
      %s81 = sphi 0, %s67
      %s87 = sphi 0, %s89
      %s90 = sphi 0, %s87
      %s91 = sphi 0, %s90
      %s107 = sphi 0, %s91
    $region4: #{_lambda_.11} parent=1 // loop_header_branch
      %12 = sbr.rel (%p10) target = $region8
    $region5: #{_lambda_.11} parent=1 // loop_body
      %s14 = ssub.s32 %s9, 1
      %s15 = ssub.s32 %s9, 2
      %s16 = sadd.s32 %s9, 1
      %s18 = sadd.s32 %s17, 1
      %p21 = scmp.eq.s32.totalorder %s9, 1
      %p22 = scmp.ne.s32.totalorder %s17, %s19
      %p23 = scmp.eq.s32.totalorder %s9, 0
      %p24 = por %p22, %p23
      %p25 = scmp.ne.s32.totalorder %s17, %s19
      %p26 = scmp.eq.s32.totalorder %s14, 1
      %p27 = por %p25, %p26
      %p28 = scmp.ne.s32.totalorder %s19, %s20
      %p29 = scmp.eq.s32.totalorder %s14, 0
      %p30 = por %p28, %p29
      %p31 = scmp.ne.s32.totalorder %s19, %s20
      %p32 = scmp.eq.s32.totalorder %s15, 1
      %p33 = por %p31, %p32
      %p35 = scmp.ne.s32.totalorder %s20, %s34
      %p36 = scmp.eq.s32.totalorder %s15, 0
      %p37 = por %p35, %p36
      %s38 = ssub.s32 %s9, %s16
      %p39 = scmp.eq.s32.totalorder %s38, 0
      %s41 = sadd.s32 %s40, 1
      %s42 = scalar_select %p39, %s40, %s41
      %p45 = pneg %p39
      %p46 = scmp.eq.s32.totalorder %s9, 1
      %p47 = por %p45, %p46
      %p48 = scmp.ne.s32.totalorder %s40, %s43
      %p49 = scmp.eq.s32.totalorder %s9, 0
      %p50 = por %p48, %p49
      %p51 = scmp.ne.s32.totalorder %s40, %s43
      %p52 = scmp.eq.s32.totalorder %s14, 1
      %p53 = por %p51, %p52
      %p54 = scmp.ne.s32.totalorder %s43, %s44
      %p55 = scmp.eq.s32.totalorder %s14, 0
      %p56 = por %p54, %p55
      %p57 = scmp.ne.s32.totalorder %s43, %s44
      %p58 = scmp.eq.s32.totalorder %s15, 1
      %p59 = por %p57, %p58
      %p61 = scmp.ne.s32.totalorder %s44, %s60
      %p62 = scmp.eq.s32.totalorder %s15, 0
      %p63 = por %p61, %p62
      %s65 = sadd.s32 %s64, 1
      %p68 = scmp.eq.s32.totalorder %s9, 1
      %p69 = scmp.ne.s32.totalorder %s64, %s66
      %p70 = scmp.eq.s32.totalorder %s9, 0
      %p71 = por %p69, %p70
      %p72 = scmp.ne.s32.totalorder %s64, %s66
      %p73 = scmp.eq.s32.totalorder %s14, 1
      %p74 = por %p72, %p73
      %p75 = scmp.ne.s32.totalorder %s66, %s67
      %p76 = scmp.eq.s32.totalorder %s14, 0
      %p77 = por %p75, %p76
      %p78 = scmp.ne.s32.totalorder %s66, %s67
      %p79 = scmp.eq.s32.totalorder %s15, 1
      %p80 = por %p78, %p79
      %p82 = scmp.ne.s32.totalorder %s67, %s81
      %p83 = scmp.eq.s32.totalorder %s15, 0
      %p84 = por %p82, %p83
      %s85 = ssub.s32 %s9, %s16
      %p86 = scmp.eq.s32.totalorder %s85, 0
      %s88 = sadd.s32 %s87, 1
      %s89 = scalar_select %p86, %s87, %s88
      %p92 = pneg %p86
      %p93 = scmp.eq.s32.totalorder %s9, 1
      %p94 = por %p92, %p93
      %p95 = scmp.ne.s32.totalorder %s87, %s90
      %p96 = scmp.eq.s32.totalorder %s9, 0
      %p97 = por %p95, %p96
      %p98 = scmp.ne.s32.totalorder %s87, %s90
      %p99 = scmp.eq.s32.totalorder %s14, 1
      %p100 = por %p98, %p99
      %p101 = scmp.ne.s32.totalorder %s90, %s91
      %p102 = scmp.eq.s32.totalorder %s14, 0
      %p103 = por %p101, %p102
      %p104 = scmp.ne.s32.totalorder %s90, %s91
      %p105 = scmp.eq.s32.totalorder %s15, 1
      %p106 = por %p104, %p105
      %p108 = scmp.ne.s32.totalorder %s91, %s107
      %p109 = scmp.eq.s32.totalorder %s15, 0
      %p110 = por %p108, %p109
      %p111 = scmp.le.s32.totalorder 1, %s9
      %p112 = scmp.lt.s32.totalorder %s9, 3
      %p113 = pnand %p111, %p112
      %p114 = pneg %p113
      // Predicated region
      $region9: #{_lambda_.11} parent=5 // pred_check
        _
      $region10: #{_lambda_.11} parent=5 // pred_check_branch
        %116 = sbr.rel (%p113) target = $region12
      $region11: #{_lambda_.11} parent=5 // pred_region
        %s117 = ssub.s32 %s9, 1
        // Predicated region
        $region13: #{_lambda_.11} parent=11 // pred_check
          %p118 = pneg %p30
        $region14: #{_lambda_.11} parent=11 // pred_check_branch
          %120 = sbr.rel (%p118) target = $region16
        $region15: #{_lambda_.11} parent=11 // pred_region
          _
        $region16: #{_lambda_.11} parent=11 // pred_fallthru
          _
        // Predicated region
        $region17: #{_lambda_.11} parent=11 // pred_check
          %p121 = pneg %p77
        $region18: #{_lambda_.11} parent=11 // pred_check_branch
          %123 = sbr.rel (%p121) target = $region20
        $region19: #{_lambda_.11} parent=11 // pred_region
          _
        $region20: #{_lambda_.11} parent=11 // pred_fallthru
          _
      $region12: #{_lambda_.11} parent=5 // pred_fallthru
        _
      %p124 = scmp.lt.s32.totalorder %s9, 2
      // Predicated region
      $region21: #{_lambda_.11} parent=5 // pred_check
        %p125 = pneg %p124
      $region22: #{_lambda_.11} parent=5 // pred_check_branch
        %127 = sbr.rel (%p125) target = $region24
      $region23: #{_lambda_.11} parent=5 // pred_region
        // Predicated region
        $region25: #{_lambda_.11} parent=23 // pred_check
          %p128 = pneg %p50
        $region26: #{_lambda_.11} parent=23 // pred_check_branch
          %130 = sbr.rel (%p128) target = $region28
        $region27: #{_lambda_.11} parent=23 // pred_region
          %s131 = sand.u32 %s40, 1
          %s132 = sand.u32 %s40, 1
          %s133 = smul.addr %s132, 224
          %s134 = scalar_lea.vmem [#allocation2], %s133
          %s135 = smul.u32 4, %s9
          %s136 = smul.addr %s135, 4
          %s137 = scalar_lea.vmem %s1, %s136
          // Predicated region
          $region29: #{_lambda_.11} parent=27 // pred_check
            _
          $region30: #{_lambda_.11} parent=27 // pred_check_branch
            %139 = sbr.rel (0) target = $region32
          $region31: #{_lambda_.11} parent=27 // pred_region
            // Predicated region
            $region33: #{_lambda_.11} parent=31 // pred_check
              _
            $region34: #{_lambda_.11} parent=31 // pred_check_branch
              %141 = sbr.rel (0) target = $region36
            $region35: #{_lambda_.11} parent=31 // pred_region
              loop: start=0, step=1, limit=1
              $region37: #{_lambda_.11} parent=35 // loop_pre_header
                _
              $region38: #{_lambda_.11} parent=35 // loop_header
                %s143 = sphi 0, %s147
                %p144 = scmp.ge.s32.totalorder %s143, 1
                %s148 = sphi %s137, %s137
                %s149 = sphi %s134, %s134
              $region39: #{_lambda_.11} parent=35 // loop_header_branch
                %146 = sbr.rel (%p144) target = $region43
              $region40: #{_lambda_.11} parent=35 // loop_body
                %v150 = vld [vmem:[%s148] sm:$0xff]
                %151 = vst [vmem:[%s149] sm:$0xff] %v150
                %v152 = vld [vmem:[%s148 + $0x8] sm:$0xff]
                %153 = vst [vmem:[%s149 + $0x8] sm:$0xff] %v152
                %v154 = vld [vmem:[%s148 + $0x20] sm:$0xff]
                %155 = vst [vmem:[%s149 + $0x10] sm:$0xff] %v154
                %v156 = vld [vmem:[%s148 + $0x28] sm:$0xff]
                %157 = vst [vmem:[%s149 + $0x18] sm:$0xff] %v156
                %v158 = vld [vmem:[%s148 + $0x40] sm:$0xff]
                %159 = vst [vmem:[%s149 + $0x20] sm:$0xff] %v158
                %v160 = vld [vmem:[%s148 + $0x48] sm:$0xff]
                %161 = vst [vmem:[%s149 + $0x28] sm:$0xff] %v160
                %v162 = vld [vmem:[%s148 + $0x60] sm:$0xff]
                %163 = vst [vmem:[%s149 + $0x30] sm:$0xff] %v162
                %v164 = vld [vmem:[%s148 + $0x68] sm:$0xff]
                %165 = vst [vmem:[%s149 + $0x38] sm:$0xff] %v164
                %v166 = vld [vmem:[%s148 + $0x80] sm:$0xff]
                %167 = vst [vmem:[%s149 + $0x40] sm:$0xff] %v166
                %v168 = vld [vmem:[%s148 + $0x88] sm:$0xff]
                %169 = vst [vmem:[%s149 + $0x48] sm:$0xff] %v168
                %v170 = vld [vmem:[%s148 + $0xa0] sm:$0xff]
                %171 = vst [vmem:[%s149 + $0x50] sm:$0xff] %v170
                %v172 = vld [vmem:[%s148 + $0xa8] sm:$0xff]
                %173 = vst [vmem:[%s149 + $0x58] sm:$0xff] %v172
                %v174 = vld [vmem:[%s148 + $0xc0] sm:$0xff]
                %175 = vst [vmem:[%s149 + $0x60] sm:$0xff] %v174
                %v176 = vld [vmem:[%s148 + $0xc8] sm:$0xff]
                %177 = vst [vmem:[%s149 + $0x68] sm:$0xff] %v176
                %v178 = vld [vmem:[%s148 + $0xe0] sm:$0xff]
                %179 = vst [vmem:[%s149 + $0x70] sm:$0xff] %v178
                %v180 = vld [vmem:[%s148 + $0xe8] sm:$0xff]
                %181 = vst [vmem:[%s149 + $0x78] sm:$0xff] %v180
                %v182 = vld [vmem:[%s148 + $0x100] sm:$0xff]
                %183 = vst [vmem:[%s149 + $0x80] sm:$0xff] %v182
                %v184 = vld [vmem:[%s148 + $0x108] sm:$0xff]
                %185 = vst [vmem:[%s149 + $0x88] sm:$0xff] %v184
                %v186 = vld [vmem:[%s148 + $0x120] sm:$0xff]
                %187 = vst [vmem:[%s149 + $0x90] sm:$0xff] %v186
                %v188 = vld [vmem:[%s148 + $0x128] sm:$0xff]
                %189 = vst [vmem:[%s149 + $0x98] sm:$0xff] %v188
                %v190 = vld [vmem:[%s148 + $0x140] sm:$0xff]
                %191 = vst [vmem:[%s149 + $0xa0] sm:$0xff] %v190
                %v192 = vld [vmem:[%s148 + $0x148] sm:$0xff]
                %193 = vst [vmem:[%s149 + $0xa8] sm:$0xff] %v192
                %v194 = vld [vmem:[%s148 + $0x160] sm:$0xff]
                %195 = vst [vmem:[%s149 + $0xb0] sm:$0xff] %v194
                %v196 = vld [vmem:[%s148 + $0x168] sm:$0xff]
                %197 = vst [vmem:[%s149 + $0xb8] sm:$0xff] %v196
                %v198 = vld [vmem:[%s148 + $0x180] sm:$0xff]
                %199 = vst [vmem:[%s149 + $0xc0] sm:$0xff] %v198
                %v200 = vld [vmem:[%s148 + $0x188] sm:$0xff]
                %201 = vst [vmem:[%s149 + $0xc8] sm:$0xff] %v200
                %v202 = vld [vmem:[%s148 + $0x1a0] sm:$0xff]
                %203 = vst [vmem:[%s149 + $0xd0] sm:$0xff] %v202
                %v204 = vld [vmem:[%s148 + $0x1a8] sm:$0xff]
                %205 = vst [vmem:[%s149 + $0xd8] sm:$0xff] %v204
              $region41: #{_lambda_.11} parent=35 // loop_footer
                %s147 = sadd.s32 1, %s143
              $region42: #{_lambda_.11} parent=35 // loop_footer_branch
                %142 = sbr.rel target = $region38
              $region43: #{_lambda_.11} parent=35 // loop_exit
                _
            $region36: #{_lambda_.11} parent=31 // pred_fallthru
              _
            // Predicated region
            $region44: #{_lambda_.11} parent=31 // pred_check
              _
            $region45: #{_lambda_.11} parent=31 // pred_check_branch
              %207 = sbr.rel target = $region47
            $region46: #{_lambda_.11} parent=31 // pred_region
              _
            $region47: #{_lambda_.11} parent=31 // pred_fallthru
              _
          $region32: #{_lambda_.11} parent=27 // pred_fallthru
            _
          %208 = vnop
        $region28: #{_lambda_.11} parent=23 // pred_fallthru
          _
      $region24: #{_lambda_.11} parent=5 // pred_fallthru
        _
      %p209 = scmp.le.s32.totalorder 1, %s9
      %p210 = scmp.lt.s32.totalorder %s9, 3
      %p211 = pnand %p209, %p210
      %p212 = pneg %p211
      // Predicated region
      $region48: #{_lambda_.11} parent=5 // pred_check
        _
      $region49: #{_lambda_.11} parent=5 // pred_check_branch
        %214 = sbr.rel (%p211) target = $region51
      $region50: #{_lambda_.11} parent=5 // pred_region
        %s215 = ssub.s32 %s9, 1
        %s216 = sand.u32 %s43, 1
        %s217 = sand.u32 %s43, 1
        %s218 = smul.addr %s217, 224
        %s219 = scalar_lea.vmem [#allocation2], %s218
        // Predicated region
        $region52: #{_lambda_.11} parent=50 // pred_check
          %p220 = pneg %p56
        $region53: #{_lambda_.11} parent=50 // pred_check_branch
          %222 = sbr.rel (%p220) target = $region55
        $region54: #{_lambda_.11} parent=50 // pred_region
          _
        $region55: #{_lambda_.11} parent=50 // pred_fallthru
          _
        %p223 = pneg %p30
        %p224 = pneg %p27
        %s225 = sand.u32 %s43, 1
        %s226 = sand.u32 %s43, 1
        %s227 = smul.addr %s226, 224
        %s228 = scalar_lea.vmem [#allocation2], %s227
        %p229 = pneg %p56
        %p230 = pneg %p53
        %p231 = pneg %p77
        %p232 = pneg %p74
        %p233 = pneg %p103
        %p234 = pneg %p100
        %s235 = smul.u32 4, %s14
        %p236 = scmp.lt.s32.totalorder %s235, 7
        %s237 = scalar_select %p236, %s235, 7
        %s238 = smul.addr %s237, 2
        %s239 = scalar_lea.vmem %s3, %s238
        %s240 = smul.u32 4, %s14
        %s241 = smul.u32 4, %s14
        %p242 = scmp.lt.s32.totalorder %s241, 7
        %s243 = scalar_select %p242, %s241, 7
        %s244 = smul.addr %s243, 2
        %s245 = scalar_lea.vmem %s3, %s244
        %s246 = smul.u32 4, %s14
        %v248 = vld [vmem:[%s0] sm:$0x1]
        %v249 = vld [vmem:[%s219] sm:$0xff]
        %v250 = vld [vmem:[%s219 + $0x8] sm:$0xff]
        %v251 = vld [vmem:[%s219 + $0x10] sm:$0xff]
        %v252 = vld [vmem:[%s219 + $0x18] sm:$0xff]
        %v253 = vld [vmem:[%s219 + $0x20] sm:$0xff]
        %v254 = vld [vmem:[%s219 + $0x28] sm:$0xff]
        %v255 = vld [vmem:[%s219 + $0x30] sm:$0xff]
        %v256 = vld [vmem:[%s219 + $0x38] sm:$0xff]
        %v257 = vld [vmem:[%s219 + $0x40] sm:$0xff]
        %v258 = vld [vmem:[%s219 + $0x48] sm:$0xff]
        %v259 = vld [vmem:[%s219 + $0x50] sm:$0xff]
        %v260 = vld [vmem:[%s219 + $0x58] sm:$0xff]
        %v261 = vld [vmem:[%s219 + $0x60] sm:$0xff]
        %v262 = vld [vmem:[%s219 + $0x68] sm:$0xff]
        %v263 = vld [vmem:[%s219 + $0x70] sm:$0xff]
        %v264 = vld [vmem:[%s219 + $0x78] sm:$0xff]
        %v265 = vld [vmem:[%s219 + $0x80] sm:$0xff]
        %v266 = vld [vmem:[%s219 + $0x88] sm:$0xff]
        %v267 = vld [vmem:[%s219 + $0x90] sm:$0xff]
        %v268 = vld [vmem:[%s219 + $0x98] sm:$0xff]
        %v269 = vld [vmem:[%s219 + $0xa0] sm:$0xff]
        %v270 = vld [vmem:[%s219 + $0xa8] sm:$0xff]
        %v271 = vld [vmem:[%s219 + $0xb0] sm:$0xff]
        %v272 = vld [vmem:[%s219 + $0xb8] sm:$0xff]
        %v273 = vld [vmem:[%s219 + $0xc0] sm:$0xff]
        %v274 = vld [vmem:[%s219 + $0xc8] sm:$0xff]
        %v275 = vld [vmem:[%s219 + $0xd0] sm:$0xff]
        %v276 = vld [vmem:[%s219 + $0xd8] sm:$0xff]
        %v277 = vld [vmem:[%s2] sm:$0x3]
        %279 = vset.pattern.permute.xlu0 0
        %280 = vperm.xlu0 %279, %v277
        %v281 = vpop.permute.xlu0 %280
        %v311 = vunpack.c.l.b16 %v249
        %v312 = vunpack.c.h.b16 %v249
        %v313 = vunpack.c.l.b16 %v250
        %v314 = vunpack.c.h.b16 %v250
        %v315 = vunpack.c.l.b16 %v251
        %v316 = vunpack.c.h.b16 %v251
        %v317 = vunpack.c.l.b16 %v252
        %v318 = vunpack.c.h.b16 %v252
        %v319 = vunpack.c.l.b16 %v253
        %v320 = vunpack.c.h.b16 %v253
        %v321 = vunpack.c.l.b16 %v254
        %v322 = vunpack.c.h.b16 %v254
        %v323 = vunpack.c.l.b16 %v255
        %v324 = vunpack.c.h.b16 %v255
        %v325 = vunpack.c.l.b16 %v256
        %v326 = vunpack.c.h.b16 %v256
        %v327 = vunpack.c.l.b16 %v257
        %v328 = vunpack.c.h.b16 %v257
        %v329 = vunpack.c.l.b16 %v258
        %v330 = vunpack.c.h.b16 %v258
        %v331 = vunpack.c.l.b16 %v259
        %v332 = vunpack.c.h.b16 %v259
        %v333 = vunpack.c.l.b16 %v260
        %v334 = vunpack.c.h.b16 %v260
        %v335 = vunpack.c.l.b16 %v261
        %v336 = vunpack.c.h.b16 %v261
        %v337 = vunpack.c.l.b16 %v262
        %v338 = vunpack.c.h.b16 %v262
        %v339 = vunpack.c.l.b16 %v263
        %v340 = vunpack.c.h.b16 %v263
        %v341 = vunpack.c.l.b16 %v264
        %v342 = vunpack.c.h.b16 %v264
        %v343 = vunpack.c.l.b16 %v265
        %v344 = vunpack.c.h.b16 %v265
        %v345 = vunpack.c.l.b16 %v266
        %v346 = vunpack.c.h.b16 %v266
        %v347 = vunpack.c.l.b16 %v267
        %v348 = vunpack.c.h.b16 %v267
        %v349 = vunpack.c.l.b16 %v268
        %v350 = vunpack.c.h.b16 %v268
        %v351 = vunpack.c.l.b16 %v269
        %v352 = vunpack.c.h.b16 %v269
        %v353 = vunpack.c.l.b16 %v270
        %v354 = vunpack.c.h.b16 %v270
        %v355 = vunpack.c.l.b16 %v271
        %v356 = vunpack.c.h.b16 %v271
        %v357 = vunpack.c.l.b16 %v272
        %v358 = vunpack.c.h.b16 %v272
        %v359 = vunpack.c.l.b16 %v273
        %v360 = vunpack.c.h.b16 %v273
        %v361 = vunpack.c.l.b16 %v274
        %v362 = vunpack.c.h.b16 %v274
        %v363 = vunpack.c.l.b16 %v275
        %v364 = vunpack.c.h.b16 %v275
        %v365 = vunpack.c.l.b16 %v276
        %v366 = vunpack.c.h.b16 %v276
        %v367 = vpack.c.b16 %v315, %v311
        %v368 = vpack.c.b16 %v316, %v312
        %v369 = vpack.c.b16 %v317, %v313
        %v370 = vpack.c.b16 %v318, %v314
        %v371 = vpack.c.b16 %v323, %v319
        %v372 = vpack.c.b16 %v324, %v320
        %v373 = vpack.c.b16 %v325, %v321
        %v374 = vpack.c.b16 %v326, %v322
        %v375 = vpack.c.b16 %v331, %v327
        %v376 = vpack.c.b16 %v332, %v328
        %v377 = vpack.c.b16 %v333, %v329
        %v378 = vpack.c.b16 %v334, %v330
        %v379 = vpack.c.b16 %v339, %v335
        %v380 = vpack.c.b16 %v340, %v336
        %v381 = vpack.c.b16 %v341, %v337
        %v382 = vpack.c.b16 %v342, %v338
        %v383 = vpack.c.b16 %v347, %v343
        %v384 = vpack.c.b16 %v348, %v344
        %v385 = vpack.c.b16 %v349, %v345
        %v386 = vpack.c.b16 %v350, %v346
        %v387 = vpack.c.b16 %v355, %v351
        %v388 = vpack.c.b16 %v356, %v352
        %v389 = vpack.c.b16 %v357, %v353
        %v390 = vpack.c.b16 %v358, %v354
        %v391 = vpack.c.b16 %v363, %v359
        %v392 = vpack.c.b16 %v364, %v360
        %v393 = vpack.c.b16 %v365, %v361
        %v394 = vpack.c.b16 %v366, %v362
        %vm423 = vcmask 916480
        %v425 = vsel %vm423, %v248, 0
        %427 = vmatprep.subr.bf16.mxu0 %v368
        %428 = vmatpush1.bf16.msra.mxu0 %v367
        %429 = vmatprep.subr.bf16.mxu0 %v372
        %430 = vmatpush1.bf16.msra.mxu0 %v371
        %431 = vmatprep.subr.bf16.mxu0 %v376
        %432 = vmatpush1.bf16.msra.mxu0 %v375
        %433 = vmatprep.subr.bf16.mxu0 %v380
        %434 = vmatpush1.bf16.msra.mxu0 %v379
        %435 = vmatprep.subr.bf16.mxu0 %v384
        %436 = vmatpush1.bf16.msra.mxu0 %v383
        %437 = vmatprep.subr.bf16.mxu0 %v388
        %438 = vmatpush1.bf16.msra.mxu0 %v387
        %439 = vmatprep.subr.bf16.mxu0 %v392
        %440 = vmatpush1.bf16.msra.mxu0 %v391
        %441 = vmatprep.subr.bf16.mxu0 0
        %442 = vmatpush1.bf16.msra.mxu0 0
        %443 = vmatprep.subr.bf16.mxu0 0
        %444 = vmatpush1.bf16.msra.mxu0 0
        %445 = vmatprep.subr.bf16.mxu0 0
        %446 = vmatpush1.bf16.msra.mxu0 0
        %447 = vmatprep.subr.bf16.mxu0 0
        %448 = vmatpush1.bf16.msra.mxu0 0
        %449 = vmatprep.subr.bf16.mxu0 0
        %450 = vmatpush1.bf16.msra.mxu0 0
        %451 = vmatprep.subr.bf16.mxu0 0
        %452 = vmatpush1.bf16.msra.mxu0 0
        %453 = vmatprep.subr.bf16.mxu0 0
        %454 = vmatpush1.bf16.msra.mxu0 0
        %455 = vmatprep.subr.bf16.mxu0 0
        %456 = vmatpush1.bf16.msra.mxu0 0
        %457 = vmatprep.subr.bf16.mxu0 0
        %458 = vmatpush1.bf16.msra.mxu0 0
        %459 = vmatprep.mubr.bf16.mxu0 0
        %460 = vmatmul.mubr.bf16.gmra.mrb[0].mxu0 %v425
        %v461 = vpop.f32.mrb[0].mxu0
        %v462 = vadd.f32 %v281, %v461
        %v463 = vpop.f32.mrb[0].mxu0
        %v464 = vadd.f32 %v281, %v463
        %v465 = vpop.f32.mrb[0].mxu0
        %v466 = vpop.f32.mrb[0].mxu0
        %467 = vdwg.mxu0
        %468 = vmatprep.subr.bf16.mxu0 %v370
        %469 = vmatpush1.bf16.msra.mxu0 %v369
        %470 = vmatprep.subr.bf16.mxu0 %v374
        %471 = vmatpush1.bf16.msra.mxu0 %v373
        %472 = vmatprep.subr.bf16.mxu0 %v378
        %473 = vmatpush1.bf16.msra.mxu0 %v377
        %474 = vmatprep.subr.bf16.mxu0 %v382
        %475 = vmatpush1.bf16.msra.mxu0 %v381
        %476 = vmatprep.subr.bf16.mxu0 %v386
        %477 = vmatpush1.bf16.msra.mxu0 %v385
        %478 = vmatprep.subr.bf16.mxu0 %v390
        %479 = vmatpush1.bf16.msra.mxu0 %v389
        %480 = vmatprep.subr.bf16.mxu0 %v394
        %481 = vmatpush1.bf16.msra.mxu0 %v393
        %482 = vmatprep.subr.bf16.mxu0 0
        %483 = vmatpush1.bf16.msra.mxu0 0
        %484 = vmatprep.subr.bf16.mxu0 0
        %485 = vmatpush1.bf16.msra.mxu0 0
        %486 = vmatprep.subr.bf16.mxu0 0
        %487 = vmatpush1.bf16.msra.mxu0 0
        %488 = vmatprep.subr.bf16.mxu0 0
        %489 = vmatpush1.bf16.msra.mxu0 0
        %490 = vmatprep.subr.bf16.mxu0 0
        %491 = vmatpush1.bf16.msra.mxu0 0
        %492 = vmatprep.subr.bf16.mxu0 0
        %493 = vmatpush1.bf16.msra.mxu0 0
        %494 = vmatprep.subr.bf16.mxu0 0
        %495 = vmatpush1.bf16.msra.mxu0 0
        %496 = vmatprep.subr.bf16.mxu0 0
        %497 = vmatpush1.bf16.msra.mxu0 0
        %498 = vmatprep.subr.bf16.mxu0 0
        %499 = vmatpush1.bf16.msra.mxu0 0
        %500 = vmatprep.mubr.bf16.mxu0 0
        %501 = vmatmul.mubr.bf16.gmra.mrb[0].mxu0 %v425
        %v502 = vpop.f32.mrb[0].mxu0
        %v503 = vadd.f32 %v281, %v502
        %v504 = vpop.f32.mrb[0].mxu0
        %v505 = vadd.f32 %v281, %v504
        %v506 = vpop.f32.mrb[0].mxu0
        %v507 = vpop.f32.mrb[0].mxu0
        %508 = vdwg.mxu0
        %v509 = vmax.f32 %v462, 0.0
        %v510 = vmax.f32 %v464, 0.0
        %v511 = vmax.f32 %v503, 0.0
        %v512 = vmax.f32 %v505, 0.0
        %v517 = vcombine.low %v509, %v510
        %v518 = vcombine.low %v511, %v512
        %v520 = vunpack.c.l.s4 1983009808
        %v521 = vunpack.c.0.s8 %v520
        %v522 = vlaneseq
        %v523 = vshrl.u32 %v522, 7
        %v524 = vsub.s32 %v521, %v523
        %v525 = vrot.slane %v517, %v524
        %v527 = vunpack.c.l.s4 1983009808
        %v528 = vunpack.c.0.s8 %v527
        %v529 = vlaneseq
        %v530 = vshrl.u32 %v529, 7
        %v531 = vsub.s32 %v528, %v530
        %v532 = vrot.slane %v518, %v531
        %v533 = vcombine.low %v525, %v532
        %535 = vst [vmem:[%s245] sm:$0xff] %v533
        %s536 = smul.u32 4, %s14
        %p537 = scmp.lt.s32.totalorder %s536, 7
        %s538 = scalar_select %p537, %s536, 7
        %s539 = smul.addr %s538, 2
        %s540 = scalar_lea.vmem %s3, %s539
        // Predicated region
        $region56: #{_lambda_.11} parent=50 // pred_check
          %p541 = pneg %p100
        $region57: #{_lambda_.11} parent=50 // pred_check_branch
          %543 = sbr.rel (%p541) target = $region59
        $region58: #{_lambda_.11} parent=50 // pred_region
          %s544 = smul.u32 4, %s14
        $region59: #{_lambda_.11} parent=50 // pred_fallthru
          _
      $region51: #{_lambda_.11} parent=5 // pred_fallthru
        _
      %p545 = scmp.le.s32.totalorder 2, %s9
      // Predicated region
      $region60: #{_lambda_.11} parent=5 // pred_check
        %p546 = pneg %p545
      $region61: #{_lambda_.11} parent=5 // pred_check_branch
        %548 = sbr.rel (%p546) target = $region63
      $region62: #{_lambda_.11} parent=5 // pred_region
        %s549 = ssub.s32 %s9, 2
        // Predicated region
        $region64: #{_lambda_.11} parent=62 // pred_check
          %p550 = pneg %p106
        $region65: #{_lambda_.11} parent=62 // pred_check_branch
          %552 = sbr.rel (%p550) target = $region67
        $region66: #{_lambda_.11} parent=62 // pred_region
          %s553 = smul.u32 4, %s15
          %p554 = scmp.lt.s32.totalorder %s553, 7
          %s555 = scalar_select %p554, %s553, 7
          %s556 = smul.addr %s555, 2
          %s557 = scalar_lea.vmem %s3, %s556
        $region67: #{_lambda_.11} parent=62 // pred_fallthru
          _
      $region63: #{_lambda_.11} parent=5 // pred_fallthru
        _
    $region6: #{_lambda_.11} parent=1 // loop_footer
      %s13 = sadd.s32 1, %s9
    $region7: #{_lambda_.11} parent=1 // loop_footer_branch
      %8 = sbr.rel target = $region3
    $region8: #{_lambda_.11} parent=1 // loop_exit
      _

// kernel: _lambda_.20
$region0: #{_lambda_.20}
  #allocation0 [shape = 'u32[]', space=smem, size = 0x4, offset = 0x4, fixed_abs, tag = 'smem constant byte address 0x4 - core index']
  #allocation1 [shape = 'u32[144,128]{1,0:T(1,128)}', space=vmem, size = 0x12000, scoped, tag = 'internal scratch']
  %s0 = inlined_call_operand.vmem [shape: bf16[2,112], index: 0, kind: input, shape index: {}]
  %s1 = inlined_call_operand.vmem [shape: bf16[112,1024], index: 1, kind: input, shape index: {}]
  %s2 = inlined_call_operand.vmem [shape: f32[2,1], index: 2, kind: input, shape index: {}]
  %s3 = inlined_call_operand.vmem [shape: f32[2,1024], index: 3, kind: input, shape index: {}]
  %s4 = inlined_call_operand.vmem [shape: f32[2,1024], index: 4, kind: output, shape index: {}]
  %s5 = sld [smem:[#allocation0]]
  $region72: #{_lambda_.20} parent=0
    _
  %s7 = ssub.s32 1, %s5
  %s8 = scalar_select 0, %s7, %s5
  $region1: #{_lambda_.20} parent=0
    #allocation2 [shape = 'u8[229376]{0}', space=vmem, size = 0x38000, scoped, tag = 'input window, operand 1']
    loop: start=0, step=1, limit=4
    $region2: #{_lambda_.20} parent=1 // loop_pre_header
      _
    $region3: #{_lambda_.20} parent=1 // loop_header
      %s10 = sphi 0, %s14
      %p11 = scmp.ge.s32.totalorder %s10, 4
      %s18 = sphi 0, %s18
      %s20 = sphi 0, %s18
      %s21 = sphi 0, %s20
      %s35 = sphi 0, %s21
      %s41 = sphi 0, %s43
      %s44 = sphi 0, %s41
      %s45 = sphi 0, %s44
      %s61 = sphi 0, %s45
      %s65 = sphi 0, %s65
      %s67 = sphi 0, %s65
      %s68 = sphi 0, %s67
      %s82 = sphi 0, %s68
      %s88 = sphi 0, %s90
      %s91 = sphi 0, %s88
      %s92 = sphi 0, %s91
      %s108 = sphi 0, %s92
      %s114 = sphi 0, %s116
      %s117 = sphi 0, %s114
      %s118 = sphi 0, %s117
      %s134 = sphi 0, %s118
    $region4: #{_lambda_.20} parent=1 // loop_header_branch
      %13 = sbr.rel (%p11) target = $region8
    $region5: #{_lambda_.20} parent=1 // loop_body
      %s15 = ssub.s32 %s10, 1
      %s16 = ssub.s32 %s10, 2
      %s17 = sadd.s32 %s10, 1
      %s19 = sadd.s32 %s18, 1
      %p22 = scmp.eq.s32.totalorder %s10, 1
      %p23 = scmp.ne.s32.totalorder %s18, %s20
      %p24 = scmp.eq.s32.totalorder %s10, 0
      %p25 = por %p23, %p24
      %p26 = scmp.ne.s32.totalorder %s18, %s20
      %p27 = scmp.eq.s32.totalorder %s15, 1
      %p28 = por %p26, %p27
      %p29 = scmp.ne.s32.totalorder %s20, %s21
      %p30 = scmp.eq.s32.totalorder %s15, 0
      %p31 = por %p29, %p30
      %p32 = scmp.ne.s32.totalorder %s20, %s21
      %p33 = scmp.eq.s32.totalorder %s16, 1
      %p34 = por %p32, %p33
      %p36 = scmp.ne.s32.totalorder %s21, %s35
      %p37 = scmp.eq.s32.totalorder %s16, 0
      %p38 = por %p36, %p37
      %s39 = ssub.s32 %s10, %s17
      %p40 = scmp.eq.s32.totalorder %s39, 0
      %s42 = sadd.s32 %s41, 1
      %s43 = scalar_select %p40, %s41, %s42
      %p46 = pneg %p40
      %p47 = scmp.eq.s32.totalorder %s10, 1
      %p48 = por %p46, %p47
      %p49 = scmp.ne.s32.totalorder %s41, %s44
      %p50 = scmp.eq.s32.totalorder %s10, 0
      %p51 = por %p49, %p50
      %p52 = scmp.ne.s32.totalorder %s41, %s44
      %p53 = scmp.eq.s32.totalorder %s15, 1
      %p54 = por %p52, %p53
      %p55 = scmp.ne.s32.totalorder %s44, %s45
      %p56 = scmp.eq.s32.totalorder %s15, 0
      %p57 = por %p55, %p56
      %p58 = scmp.ne.s32.totalorder %s44, %s45
      %p59 = scmp.eq.s32.totalorder %s16, 1
      %p60 = por %p58, %p59
      %p62 = scmp.ne.s32.totalorder %s45, %s61
      %p63 = scmp.eq.s32.totalorder %s16, 0
      %p64 = por %p62, %p63
      %s66 = sadd.s32 %s65, 1
      %p69 = scmp.eq.s32.totalorder %s10, 1
      %p70 = scmp.ne.s32.totalorder %s65, %s67
      %p71 = scmp.eq.s32.totalorder %s10, 0
      %p72 = por %p70, %p71
      %p73 = scmp.ne.s32.totalorder %s65, %s67
      %p74 = scmp.eq.s32.totalorder %s15, 1
      %p75 = por %p73, %p74
      %p76 = scmp.ne.s32.totalorder %s67, %s68
      %p77 = scmp.eq.s32.totalorder %s15, 0
      %p78 = por %p76, %p77
      %p79 = scmp.ne.s32.totalorder %s67, %s68
      %p80 = scmp.eq.s32.totalorder %s16, 1
      %p81 = por %p79, %p80
      %p83 = scmp.ne.s32.totalorder %s68, %s82
      %p84 = scmp.eq.s32.totalorder %s16, 0
      %p85 = por %p83, %p84
      %s86 = ssub.s32 %s10, %s17
      %p87 = scmp.eq.s32.totalorder %s86, 0
      %s89 = sadd.s32 %s88, 1
      %s90 = scalar_select %p87, %s88, %s89
      %p93 = pneg %p87
      %p94 = scmp.eq.s32.totalorder %s10, 1
      %p95 = por %p93, %p94
      %p96 = scmp.ne.s32.totalorder %s88, %s91
      %p97 = scmp.eq.s32.totalorder %s10, 0
      %p98 = por %p96, %p97
      %p99 = scmp.ne.s32.totalorder %s88, %s91
      %p100 = scmp.eq.s32.totalorder %s15, 1
      %p101 = por %p99, %p100
      %p102 = scmp.ne.s32.totalorder %s91, %s92
      %p103 = scmp.eq.s32.totalorder %s15, 0
      %p104 = por %p102, %p103
      %p105 = scmp.ne.s32.totalorder %s91, %s92
      %p106 = scmp.eq.s32.totalorder %s16, 1
      %p107 = por %p105, %p106
      %p109 = scmp.ne.s32.totalorder %s92, %s108
      %p110 = scmp.eq.s32.totalorder %s16, 0
      %p111 = por %p109, %p110
      %s112 = ssub.s32 %s10, %s17
      %p113 = scmp.eq.s32.totalorder %s112, 0
      %s115 = sadd.s32 %s114, 1
      %s116 = scalar_select %p113, %s114, %s115
      %p119 = pneg %p113
      %p120 = scmp.eq.s32.totalorder %s10, 1
      %p121 = por %p119, %p120
      %p122 = scmp.ne.s32.totalorder %s114, %s117
      %p123 = scmp.eq.s32.totalorder %s10, 0
      %p124 = por %p122, %p123
      %p125 = scmp.ne.s32.totalorder %s114, %s117
      %p126 = scmp.eq.s32.totalorder %s15, 1
      %p127 = por %p125, %p126
      %p128 = scmp.ne.s32.totalorder %s117, %s118
      %p129 = scmp.eq.s32.totalorder %s15, 0
      %p130 = por %p128, %p129
      %p131 = scmp.ne.s32.totalorder %s117, %s118
      %p132 = scmp.eq.s32.totalorder %s16, 1
      %p133 = por %p131, %p132
      %p135 = scmp.ne.s32.totalorder %s118, %s134
      %p136 = scmp.eq.s32.totalorder %s16, 0
      %p137 = por %p135, %p136
      %p138 = scmp.le.s32.totalorder 1, %s10
      %p139 = scmp.lt.s32.totalorder %s10, 3
      %p140 = pnand %p138, %p139
      %p141 = pneg %p140
      // Predicated region
      $region9: #{_lambda_.20} parent=5 // pred_check
        _
      $region10: #{_lambda_.20} parent=5 // pred_check_branch
        %143 = sbr.rel (%p140) target = $region12
      $region11: #{_lambda_.20} parent=5 // pred_region
        %s144 = ssub.s32 %s10, 1
        // Predicated region
        $region13: #{_lambda_.20} parent=11 // pred_check
          %p145 = pneg %p31
        $region14: #{_lambda_.20} parent=11 // pred_check_branch
          %147 = sbr.rel (%p145) target = $region16
        $region15: #{_lambda_.20} parent=11 // pred_region
          _
        $region16: #{_lambda_.20} parent=11 // pred_fallthru
          _
        // Predicated region
        $region17: #{_lambda_.20} parent=11 // pred_check
          %p148 = pneg %p78
        $region18: #{_lambda_.20} parent=11 // pred_check_branch
          %150 = sbr.rel (%p148) target = $region20
        $region19: #{_lambda_.20} parent=11 // pred_region
          _
        $region20: #{_lambda_.20} parent=11 // pred_fallthru
          _
      $region12: #{_lambda_.20} parent=5 // pred_fallthru
        _
      %p151 = scmp.lt.s32.totalorder %s10, 2
      // Predicated region
      $region21: #{_lambda_.20} parent=5 // pred_check
        %p152 = pneg %p151
      $region22: #{_lambda_.20} parent=5 // pred_check_branch
        %154 = sbr.rel (%p152) target = $region24
      $region23: #{_lambda_.20} parent=5 // pred_region
        // Predicated region
        $region25: #{_lambda_.20} parent=23 // pred_check
          %p155 = pneg %p51
        $region26: #{_lambda_.20} parent=23 // pred_check_branch
          %157 = sbr.rel (%p155) target = $region28
        $region27: #{_lambda_.20} parent=23 // pred_region
          %s158 = sand.u32 %s41, 1
          %s159 = sand.u32 %s41, 1
          %s160 = smul.addr %s159, 224
          %s161 = scalar_lea.vmem [#allocation2], %s160
          %s162 = smul.u32 4, %s10
          %s163 = smul.addr %s162, 4
          %s164 = scalar_lea.vmem %s1, %s163
          // Predicated region
          $region29: #{_lambda_.20} parent=27 // pred_check
            _
          $region30: #{_lambda_.20} parent=27 // pred_check_branch
            %166 = sbr.rel (0) target = $region32
          $region31: #{_lambda_.20} parent=27 // pred_region
            // Predicated region
            $region33: #{_lambda_.20} parent=31 // pred_check
              _
            $region34: #{_lambda_.20} parent=31 // pred_check_branch
              %168 = sbr.rel (0) target = $region36
            $region35: #{_lambda_.20} parent=31 // pred_region
              loop: start=0, step=1, limit=1
              $region37: #{_lambda_.20} parent=35 // loop_pre_header
                _
              $region38: #{_lambda_.20} parent=35 // loop_header
                %s170 = sphi 0, %s174
                %p171 = scmp.ge.s32.totalorder %s170, 1
                %s175 = sphi %s164, %s164
                %s176 = sphi %s161, %s161
              $region39: #{_lambda_.20} parent=35 // loop_header_branch
                %173 = sbr.rel (%p171) target = $region43
              $region40: #{_lambda_.20} parent=35 // loop_body
                %v177 = vld [vmem:[%s175] sm:$0xff]
                %178 = vst [vmem:[%s176] sm:$0xff] %v177
                %v179 = vld [vmem:[%s175 + $0x8] sm:$0xff]
                %180 = vst [vmem:[%s176 + $0x8] sm:$0xff] %v179
                %v181 = vld [vmem:[%s175 + $0x20] sm:$0xff]
                %182 = vst [vmem:[%s176 + $0x10] sm:$0xff] %v181
                %v183 = vld [vmem:[%s175 + $0x28] sm:$0xff]
                %184 = vst [vmem:[%s176 + $0x18] sm:$0xff] %v183
                %v185 = vld [vmem:[%s175 + $0x40] sm:$0xff]
                %186 = vst [vmem:[%s176 + $0x20] sm:$0xff] %v185
                %v187 = vld [vmem:[%s175 + $0x48] sm:$0xff]
                %188 = vst [vmem:[%s176 + $0x28] sm:$0xff] %v187
                %v189 = vld [vmem:[%s175 + $0x60] sm:$0xff]
                %190 = vst [vmem:[%s176 + $0x30] sm:$0xff] %v189
                %v191 = vld [vmem:[%s175 + $0x68] sm:$0xff]
                %192 = vst [vmem:[%s176 + $0x38] sm:$0xff] %v191
                %v193 = vld [vmem:[%s175 + $0x80] sm:$0xff]
                %194 = vst [vmem:[%s176 + $0x40] sm:$0xff] %v193
                %v195 = vld [vmem:[%s175 + $0x88] sm:$0xff]
                %196 = vst [vmem:[%s176 + $0x48] sm:$0xff] %v195
                %v197 = vld [vmem:[%s175 + $0xa0] sm:$0xff]
                %198 = vst [vmem:[%s176 + $0x50] sm:$0xff] %v197
                %v199 = vld [vmem:[%s175 + $0xa8] sm:$0xff]
                %200 = vst [vmem:[%s176 + $0x58] sm:$0xff] %v199
                %v201 = vld [vmem:[%s175 + $0xc0] sm:$0xff]
                %202 = vst [vmem:[%s176 + $0x60] sm:$0xff] %v201
                %v203 = vld [vmem:[%s175 + $0xc8] sm:$0xff]
                %204 = vst [vmem:[%s176 + $0x68] sm:$0xff] %v203
                %v205 = vld [vmem:[%s175 + $0xe0] sm:$0xff]
                %206 = vst [vmem:[%s176 + $0x70] sm:$0xff] %v205
                %v207 = vld [vmem:[%s175 + $0xe8] sm:$0xff]
                %208 = vst [vmem:[%s176 + $0x78] sm:$0xff] %v207
                %v209 = vld [vmem:[%s175 + $0x100] sm:$0xff]
                %210 = vst [vmem:[%s176 + $0x80] sm:$0xff] %v209
                %v211 = vld [vmem:[%s175 + $0x108] sm:$0xff]
                %212 = vst [vmem:[%s176 + $0x88] sm:$0xff] %v211
                %v213 = vld [vmem:[%s175 + $0x120] sm:$0xff]
                %214 = vst [vmem:[%s176 + $0x90] sm:$0xff] %v213
                %v215 = vld [vmem:[%s175 + $0x128] sm:$0xff]
                %216 = vst [vmem:[%s176 + $0x98] sm:$0xff] %v215
                %v217 = vld [vmem:[%s175 + $0x140] sm:$0xff]
                %218 = vst [vmem:[%s176 + $0xa0] sm:$0xff] %v217
                %v219 = vld [vmem:[%s175 + $0x148] sm:$0xff]
                %220 = vst [vmem:[%s176 + $0xa8] sm:$0xff] %v219
                %v221 = vld [vmem:[%s175 + $0x160] sm:$0xff]
                %222 = vst [vmem:[%s176 + $0xb0] sm:$0xff] %v221
                %v223 = vld [vmem:[%s175 + $0x168] sm:$0xff]
                %224 = vst [vmem:[%s176 + $0xb8] sm:$0xff] %v223
                %v225 = vld [vmem:[%s175 + $0x180] sm:$0xff]
                %226 = vst [vmem:[%s176 + $0xc0] sm:$0xff] %v225
                %v227 = vld [vmem:[%s175 + $0x188] sm:$0xff]
                %228 = vst [vmem:[%s176 + $0xc8] sm:$0xff] %v227
                %v229 = vld [vmem:[%s175 + $0x1a0] sm:$0xff]
                %230 = vst [vmem:[%s176 + $0xd0] sm:$0xff] %v229
                %v231 = vld [vmem:[%s175 + $0x1a8] sm:$0xff]
                %232 = vst [vmem:[%s176 + $0xd8] sm:$0xff] %v231
              $region41: #{_lambda_.20} parent=35 // loop_footer
                %s174 = sadd.s32 1, %s170
              $region42: #{_lambda_.20} parent=35 // loop_footer_branch
                %169 = sbr.rel target = $region38
              $region43: #{_lambda_.20} parent=35 // loop_exit
                _
            $region36: #{_lambda_.20} parent=31 // pred_fallthru
              _
            // Predicated region
            $region44: #{_lambda_.20} parent=31 // pred_check
              _
            $region45: #{_lambda_.20} parent=31 // pred_check_branch
              %234 = sbr.rel target = $region47
            $region46: #{_lambda_.20} parent=31 // pred_region
              _
            $region47: #{_lambda_.20} parent=31 // pred_fallthru
              _
          $region32: #{_lambda_.20} parent=27 // pred_fallthru
            _
          %235 = vnop
        $region28: #{_lambda_.20} parent=23 // pred_fallthru
          _
        // Predicated region
        $region48: #{_lambda_.20} parent=23 // pred_check
          %p236 = pneg %p98
        $region49: #{_lambda_.20} parent=23 // pred_check_branch
          %238 = sbr.rel (%p236) target = $region51
        $region50: #{_lambda_.20} parent=23 // pred_region
          %s239 = smul.u32 4, %s10
          %p240 = scmp.lt.s32.totalorder %s239, 7
          %s241 = scalar_select %p240, %s239, 7
          %s242 = smul.addr %s241, 2
          %s243 = scalar_lea.vmem %s3, %s242
          %s244 = smul.u32 4, %s10
        $region51: #{_lambda_.20} parent=23 // pred_fallthru
          _
      $region24: #{_lambda_.20} parent=5 // pred_fallthru
        _
      %p245 = scmp.le.s32.totalorder 1, %s10
      %p246 = scmp.lt.s32.totalorder %s10, 3
      %p247 = pnand %p245, %p246
      %p248 = pneg %p247
      // Predicated region
      $region52: #{_lambda_.20} parent=5 // pred_check
        _
      $region53: #{_lambda_.20} parent=5 // pred_check_branch
        %250 = sbr.rel (%p247) target = $region55
      $region54: #{_lambda_.20} parent=5 // pred_region
        %s251 = ssub.s32 %s10, 1
        %s252 = sand.u32 %s44, 1
        %s253 = sand.u32 %s44, 1
        %s254 = smul.addr %s253, 224
        %s255 = scalar_lea.vmem [#allocation2], %s254
        // Predicated region
        $region56: #{_lambda_.20} parent=54 // pred_check
          %p256 = pneg %p57
        $region57: #{_lambda_.20} parent=54 // pred_check_branch
          %258 = sbr.rel (%p256) target = $region59
        $region58: #{_lambda_.20} parent=54 // pred_region
          _
        $region59: #{_lambda_.20} parent=54 // pred_fallthru
          _
        %p259 = pneg %p31
        %p260 = pneg %p28
        %s261 = sand.u32 %s44, 1
        %s262 = sand.u32 %s44, 1
        %s263 = smul.addr %s262, 224
        %s264 = scalar_lea.vmem [#allocation2], %s263
        %p265 = pneg %p57
        %p266 = pneg %p54
        %p267 = pneg %p78
        %p268 = pneg %p75
        %s269 = smul.u32 4, %s15
        %p270 = scmp.lt.s32.totalorder %s269, 7
        %s271 = scalar_select %p270, %s269, 7
        %s272 = smul.addr %s271, 2
        %s273 = scalar_lea.vmem %s3, %s272
        %p274 = pneg %p104
        %p275 = pneg %p101
        %p276 = pneg %p130
        %p277 = pneg %p127
        %s278 = smul.u32 4, %s15
        %p279 = scmp.lt.s32.totalorder %s278, 7
        %s280 = scalar_select %p279, %s278, 7
        %s281 = smul.addr %s280, 2
        %s282 = scalar_lea.vmem %s4, %s281
        %s283 = smul.u32 4, %s15
        %s284 = smul.u32 4, %s15
        %p285 = scmp.lt.s32.totalorder %s284, 7
        %s286 = scalar_select %p285, %s284, 7
        %s287 = smul.addr %s286, 2
        %s288 = scalar_lea.vmem %s3, %s287
        %s289 = smul.u32 4, %s15
        %s290 = smul.u32 4, %s15
        %p291 = scmp.lt.s32.totalorder %s290, 7
        %s292 = scalar_select %p291, %s290, 7
        %s293 = smul.addr %s292, 2
        %s294 = scalar_lea.vmem %s4, %s293
        %s295 = smul.u32 4, %s15
        %v297 = vld [vmem:[%s0] sm:$0x1]
        %v298 = vld [vmem:[%s255] sm:$0xff]
        %v299 = vld [vmem:[%s255 + $0x8] sm:$0xff]
        %v300 = vld [vmem:[%s255 + $0x10] sm:$0xff]
        %v301 = vld [vmem:[%s255 + $0x18] sm:$0xff]
        %v302 = vld [vmem:[%s255 + $0x20] sm:$0xff]
        %v303 = vld [vmem:[%s255 + $0x28] sm:$0xff]
        %v304 = vld [vmem:[%s255 + $0x30] sm:$0xff]
        %v305 = vld [vmem:[%s255 + $0x38] sm:$0xff]
        %v306 = vld [vmem:[%s255 + $0x40] sm:$0xff]
        %v307 = vld [vmem:[%s255 + $0x48] sm:$0xff]
        %v308 = vld [vmem:[%s255 + $0x50] sm:$0xff]
        %v309 = vld [vmem:[%s255 + $0x58] sm:$0xff]
        %v310 = vld [vmem:[%s255 + $0x60] sm:$0xff]
        %v311 = vld [vmem:[%s255 + $0x68] sm:$0xff]
        %v312 = vld [vmem:[%s255 + $0x70] sm:$0xff]
        %v313 = vld [vmem:[%s255 + $0x78] sm:$0xff]
        %v314 = vld [vmem:[%s255 + $0x80] sm:$0xff]
        %v315 = vld [vmem:[%s255 + $0x88] sm:$0xff]
        %v316 = vld [vmem:[%s255 + $0x90] sm:$0xff]
        %v317 = vld [vmem:[%s255 + $0x98] sm:$0xff]
        %v318 = vld [vmem:[%s255 + $0xa0] sm:$0xff]
        %v319 = vld [vmem:[%s255 + $0xa8] sm:$0xff]
        %v320 = vld [vmem:[%s255 + $0xb0] sm:$0xff]
        %v321 = vld [vmem:[%s255 + $0xb8] sm:$0xff]
        %v322 = vld [vmem:[%s255 + $0xc0] sm:$0xff]
        %v323 = vld [vmem:[%s255 + $0xc8] sm:$0xff]
        %v324 = vld [vmem:[%s255 + $0xd0] sm:$0xff]
        %v325 = vld [vmem:[%s255 + $0xd8] sm:$0xff]
        %v326 = vld [vmem:[%s2] sm:$0x3]
        %328 = vset.pattern.permute.xlu0 0
        %329 = vperm.xlu0 %328, %v326
        %v330 = vpop.permute.xlu0 %329
        %v360 = vunpack.c.l.b16 %v298
        %v361 = vunpack.c.h.b16 %v298
        %v362 = vunpack.c.l.b16 %v299
        %v363 = vunpack.c.h.b16 %v299
        %v364 = vunpack.c.l.b16 %v300
        %v365 = vunpack.c.h.b16 %v300
        %v366 = vunpack.c.l.b16 %v301
        %v367 = vunpack.c.h.b16 %v301
        %v368 = vunpack.c.l.b16 %v302
        %v369 = vunpack.c.h.b16 %v302
        %v370 = vunpack.c.l.b16 %v303
        %v371 = vunpack.c.h.b16 %v303
        %v372 = vunpack.c.l.b16 %v304
        %v373 = vunpack.c.h.b16 %v304
        %v374 = vunpack.c.l.b16 %v305
        %v375 = vunpack.c.h.b16 %v305
        %v376 = vunpack.c.l.b16 %v306
        %v377 = vunpack.c.h.b16 %v306
        %v378 = vunpack.c.l.b16 %v307
        %v379 = vunpack.c.h.b16 %v307
        %v380 = vunpack.c.l.b16 %v308
        %v381 = vunpack.c.h.b16 %v308
        %v382 = vunpack.c.l.b16 %v309
        %v383 = vunpack.c.h.b16 %v309
        %v384 = vunpack.c.l.b16 %v310
        %v385 = vunpack.c.h.b16 %v310
        %v386 = vunpack.c.l.b16 %v311
        %v387 = vunpack.c.h.b16 %v311
        %v388 = vunpack.c.l.b16 %v312
        %v389 = vunpack.c.h.b16 %v312
        %v390 = vunpack.c.l.b16 %v313
        %v391 = vunpack.c.h.b16 %v313
        %v392 = vunpack.c.l.b16 %v314
        %v393 = vunpack.c.h.b16 %v314
        %v394 = vunpack.c.l.b16 %v315
        %v395 = vunpack.c.h.b16 %v315
        %v396 = vunpack.c.l.b16 %v316
        %v397 = vunpack.c.h.b16 %v316
        %v398 = vunpack.c.l.b16 %v317
        %v399 = vunpack.c.h.b16 %v317
        %v400 = vunpack.c.l.b16 %v318
        %v401 = vunpack.c.h.b16 %v318
        %v402 = vunpack.c.l.b16 %v319
        %v403 = vunpack.c.h.b16 %v319
        %v404 = vunpack.c.l.b16 %v320
        %v405 = vunpack.c.h.b16 %v320
        %v406 = vunpack.c.l.b16 %v321
        %v407 = vunpack.c.h.b16 %v321
        %v408 = vunpack.c.l.b16 %v322
        %v409 = vunpack.c.h.b16 %v322
        %v410 = vunpack.c.l.b16 %v323
        %v411 = vunpack.c.h.b16 %v323
        %v412 = vunpack.c.l.b16 %v324
        %v413 = vunpack.c.h.b16 %v324
        %v414 = vunpack.c.l.b16 %v325
        %v415 = vunpack.c.h.b16 %v325
        %v416 = vpack.c.b16 %v364, %v360
        %v417 = vpack.c.b16 %v365, %v361
        %v418 = vpack.c.b16 %v366, %v362
        %v419 = vpack.c.b16 %v367, %v363
        %v420 = vpack.c.b16 %v372, %v368
        %v421 = vpack.c.b16 %v373, %v369
        %v422 = vpack.c.b16 %v374, %v370
        %v423 = vpack.c.b16 %v375, %v371
        %v424 = vpack.c.b16 %v380, %v376
        %v425 = vpack.c.b16 %v381, %v377
        %v426 = vpack.c.b16 %v382, %v378
        %v427 = vpack.c.b16 %v383, %v379
        %v428 = vpack.c.b16 %v388, %v384
        %v429 = vpack.c.b16 %v389, %v385
        %v430 = vpack.c.b16 %v390, %v386
        %v431 = vpack.c.b16 %v391, %v387
        %v432 = vpack.c.b16 %v396, %v392
        %v433 = vpack.c.b16 %v397, %v393
        %v434 = vpack.c.b16 %v398, %v394
        %v435 = vpack.c.b16 %v399, %v395
        %v436 = vpack.c.b16 %v404, %v400
        %v437 = vpack.c.b16 %v405, %v401
        %v438 = vpack.c.b16 %v406, %v402
        %v439 = vpack.c.b16 %v407, %v403
        %v440 = vpack.c.b16 %v412, %v408
        %v441 = vpack.c.b16 %v413, %v409
        %v442 = vpack.c.b16 %v414, %v410
        %v443 = vpack.c.b16 %v415, %v411
        %vm472 = vcmask 916480
        %v474 = vsel %vm472, %v297, 0
        %476 = vmatprep.subr.bf16.mxu0 %v417
        %477 = vmatpush1.bf16.msra.mxu0 %v416
        %478 = vmatprep.subr.bf16.mxu0 %v421
        %479 = vmatpush1.bf16.msra.mxu0 %v420
        %480 = vmatprep.subr.bf16.mxu0 %v425
        %481 = vmatpush1.bf16.msra.mxu0 %v424
        %482 = vmatprep.subr.bf16.mxu0 %v429
        %483 = vmatpush1.bf16.msra.mxu0 %v428
        %484 = vmatprep.subr.bf16.mxu0 %v433
        %485 = vmatpush1.bf16.msra.mxu0 %v432
        %486 = vmatprep.subr.bf16.mxu0 %v437
        %487 = vmatpush1.bf16.msra.mxu0 %v436
        %488 = vmatprep.subr.bf16.mxu0 %v441
        %489 = vmatpush1.bf16.msra.mxu0 %v440
        %490 = vmatprep.subr.bf16.mxu0 0
        %491 = vmatpush1.bf16.msra.mxu0 0
        %492 = vmatprep.subr.bf16.mxu0 0
        %493 = vmatpush1.bf16.msra.mxu0 0
        %494 = vmatprep.subr.bf16.mxu0 0
        %495 = vmatpush1.bf16.msra.mxu0 0
        %496 = vmatprep.subr.bf16.mxu0 0
        %497 = vmatpush1.bf16.msra.mxu0 0
        %498 = vmatprep.subr.bf16.mxu0 0
        %499 = vmatpush1.bf16.msra.mxu0 0
        %500 = vmatprep.subr.bf16.mxu0 0
        %501 = vmatpush1.bf16.msra.mxu0 0
        %502 = vmatprep.subr.bf16.mxu0 0
        %503 = vmatpush1.bf16.msra.mxu0 0
        %504 = vmatprep.subr.bf16.mxu0 0
        %505 = vmatpush1.bf16.msra.mxu0 0
        %506 = vmatprep.subr.bf16.mxu0 0
        %507 = vmatpush1.bf16.msra.mxu0 0
        %508 = vmatprep.mubr.bf16.mxu0 0
        %509 = vmatmul.mubr.bf16.gmra.mrb[0].mxu0 %v474
        %v510 = vpop.f32.mrb[0].mxu0
        %v511 = vadd.f32 %v330, %v510
        %v512 = vpop.f32.mrb[0].mxu0
        %v513 = vadd.f32 %v330, %v512
        %v514 = vpop.f32.mrb[0].mxu0
        %v515 = vpop.f32.mrb[0].mxu0
        %516 = vdwg.mxu0
        %517 = vmatprep.subr.bf16.mxu0 %v419
        %518 = vmatpush1.bf16.msra.mxu0 %v418
        %519 = vmatprep.subr.bf16.mxu0 %v423
        %520 = vmatpush1.bf16.msra.mxu0 %v422
        %521 = vmatprep.subr.bf16.mxu0 %v427
        %522 = vmatpush1.bf16.msra.mxu0 %v426
        %523 = vmatprep.subr.bf16.mxu0 %v431
        %524 = vmatpush1.bf16.msra.mxu0 %v430
        %525 = vmatprep.subr.bf16.mxu0 %v435
        %526 = vmatpush1.bf16.msra.mxu0 %v434
        %527 = vmatprep.subr.bf16.mxu0 %v439
        %528 = vmatpush1.bf16.msra.mxu0 %v438
        %529 = vmatprep.subr.bf16.mxu0 %v443
        %530 = vmatpush1.bf16.msra.mxu0 %v442
        %531 = vmatprep.subr.bf16.mxu0 0
        %532 = vmatpush1.bf16.msra.mxu0 0
        %533 = vmatprep.subr.bf16.mxu0 0
        %534 = vmatpush1.bf16.msra.mxu0 0
        %535 = vmatprep.subr.bf16.mxu0 0
        %536 = vmatpush1.bf16.msra.mxu0 0
        %537 = vmatprep.subr.bf16.mxu0 0
        %538 = vmatpush1.bf16.msra.mxu0 0
        %539 = vmatprep.subr.bf16.mxu0 0
        %540 = vmatpush1.bf16.msra.mxu0 0
        %541 = vmatprep.subr.bf16.mxu0 0
        %542 = vmatpush1.bf16.msra.mxu0 0
        %543 = vmatprep.subr.bf16.mxu0 0
        %544 = vmatpush1.bf16.msra.mxu0 0
        %545 = vmatprep.subr.bf16.mxu0 0
        %546 = vmatpush1.bf16.msra.mxu0 0
        %547 = vmatprep.subr.bf16.mxu0 0
        %548 = vmatpush1.bf16.msra.mxu0 0
        %549 = vmatprep.mubr.bf16.mxu0 0
        %550 = vmatmul.mubr.bf16.gmra.mrb[0].mxu0 %v474
        %v551 = vpop.f32.mrb[0].mxu0
        %v552 = vadd.f32 %v330, %v551
        %v553 = vpop.f32.mrb[0].mxu0
        %v554 = vadd.f32 %v330, %v553
        %v555 = vpop.f32.mrb[0].mxu0
        %v556 = vpop.f32.mrb[0].mxu0
        %557 = vdwg.mxu0
        %v558 = vmax.f32 %v511, 0.0
        %v559 = vmax.f32 %v513, 0.0
        %v560 = vmax.f32 %v552, 0.0
        %v561 = vmax.f32 %v554, 0.0
        %v562 = vld [vmem:[%s288] sm:$0xff]
        %v564 = vcombine.high %v562, %v562
        %v566 = vunpack.c.l.s4 1983009808
        %v567 = vunpack.c.0.s8 %v566
        %v568 = vlaneseq
        %v569 = vshrl.u32 %v568, 7
        %v570 = vsub.s32 %v567, %v569
        %v571 = vrot.slane %v562, %v570
        %v573 = vunpack.c.l.s4 1983009808
        %v574 = vunpack.c.0.s8 %v573
        %v575 = vlaneseq
        %v576 = vshrl.u32 %v575, 7
        %v577 = vsub.s32 %v574, %v576
        %v578 = vrot.slane %v564, %v577
        %v579 = vcombine.high %v571, %v571
        %v580 = vcombine.high %v578, %v578
        %v585 = vadd.f32 %v558, %v571
        %v586 = vadd.f32 %v559, %v579
        %v587 = vadd.f32 %v560, %v578
        %v588 = vadd.f32 %v561, %v580
        %v593 = vcombine.low %v585, %v586
        %v594 = vcombine.low %v587, %v588
        %v596 = vunpack.c.l.s4 1983009808
        %v597 = vunpack.c.0.s8 %v596
        %v598 = vlaneseq
        %v599 = vshrl.u32 %v598, 7
        %v600 = vsub.s32 %v597, %v599
        %v601 = vrot.slane %v593, %v600
        %v603 = vunpack.c.l.s4 1983009808
        %v604 = vunpack.c.0.s8 %v603
        %v605 = vlaneseq
        %v606 = vshrl.u32 %v605, 7
        %v607 = vsub.s32 %v604, %v606
        %v608 = vrot.slane %v594, %v607
        %v609 = vcombine.low %v601, %v608
        %611 = vst [vmem:[%s294] sm:$0xff] %v609
        %s612 = smul.u32 4, %s15
        %p613 = scmp.lt.s32.totalorder %s612, 7
        %s614 = scalar_select %p613, %s612, 7
        %s615 = smul.addr %s614, 2
        %s616 = scalar_lea.vmem %s4, %s615
        // Predicated region
        $region60: #{_lambda_.20} parent=54 // pred_check
          %p617 = pneg %p127
        $region61: #{_lambda_.20} parent=54 // pred_check_branch
          %619 = sbr.rel (%p617) target = $region63
        $region62: #{_lambda_.20} parent=54 // pred_region
          %s620 = smul.u32 4, %s15
        $region63: #{_lambda_.20} parent=54 // pred_fallthru
          _
      $region55: #{_lambda_.20} parent=5 // pred_fallthru
        _
      %p621 = scmp.le.s32.totalorder 2, %s10
      // Predicated region
      $region64: #{_lambda_.20} parent=5 // pred_check
        %p622 = pneg %p621
      $region65: #{_lambda_.20} parent=5 // pred_check_branch
        %624 = sbr.rel (%p622) target = $region67
      $region66: #{_lambda_.20} parent=5 // pred_region
        %s625 = ssub.s32 %s10, 2
        // Predicated region
        $region68: #{_lambda_.20} parent=66 // pred_check
          %p626 = pneg %p133
        $region69: #{_lambda_.20} parent=66 // pred_check_branch
          %628 = sbr.rel (%p626) target = $region71
        $region70: #{_lambda_.20} parent=66 // pred_region
          %s629 = smul.u32 4, %s16
          %p630 = scmp.lt.s32.totalorder %s629, 7
          %s631 = scalar_select %p630, %s629, 7
          %s632 = smul.addr %s631, 2
          %s633 = scalar_lea.vmem %s4, %s632
        $region71: #{_lambda_.20} parent=66 // pred_fallthru
          _
      $region67: #{_lambda_.20} parent=5 // pred_fallthru
        _
    $region6: #{_lambda_.20} parent=1 // loop_footer
      %s14 = sadd.s32 1, %s10
    $region7: #{_lambda_.20} parent=1 // loop_footer_branch
      %9 = sbr.rel target = $region3
    $region8: #{_lambda_.20} parent=1 // loop_exit
      _

// kernel: _lambda_.21
$region0: #{_lambda_.21}
  #allocation0 [shape = 'u32[]', space=smem, size = 0x4, offset = 0x4, fixed_abs, tag = 'smem constant byte address 0x4 - core index']
  #allocation1 [shape = 'u32[144,128]{1,0:T(1,128)}', space=vmem, size = 0x12000, scoped, tag = 'internal scratch']
  #allocation2 [shape = 'f32[1,1]{1,0:T(1,128)S(1)}', space=vmem, size = 0x200, scoped, tag = 'scoped memory for _lambda_.21']
  %s0 = inlined_call_operand.vmem [shape: bf16[1,56], index: 0, kind: input, shape index: {}]
  %s1 = inlined_call_operand.vmem [shape: bf16[56,1024], index: 1, kind: input, shape index: {}]
  %s2 = inlined_call_operand.<no memory space> [shape: f32[1,1], index: 2, kind: input, shape index: {}]
  %s3 = inlined_call_operand.vmem [shape: f32[1,1024], index: 3, kind: output, shape index: {}]
  %s4 = sld [smem:[#allocation0]]
  $region68: #{_lambda_.21} parent=0
    _
  %s6 = ssub.s32 1, %s4
  %s7 = scalar_select 0, %s6, %s4
  %v8 = vstv %s2
  %9 = vst [vmem:[#allocation2] sm:$0x1] %v8
  $region1: #{_lambda_.21} parent=0
    #allocation3 [shape = 'u8[114688]{0}', space=vmem, size = 0x1c000, scoped, tag = 'input window, operand 1']
    loop: start=0, step=1, limit=4
    $region2: #{_lambda_.21} parent=1 // loop_pre_header
      _
    $region3: #{_lambda_.21} parent=1 // loop_header
      %s11 = sphi 0, %s15
      %p12 = scmp.ge.s32.totalorder %s11, 4
      %s19 = sphi 0, %s19
      %s21 = sphi 0, %s19
      %s22 = sphi 0, %s21
      %s36 = sphi 0, %s22
      %s42 = sphi 0, %s44
      %s45 = sphi 0, %s42
      %s46 = sphi 0, %s45
      %s62 = sphi 0, %s46
      %s66 = sphi 0, %s66
      %s68 = sphi 0, %s66
      %s69 = sphi 0, %s68
      %s83 = sphi 0, %s69
      %s89 = sphi 0, %s91
      %s92 = sphi 0, %s89
      %s93 = sphi 0, %s92
      %s109 = sphi 0, %s93
    $region4: #{_lambda_.21} parent=1 // loop_header_branch
      %14 = sbr.rel (%p12) target = $region8
    $region5: #{_lambda_.21} parent=1 // loop_body
      %s16 = ssub.s32 %s11, 1
      %s17 = ssub.s32 %s11, 2
      %s18 = sadd.s32 %s11, 1
      %s20 = sadd.s32 %s19, 1
      %p23 = scmp.eq.s32.totalorder %s11, 1
      %p24 = scmp.ne.s32.totalorder %s19, %s21
      %p25 = scmp.eq.s32.totalorder %s11, 0
      %p26 = por %p24, %p25
      %p27 = scmp.ne.s32.totalorder %s19, %s21
      %p28 = scmp.eq.s32.totalorder %s16, 1
      %p29 = por %p27, %p28
      %p30 = scmp.ne.s32.totalorder %s21, %s22
      %p31 = scmp.eq.s32.totalorder %s16, 0
      %p32 = por %p30, %p31
      %p33 = scmp.ne.s32.totalorder %s21, %s22
      %p34 = scmp.eq.s32.totalorder %s17, 1
      %p35 = por %p33, %p34
      %p37 = scmp.ne.s32.totalorder %s22, %s36
      %p38 = scmp.eq.s32.totalorder %s17, 0
      %p39 = por %p37, %p38
      %s40 = ssub.s32 %s11, %s18
      %p41 = scmp.eq.s32.totalorder %s40, 0
      %s43 = sadd.s32 %s42, 1
      %s44 = scalar_select %p41, %s42, %s43
      %p47 = pneg %p41
      %p48 = scmp.eq.s32.totalorder %s11, 1
      %p49 = por %p47, %p48
      %p50 = scmp.ne.s32.totalorder %s42, %s45
      %p51 = scmp.eq.s32.totalorder %s11, 0
      %p52 = por %p50, %p51
      %p53 = scmp.ne.s32.totalorder %s42, %s45
      %p54 = scmp.eq.s32.totalorder %s16, 1
      %p55 = por %p53, %p54
      %p56 = scmp.ne.s32.totalorder %s45, %s46
      %p57 = scmp.eq.s32.totalorder %s16, 0
      %p58 = por %p56, %p57
      %p59 = scmp.ne.s32.totalorder %s45, %s46
      %p60 = scmp.eq.s32.totalorder %s17, 1
      %p61 = por %p59, %p60
      %p63 = scmp.ne.s32.totalorder %s46, %s62
      %p64 = scmp.eq.s32.totalorder %s17, 0
      %p65 = por %p63, %p64
      %s67 = sadd.s32 %s66, 1
      %p70 = scmp.eq.s32.totalorder %s11, 1
      %p71 = scmp.ne.s32.totalorder %s66, %s68
      %p72 = scmp.eq.s32.totalorder %s11, 0
      %p73 = por %p71, %p72
      %p74 = scmp.ne.s32.totalorder %s66, %s68
      %p75 = scmp.eq.s32.totalorder %s16, 1
      %p76 = por %p74, %p75
      %p77 = scmp.ne.s32.totalorder %s68, %s69
      %p78 = scmp.eq.s32.totalorder %s16, 0
      %p79 = por %p77, %p78
      %p80 = scmp.ne.s32.totalorder %s68, %s69
      %p81 = scmp.eq.s32.totalorder %s17, 1
      %p82 = por %p80, %p81
      %p84 = scmp.ne.s32.totalorder %s69, %s83
      %p85 = scmp.eq.s32.totalorder %s17, 0
      %p86 = por %p84, %p85
      %s87 = ssub.s32 %s11, %s18
      %p88 = scmp.eq.s32.totalorder %s87, 0
      %s90 = sadd.s32 %s89, 1
      %s91 = scalar_select %p88, %s89, %s90
      %p94 = pneg %p88
      %p95 = scmp.eq.s32.totalorder %s11, 1
      %p96 = por %p94, %p95
      %p97 = scmp.ne.s32.totalorder %s89, %s92
      %p98 = scmp.eq.s32.totalorder %s11, 0
      %p99 = por %p97, %p98
      %p100 = scmp.ne.s32.totalorder %s89, %s92
      %p101 = scmp.eq.s32.totalorder %s16, 1
      %p102 = por %p100, %p101
      %p103 = scmp.ne.s32.totalorder %s92, %s93
      %p104 = scmp.eq.s32.totalorder %s16, 0
      %p105 = por %p103, %p104
      %p106 = scmp.ne.s32.totalorder %s92, %s93
      %p107 = scmp.eq.s32.totalorder %s17, 1
      %p108 = por %p106, %p107
      %p110 = scmp.ne.s32.totalorder %s93, %s109
      %p111 = scmp.eq.s32.totalorder %s17, 0
      %p112 = por %p110, %p111
      %p113 = scmp.le.s32.totalorder 1, %s11
      %p114 = scmp.lt.s32.totalorder %s11, 3
      %p115 = pnand %p113, %p114
      %p116 = pneg %p115
      // Predicated region
      $region9: #{_lambda_.21} parent=5 // pred_check
        _
      $region10: #{_lambda_.21} parent=5 // pred_check_branch
        %118 = sbr.rel (%p115) target = $region12
      $region11: #{_lambda_.21} parent=5 // pred_region
        %s119 = ssub.s32 %s11, 1
        // Predicated region
        $region13: #{_lambda_.21} parent=11 // pred_check
          %p120 = pneg %p32
        $region14: #{_lambda_.21} parent=11 // pred_check_branch
          %122 = sbr.rel (%p120) target = $region16
        $region15: #{_lambda_.21} parent=11 // pred_region
          _
        $region16: #{_lambda_.21} parent=11 // pred_fallthru
          _
        // Predicated region
        $region17: #{_lambda_.21} parent=11 // pred_check
          %p123 = pneg %p79
        $region18: #{_lambda_.21} parent=11 // pred_check_branch
          %125 = sbr.rel (%p123) target = $region20
        $region19: #{_lambda_.21} parent=11 // pred_region
          _
        $region20: #{_lambda_.21} parent=11 // pred_fallthru
          _
      $region12: #{_lambda_.21} parent=5 // pred_fallthru
        _
      %p126 = scmp.lt.s32.totalorder %s11, 2
      // Predicated region
      $region21: #{_lambda_.21} parent=5 // pred_check
        %p127 = pneg %p126
      $region22: #{_lambda_.21} parent=5 // pred_check_branch
        %129 = sbr.rel (%p127) target = $region24
      $region23: #{_lambda_.21} parent=5 // pred_region
        // Predicated region
        $region25: #{_lambda_.21} parent=23 // pred_check
          %p130 = pneg %p52
        $region26: #{_lambda_.21} parent=23 // pred_check_branch
          %132 = sbr.rel (%p130) target = $region28
        $region27: #{_lambda_.21} parent=23 // pred_region
          %s133 = sand.u32 %s42, 1
          %s134 = sand.u32 %s42, 1
          %s135 = smul.addr %s134, 112
          %s136 = scalar_lea.vmem [#allocation3], %s135
          %s137 = smul.u32 4, %s11
          %s138 = smul.addr %s137, 4
          %s139 = scalar_lea.vmem %s1, %s138
          // Predicated region
          $region29: #{_lambda_.21} parent=27 // pred_check
            _
          $region30: #{_lambda_.21} parent=27 // pred_check_branch
            %141 = sbr.rel (0) target = $region32
          $region31: #{_lambda_.21} parent=27 // pred_region
            // Predicated region
            $region33: #{_lambda_.21} parent=31 // pred_check
              _
            $region34: #{_lambda_.21} parent=31 // pred_check_branch
              %143 = sbr.rel (0) target = $region36
            $region35: #{_lambda_.21} parent=31 // pred_region
              loop: start=0, step=1, limit=1
              $region37: #{_lambda_.21} parent=35 // loop_pre_header
                _
              $region38: #{_lambda_.21} parent=35 // loop_header
                %s145 = sphi 0, %s149
                %p146 = scmp.ge.s32.totalorder %s145, 1
                %s150 = sphi %s139, %s139
                %s151 = sphi %s136, %s136
              $region39: #{_lambda_.21} parent=35 // loop_header_branch
                %148 = sbr.rel (%p146) target = $region43
              $region40: #{_lambda_.21} parent=35 // loop_body
                %v152 = vld [vmem:[%s150] sm:$0xff]
                %153 = vst [vmem:[%s151] sm:$0xff] %v152
                %v154 = vld [vmem:[%s150 + $0x8] sm:$0xff]
                %155 = vst [vmem:[%s151 + $0x8] sm:$0xff] %v154
                %v156 = vld [vmem:[%s150 + $0x20] sm:$0xff]
                %157 = vst [vmem:[%s151 + $0x10] sm:$0xff] %v156
                %v158 = vld [vmem:[%s150 + $0x28] sm:$0xff]
                %159 = vst [vmem:[%s151 + $0x18] sm:$0xff] %v158
                %v160 = vld [vmem:[%s150 + $0x40] sm:$0xff]
                %161 = vst [vmem:[%s151 + $0x20] sm:$0xff] %v160
                %v162 = vld [vmem:[%s150 + $0x48] sm:$0xff]
                %163 = vst [vmem:[%s151 + $0x28] sm:$0xff] %v162
                %v164 = vld [vmem:[%s150 + $0x60] sm:$0xff]
                %165 = vst [vmem:[%s151 + $0x30] sm:$0xff] %v164
                %v166 = vld [vmem:[%s150 + $0x68] sm:$0xff]
                %167 = vst [vmem:[%s151 + $0x38] sm:$0xff] %v166
                %v168 = vld [vmem:[%s150 + $0x80] sm:$0xff]
                %169 = vst [vmem:[%s151 + $0x40] sm:$0xff] %v168
                %v170 = vld [vmem:[%s150 + $0x88] sm:$0xff]
                %171 = vst [vmem:[%s151 + $0x48] sm:$0xff] %v170
                %v172 = vld [vmem:[%s150 + $0xa0] sm:$0xff]
                %173 = vst [vmem:[%s151 + $0x50] sm:$0xff] %v172
                %v174 = vld [vmem:[%s150 + $0xa8] sm:$0xff]
                %175 = vst [vmem:[%s151 + $0x58] sm:$0xff] %v174
                %v176 = vld [vmem:[%s150 + $0xc0] sm:$0xff]
                %177 = vst [vmem:[%s151 + $0x60] sm:$0xff] %v176
                %v178 = vld [vmem:[%s150 + $0xc8] sm:$0xff]
                %179 = vst [vmem:[%s151 + $0x68] sm:$0xff] %v178
              $region41: #{_lambda_.21} parent=35 // loop_footer
                %s149 = sadd.s32 1, %s145
              $region42: #{_lambda_.21} parent=35 // loop_footer_branch
                %144 = sbr.rel target = $region38
              $region43: #{_lambda_.21} parent=35 // loop_exit
                _
            $region36: #{_lambda_.21} parent=31 // pred_fallthru
              _
            // Predicated region
            $region44: #{_lambda_.21} parent=31 // pred_check
              _
            $region45: #{_lambda_.21} parent=31 // pred_check_branch
              %181 = sbr.rel target = $region47
            $region46: #{_lambda_.21} parent=31 // pred_region
              _
            $region47: #{_lambda_.21} parent=31 // pred_fallthru
              _
          $region32: #{_lambda_.21} parent=27 // pred_fallthru
            _
          %182 = vnop
        $region28: #{_lambda_.21} parent=23 // pred_fallthru
          _
      $region24: #{_lambda_.21} parent=5 // pred_fallthru
        _
      %p183 = scmp.le.s32.totalorder 1, %s11
      %p184 = scmp.lt.s32.totalorder %s11, 3
      %p185 = pnand %p183, %p184
      %p186 = pneg %p185
      // Predicated region
      $region48: #{_lambda_.21} parent=5 // pred_check
        _
      $region49: #{_lambda_.21} parent=5 // pred_check_branch
        %188 = sbr.rel (%p185) target = $region51
      $region50: #{_lambda_.21} parent=5 // pred_region
        %s189 = ssub.s32 %s11, 1
        %s190 = sand.u32 %s45, 1
        %s191 = sand.u32 %s45, 1
        %s192 = smul.addr %s191, 112
        %s193 = scalar_lea.vmem [#allocation3], %s192
        // Predicated region
        $region52: #{_lambda_.21} parent=50 // pred_check
          %p194 = pneg %p58
        $region53: #{_lambda_.21} parent=50 // pred_check_branch
          %196 = sbr.rel (%p194) target = $region55
        $region54: #{_lambda_.21} parent=50 // pred_region
          _
        $region55: #{_lambda_.21} parent=50 // pred_fallthru
          _
        %p197 = pneg %p32
        %p198 = pneg %p29
        %s199 = sand.u32 %s45, 1
        %s200 = sand.u32 %s45, 1
        %s201 = smul.addr %s200, 112
        %s202 = scalar_lea.vmem [#allocation3], %s201
        %p203 = pneg %p58
        %p204 = pneg %p55
        %p205 = pneg %p79
        %p206 = pneg %p76
        %p207 = pneg %p105
        %p208 = pneg %p102
        %s209 = smul.u32 4, %s16
        %p210 = scmp.lt.s32.totalorder %s209, 7
        %s211 = scalar_select %p210, %s209, 7
        %s212 = scalar_lea.vmem %s3, %s211
        %s213 = smul.u32 4, %s16
        %s214 = smul.u32 4, %s16
        %p215 = scmp.lt.s32.totalorder %s214, 7
        %s216 = scalar_select %p215, %s214, 7
        %s217 = scalar_lea.vmem %s3, %s216
        %s218 = smul.u32 4, %s16
        %v220 = vld [vmem:[%s0] sm:$0x1]
        %v221 = vld [vmem:[%s193] sm:$0xff]
        %v222 = vld [vmem:[%s193 + $0x8] sm:$0xff]
        %v223 = vld [vmem:[%s193 + $0x10] sm:$0xff]
        %v224 = vld [vmem:[%s193 + $0x18] sm:$0xff]
        %v225 = vld [vmem:[%s193 + $0x20] sm:$0xff]
        %v226 = vld [vmem:[%s193 + $0x28] sm:$0xff]
        %v227 = vld [vmem:[%s193 + $0x30] sm:$0xff]
        %v228 = vld [vmem:[%s193 + $0x38] sm:$0xff]
        %v229 = vld [vmem:[%s193 + $0x40] sm:$0xff]
        %v230 = vld [vmem:[%s193 + $0x48] sm:$0xff]
        %v231 = vld [vmem:[%s193 + $0x50] sm:$0xff]
        %v232 = vld [vmem:[%s193 + $0x58] sm:$0xff]
        %v233 = vld [vmem:[%s193 + $0x60] sm:$0xff]
        %v234 = vld [vmem:[%s193 + $0x68] sm:$0xff]
        %v235 = vld [vmem:[#allocation2] sm:$0x1]
        %237 = vset.pattern.permute.xlu0 0
        %238 = vperm.xlu0 %237, %v235
        %v239 = vpop.permute.xlu0 %238
        %v241 = vlaneseq
        %v242 = vshrl.u32 %v241, 7
        %v243 = vsub.s32 0, %v242
        %v244 = vrot.slane %v239, %v243
        %v259 = vunpack.c.l.b16 %v221
        %v260 = vunpack.c.h.b16 %v221
        %v261 = vunpack.c.l.b16 %v222
        %v262 = vunpack.c.h.b16 %v222
        %v263 = vunpack.c.l.b16 %v223
        %v264 = vunpack.c.h.b16 %v223
        %v265 = vunpack.c.l.b16 %v224
        %v266 = vunpack.c.h.b16 %v224
        %v267 = vunpack.c.l.b16 %v225
        %v268 = vunpack.c.h.b16 %v225
        %v269 = vunpack.c.l.b16 %v226
        %v270 = vunpack.c.h.b16 %v226
        %v271 = vunpack.c.l.b16 %v227
        %v272 = vunpack.c.h.b16 %v227
        %v273 = vunpack.c.l.b16 %v228
        %v274 = vunpack.c.h.b16 %v228
        %v275 = vunpack.c.l.b16 %v229
        %v276 = vunpack.c.h.b16 %v229
        %v277 = vunpack.c.l.b16 %v230
        %v278 = vunpack.c.h.b16 %v230
        %v279 = vunpack.c.l.b16 %v231
        %v280 = vunpack.c.h.b16 %v231
        %v281 = vunpack.c.l.b16 %v232
        %v282 = vunpack.c.h.b16 %v232
        %v283 = vunpack.c.l.b16 %v233
        %v284 = vunpack.c.h.b16 %v233
        %v285 = vunpack.c.l.b16 %v234
        %v286 = vunpack.c.h.b16 %v234
        %v287 = vpack.c.b16 %v263, %v259
        %v288 = vpack.c.b16 %v264, %v260
        %v289 = vpack.c.b16 %v265, %v261
        %v290 = vpack.c.b16 %v266, %v262
        %v291 = vpack.c.b16 %v271, %v267
        %v292 = vpack.c.b16 %v272, %v268
        %v293 = vpack.c.b16 %v273, %v269
        %v294 = vpack.c.b16 %v274, %v270
        %v295 = vpack.c.b16 %v279, %v275
        %v296 = vpack.c.b16 %v280, %v276
        %v297 = vpack.c.b16 %v281, %v277
        %v298 = vpack.c.b16 %v282, %v278
        %v299 = vpack.c.b16 %v283, %v283
        %v300 = vpack.c.b16 %v284, %v284
        %v301 = vpack.c.b16 %v285, %v285
        %v302 = vpack.c.b16 %v286, %v286
        %vm315 = vcmask 457728
        %v317 = vsel %vm315, %v220, 0
        %vm319 = vcmask 1043456
        %v321 = vsel %vm319, %v299, 0
        %v324 = vsel %vm319, %v300, 0
        %v327 = vsel %vm319, %v301, 0
        %v330 = vsel %vm319, %v302, 0
        %332 = vmatprep.subr.bf16.mxu0 %v288
        %333 = vmatpush1.bf16.msra.mxu0 %v287
        %334 = vmatprep.subr.bf16.mxu0 %v292
        %335 = vmatpush1.bf16.msra.mxu0 %v291
        %336 = vmatprep.subr.bf16.mxu0 %v296
        %337 = vmatpush1.bf16.msra.mxu0 %v295
        %338 = vmatprep.subr.bf16.mxu0 %v324
        %339 = vmatpush1.bf16.msra.mxu0 %v321
        %340 = vmatprep.subr.bf16.mxu0 0
        %341 = vmatpush1.bf16.msra.mxu0 0
        %342 = vmatprep.subr.bf16.mxu0 0
        %343 = vmatpush1.bf16.msra.mxu0 0
        %344 = vmatprep.subr.bf16.mxu0 0
        %345 = vmatpush1.bf16.msra.mxu0 0
        %346 = vmatprep.subr.bf16.mxu0 0
        %347 = vmatpush1.bf16.msra.mxu0 0
        %348 = vmatprep.subr.bf16.mxu0 0
        %349 = vmatpush1.bf16.msra.mxu0 0
        %350 = vmatprep.subr.bf16.mxu0 0
        %351 = vmatpush1.bf16.msra.mxu0 0
        %352 = vmatprep.subr.bf16.mxu0 0
        %353 = vmatpush1.bf16.msra.mxu0 0
        %354 = vmatprep.subr.bf16.mxu0 0
        %355 = vmatpush1.bf16.msra.mxu0 0
        %356 = vmatprep.subr.bf16.mxu0 0
        %357 = vmatpush1.bf16.msra.mxu0 0
        %358 = vmatprep.subr.bf16.mxu0 0
        %359 = vmatpush1.bf16.msra.mxu0 0
        %360 = vmatprep.subr.bf16.mxu0 0
        %361 = vmatpush1.bf16.msra.mxu0 0
        %362 = vmatprep.subr.bf16.mxu0 0
        %363 = vmatpush1.bf16.msra.mxu0 0
        %364 = vmatprep.mubr.bf16.mxu0 0
        %365 = vmatmul.mubr.bf16.gmra.mrb[0].mxu0 %v317
        %v366 = vpop.f32.mrb[0].mxu0
        %v367 = vadd.f32 %v244, %v366
        %v368 = vpop.f32.mrb[0].mxu0
        %v369 = vadd.f32 %v244, %v368
        %v370 = vpop.f32.mrb[0].mxu0
        %v371 = vpop.f32.mrb[0].mxu0
        %372 = vdwg.mxu0
        %373 = vmatprep.subr.bf16.mxu0 %v290
        %374 = vmatpush1.bf16.msra.mxu0 %v289
        %375 = vmatprep.subr.bf16.mxu0 %v294
        %376 = vmatpush1.bf16.msra.mxu0 %v293
        %377 = vmatprep.subr.bf16.mxu0 %v298
        %378 = vmatpush1.bf16.msra.mxu0 %v297
        %379 = vmatprep.subr.bf16.mxu0 %v330
        %380 = vmatpush1.bf16.msra.mxu0 %v327
        %381 = vmatprep.subr.bf16.mxu0 0
        %382 = vmatpush1.bf16.msra.mxu0 0
        %383 = vmatprep.subr.bf16.mxu0 0
        %384 = vmatpush1.bf16.msra.mxu0 0
        %385 = vmatprep.subr.bf16.mxu0 0
        %386 = vmatpush1.bf16.msra.mxu0 0
        %387 = vmatprep.subr.bf16.mxu0 0
        %388 = vmatpush1.bf16.msra.mxu0 0
        %389 = vmatprep.subr.bf16.mxu0 0
        %390 = vmatpush1.bf16.msra.mxu0 0
        %391 = vmatprep.subr.bf16.mxu0 0
        %392 = vmatpush1.bf16.msra.mxu0 0
        %393 = vmatprep.subr.bf16.mxu0 0
        %394 = vmatpush1.bf16.msra.mxu0 0
        %395 = vmatprep.subr.bf16.mxu0 0
        %396 = vmatpush1.bf16.msra.mxu0 0
        %397 = vmatprep.subr.bf16.mxu0 0
        %398 = vmatpush1.bf16.msra.mxu0 0
        %399 = vmatprep.subr.bf16.mxu0 0
        %400 = vmatpush1.bf16.msra.mxu0 0
        %401 = vmatprep.subr.bf16.mxu0 0
        %402 = vmatpush1.bf16.msra.mxu0 0
        %403 = vmatprep.subr.bf16.mxu0 0
        %404 = vmatpush1.bf16.msra.mxu0 0
        %405 = vmatprep.mubr.bf16.mxu0 0
        %406 = vmatmul.mubr.bf16.gmra.mrb[0].mxu0 %v317
        %v407 = vpop.f32.mrb[0].mxu0
        %v408 = vadd.f32 %v244, %v407
        %v409 = vpop.f32.mrb[0].mxu0
        %v410 = vadd.f32 %v244, %v409
        %v411 = vpop.f32.mrb[0].mxu0
        %v412 = vpop.f32.mrb[0].mxu0
        %413 = vdwg.mxu0
        %v418 = vcombine.low %v367, %v369
        %v419 = vcombine.low %v408, %v410
        %v421 = vunpack.c.l.s4 1966171168
        %v422 = vunpack.c.0.s8 %v421
        %v423 = vlaneseq
        %v424 = vshrl.u32 %v423, 7
        %v425 = vsub.s32 %v422, %v424
        %v426 = vrot.slane %v418, %v425
        %v428 = vunpack.c.l.s4 1966171168
        %v429 = vunpack.c.0.s8 %v428
        %v430 = vlaneseq
        %v431 = vshrl.u32 %v430, 7
        %v432 = vsub.s32 %v429, %v431
        %v433 = vrot.slane %v419, %v432
        %v434 = vcombine.low %v426, %v433
        %v436 = vunpack.c.l.s4 1966171168
        %v437 = vunpack.c.0.s8 %v436
        %v438 = vlaneseq
        %v439 = vshrl.u32 %v438, 7
        %v440 = vsub.s32 %v437, %v439
        %v441 = vrot.slane %v434, %v440
        %v443 = vlaneseq
        %vm444 = vcmp.ge.s32.totalorder %v443, 0
        %vm445 = vcmp.lt.s32.totalorder %v443, 512
        %vm446 = vmand %vm444, %vm445
        %447 = vst.msk [vmem:[%s217] sm:$0xf] %vm446, %v441
        %s448 = smul.u32 4, %s16
        %p449 = scmp.lt.s32.totalorder %s448, 7
        %s450 = scalar_select %p449, %s448, 7
        %s451 = scalar_lea.vmem %s3, %s450
        // Predicated region
        $region56: #{_lambda_.21} parent=50 // pred_check
          %p452 = pneg %p102
        $region57: #{_lambda_.21} parent=50 // pred_check_branch
          %454 = sbr.rel (%p452) target = $region59
        $region58: #{_lambda_.21} parent=50 // pred_region
          %s455 = smul.u32 4, %s16
        $region59: #{_lambda_.21} parent=50 // pred_fallthru
          _
      $region51: #{_lambda_.21} parent=5 // pred_fallthru
        _
      %p456 = scmp.le.s32.totalorder 2, %s11
      // Predicated region
      $region60: #{_lambda_.21} parent=5 // pred_check
        %p457 = pneg %p456
      $region61: #{_lambda_.21} parent=5 // pred_check_branch
        %459 = sbr.rel (%p457) target = $region63
      $region62: #{_lambda_.21} parent=5 // pred_region
        %s460 = ssub.s32 %s11, 2
        // Predicated region
        $region64: #{_lambda_.21} parent=62 // pred_check
          %p461 = pneg %p108
        $region65: #{_lambda_.21} parent=62 // pred_check_branch
          %463 = sbr.rel (%p461) target = $region67
        $region66: #{_lambda_.21} parent=62 // pred_region
          %s464 = smul.u32 4, %s17
          %p465 = scmp.lt.s32.totalorder %s464, 7
          %s466 = scalar_select %p465, %s464, 7
          %s467 = scalar_lea.vmem %s3, %s466
        $region67: #{_lambda_.21} parent=62 // pred_fallthru
          _
      $region63: #{_lambda_.21} parent=5 // pred_fallthru
        _
    $region6: #{_lambda_.21} parent=1 // loop_footer
      %s15 = sadd.s32 1, %s11
    $region7: #{_lambda_.21} parent=1 // loop_footer_branch
      %10 = sbr.rel target = $region3
    $region8: #{_lambda_.21} parent=1 // loop_exit
      _

</llo_original>
